<compile_context>
chip_gen: v5e
topology: v5e:2x2
jax: 0.10.0
libtpu: 0.0.40
codegen_flags: <defaults>
</compile_context>

<pallas_src>
import jax
import jax.numpy as jnp
from jax import lax
from jax.experimental import pallas as pl
from jax.experimental.pallas import tpu as pltpu

# ----------------------------- config ---------------------------------------
B = 2            # batch
S = 16           # sequence length
H = 128          # hidden size (BERT: 768)
NH = 4           # attention heads (BERT: 12)
DH = H // NH     # head dim
I = 256          # FFN intermediate (BERT: 3072)
LAYERS = 2       # encoder layers (BERT: 12)
PROJ = 32        # projection output dim (BERT: 128)
VOCAB = 100
MAX_POS = 32
TYPE_VOCAB = 2
LN_EPS = 1e-12
SCALE = 1.0 / (DH ** 0.5)


# --------------------------- in-kernel helpers -------------------------------


def _ln(x, g, b, eps=LN_EPS):
    """LayerNorm over the last (lane) axis, f32 VPU math."""
    mu = jnp.mean(x, axis=-1, keepdims=True)
    xc = x - mu
    var = jnp.mean(xc * xc, axis=-1, keepdims=True)
    return xc * lax.rsqrt(var + eps) * g + b


def _gelu(x):
    # TODO(synk): BERT uses erf-GELU; the tanh approximation is the TPU-safe
    # form used here (small numeric deviation from the PyTorch reference).
    return 0.5 * x * (1.0 + jnp.tanh(0.7978845608028654 * (x + 0.044715 * x * x * x)))


# ------------------------ the single fused kernel -----------------------------


def _text_encoder_kernel(
    emb_ref, mask_ref, eg_ref, eb_ref,                       # embeddings / emb-LN
    wqkv_ref, bqkv_ref, wo_ref, bo_ref,                      # attention (per layer)
    ln1g_ref, ln1b_ref, w1_ref, b1_ref, w2_ref, b2_ref,      # FFN (per layer)
    ln2g_ref, ln2b_ref,
    wp_ref, bp_ref, wj_ref, bj_ref,                          # pooler + projection
    out_ref,                                                 # (B, PROJ) output
    x_ref, madd_ref, sc_ref, ctx_ref,                        # VMEM scratch
):
    layer = pl.program_id(0)

    # ---- step 0: embedding sum was done in XLA; LN it into the resident x,
    #      and build the additive attention mask once for all layers.
    @pl.when(layer == 0)
    def _():
        x_ref[...] = _ln(emb_ref[...], eg_ref[...], eb_ref[...])
        madd = (1.0 - mask_ref[...]) * -10000.0                       # (B, S)
        madd_ref[...] = jnp.concatenate(
            [jnp.broadcast_to(madd[b:b + 1, :], (NH * S, S)) for b in range(B)],
            axis=0)                                                    # (B*NH*S, S)

    x = x_ref[...]                                                     # (B*S, H) f32
    xb = x.astype(jnp.bfloat16)

    # ---- fused QKV projection: one (B*S,H)@(H,3H) MXU matmul, f32 accumulate
    qkv = jnp.dot(xb, wqkv_ref[...],
                  preferred_element_type=jnp.float32) + bqkv_ref[...]  # (B*S, 3H)
    qkvb = qkv.astype(jnp.bfloat16)                                    # cast once
    q = qkvb[:, 0 * H:1 * H]
    k = qkvb[:, 1 * H:2 * H]
    v = qkvb[:, 2 * H:3 * H]

    # ---- scores for every (batch, head) block, stacked along sublanes
    for b in range(B):
        qb = q[b * S:(b + 1) * S, :]
        kb = k[b * S:(b + 1) * S, :]
        for h in range(NH):
            s = lax.dot_general(qb[:, h * DH:(h + 1) * DH],
                                kb[:, h * DH:(h + 1) * DH],
                                (((1,), (1,)), ((), ())),
                                preferred_element_type=jnp.float32)    # (S, S)
            r = (b * NH + h) * S
            sc_ref[r:r + S, :] = s

    # ---- one batched masked softmax across all B*NH head blocks
    s_all = sc_ref[...] * SCALE + madd_ref[...]                        # (B*NH*S, S)
    s_all = s_all - jnp.max(s_all, axis=-1, keepdims=True)
    p_all = jnp.exp(s_all)
    p_all = p_all * pl.reciprocal(jnp.sum(p_all, axis=-1, keepdims=True), approx=True)
    p_all = p_all.astype(jnp.bfloat16)

    # ---- per-head context written lane-dense into the (B*S, H) scratch
    for b in range(B):
        vb = v[b * S:(b + 1) * S, :]
        for h in range(NH):
            r = (b * NH + h) * S
            ctx = jnp.dot(p_all[r:r + S, :], vb[:, h * DH:(h + 1) * DH],
                          preferred_element_type=jnp.float32)          # (S, DH)
            ctx_ref[b * S:(b + 1) * S, h * DH:(h + 1) * DH] = ctx

    # ---- single K=128 output projection over the full context
    attn_out = jnp.dot(ctx_ref[...].astype(jnp.bfloat16), wo_ref[...],
                       preferred_element_type=jnp.float32) + bo_ref[...]

    # ---- residual + LN1, FFN + residual + LN2 (all fused, x stays in VMEM)
    x1 = _ln(x + attn_out, ln1g_ref[...], ln1b_ref[...])
    h1 = jnp.dot(x1.astype(jnp.bfloat16), w1_ref[...],
                 preferred_element_type=jnp.float32) + b1_ref[...]
    h1 = _gelu(h1)
    ff = jnp.dot(h1.astype(jnp.bfloat16), w2_ref[...],
                 preferred_element_type=jnp.float32) + b2_ref[...]
    x_new = _ln(x1 + ff, ln2g_ref[...], ln2b_ref[...])
    x_ref[...] = x_new

    # ---- last step: CLS extraction + pooler tanh-dense + Linear(H -> PROJ)
    @pl.when(layer == LAYERS - 1)
    def _():
        cls = jnp.concatenate([x_new[b * S:b * S + 1, :] for b in range(B)],
                              axis=0)                                  # (B, H)
        pooled = jnp.tanh(jnp.dot(cls.astype(jnp.bfloat16), wp_ref[...],
                                  preferred_element_type=jnp.float32) + bp_ref[...])
        proj = jnp.dot(pooled.astype(jnp.bfloat16), wj_ref[...],
                       preferred_element_type=jnp.float32) + bj_ref[...]
        out_ref[...] = proj.astype(out_ref.dtype)


# --------------------------- pallas_call wrapper ------------------------------


def _full_spec(*shape):
    n = len(shape)
    return pl.BlockSpec(shape, lambda l, _n=n: (0,) * _n)


def _layer_spec(*shape):
    n = len(shape)
    return pl.BlockSpec((None,) + shape, lambda l, _n=n: (l,) + (0,) * _n)


def text_encoder_forward(params, input_ids, attention_mask):
    # ---- BERT embeddings: gathers + sum are XLA glue; LN happens in-kernel ----
    word = jnp.take(params["word_emb"], input_ids, axis=0)        # (B, S, H)
    pos = params["pos_emb"][:S][None]                             # (1, S, H)
    typ = params["type_emb"][0][None, None]                       # token_type_ids == 0
    emb = (word + pos + typ).reshape(B * S, H)                    # (B*S, H) f32
    mask = attention_mask.astype(jnp.float32)                     # (B, S) 0/1

    L = params["layers"]
    # TODO(synk): on v7x a leading "parallel" batch grid axis would use both
    # TensorCores; omitted here (B=2, single-call latency already dominated by
    # dispatch) to keep the resident-x scratch design simple.
    return pl.pallas_call(
        _text_encoder_kernel,
        out_shape=jax.ShapeDtypeStruct((B, PROJ), jnp.float32),
        grid=(LAYERS,),
        in_specs=[
            _full_spec(B * S, H),            # summed embeddings
            _full_spec(B, S),                # attention mask (0/1)
            _full_spec(1, H),                # emb LN gamma
            _full_spec(1, H),                # emb LN beta
            _layer_spec(H, 3 * H),           # wqkv (bf16)
            _layer_spec(1, 3 * H),           # bqkv
            _layer_spec(H, H),               # wo (bf16)
            _layer_spec(1, H),               # bo
            _layer_spec(1, H),               # ln1 gamma
            _layer_spec(1, H),               # ln1 beta
            _layer_spec(H, I),               # w1 (bf16)
            _layer_spec(1, I),               # b1
            _layer_spec(I, H),               # w2 (bf16)
            _layer_spec(1, H),               # b2
            _layer_spec(1, H),               # ln2 gamma
            _layer_spec(1, H),               # ln2 beta
            _full_spec(H, H),                # pooler w (bf16)
            _full_spec(1, H),                # pooler b
            _full_spec(H, PROJ),             # projection w (bf16)
            _full_spec(1, PROJ),             # projection b
        ],
        out_specs=pl.BlockSpec((B, PROJ), lambda l: (0, 0)),
        scratch_shapes=[
            pltpu.VMEM((B * S, H), jnp.float32),        # resident activations x
            pltpu.VMEM((B * NH * S, S), jnp.float32),   # additive attention mask
            pltpu.VMEM((B * NH * S, S), jnp.float32),   # stacked attention scores
            pltpu.VMEM((B * S, H), jnp.float32),        # per-head context (lane-dense)
        ],
        compiler_params=pltpu.CompilerParams(dimension_semantics=("arbitrary",)),
    )(emb, mask, params["emb_ln_g"], params["emb_ln_b"],
      L["wqkv"], L["bqkv"], L["wo"], L["bo"],
      L["ln1_g"], L["ln1_b"], L["w1"], L["b1"], L["w2"], L["b2"],
      L["ln2_g"], L["ln2_b"],
      params["pooler_w"], params["pooler_b"], params["proj_w"], params["proj_b"])


# --------------------------- parameter init ----------------------------------


def init_params(key):
    keys = iter(jax.random.split(key, 16))

    def nrm(shape, dtype=jnp.float32):
        return (0.02 * jax.random.normal(next(keys), shape, jnp.float32)).astype(dtype)

    return {
        # embedding tables stay f32 (gathered in XLA)
        "word_emb": nrm((VOCAB, H)),
        "pos_emb": nrm((MAX_POS, H)),
        "type_emb": nrm((TYPE_VOCAB, H)),
        "emb_ln_g": jnp.ones((1, H), jnp.float32),
        "emb_ln_b": jnp.zeros((1, H), jnp.float32),
        # matmul weights are bf16 at the kernel boundary; biases / LN stay f32
        "pooler_w": nrm((H, H), jnp.bfloat16),
        "pooler_b": jnp.zeros((1, H), jnp.float32),
        "proj_w": nrm((H, PROJ), jnp.bfloat16),
        "proj_b": jnp.zeros((1, PROJ), jnp.float32),
        # per-layer weights stacked along a leading LAYERS axis
        "layers": {
            "wqkv": nrm((LAYERS, H, 3 * H), jnp.bfloat16),
            "bqkv": jnp.zeros((LAYERS, 1, 3 * H), jnp.float32),
            "wo": nrm((LAYERS, H, H), jnp.bfloat16),
            "bo": jnp.zeros((LAYERS, 1, H), jnp.float32),
            "ln1_g": jnp.ones((LAYERS, 1, H), jnp.float32),
            "ln1_b": jnp.zeros((LAYERS, 1, H), jnp.float32),
            "w1": nrm((LAYERS, H, I), jnp.bfloat16),
            "b1": jnp.zeros((LAYERS, 1, I), jnp.float32),
            "w2": nrm((LAYERS, I, H), jnp.bfloat16),
            "b2": jnp.zeros((LAYERS, 1, H), jnp.float32),
            "ln2_g": jnp.ones((LAYERS, 1, H), jnp.float32),
            "ln2_b": jnp.zeros((LAYERS, 1, H), jnp.float32),
        },
    }


# --------------------------------- main ---------------------------------------

if __name__ == "__main__":
    key = jax.random.PRNGKey(0)
    k_param, k_ids = jax.random.split(key)

    params = init_params(k_param)
    input_ids = jax.random.randint(k_ids, (B, S), 0, VOCAB, dtype=jnp.int32)
    # second example padded after position 10
    attention_mask = jnp.concatenate(
        [jnp.ones((1, S), jnp.int32),
         jnp.concatenate([jnp.ones((1, 10), jnp.int32),
                          jnp.zeros((1, S - 10), jnp.int32)], axis=1)],
        axis=0)

    fwd = jax.jit(text_encoder_forward)
    out = fwd(params, input_ids, attention_mask)
    out = jax.block_until_ready(out)
    assert out.shape == (B, PROJ), out.shape
    assert jnp.all(jnp.isfinite(out))
    print("KERNEL_OK")
</pallas_src>

<mosaic_0001>
module attributes {stable_mosaic.version = 11 : i64} {
  func.func @_text_encoder_kernel(%arg0: i32, %arg1: memref<32x128xf32, #tpu.memory_space<vmem>>, %arg2: memref<2x16xf32, #tpu.memory_space<vmem>>, %arg3: memref<1x128xf32, #tpu.memory_space<vmem>>, %arg4: memref<1x128xf32, #tpu.memory_space<vmem>>, %arg5: memref<1x128x384xbf16, #tpu.memory_space<vmem>>, %arg6: memref<1x1x384xf32, #tpu.memory_space<vmem>>, %arg7: memref<1x128x128xbf16, #tpu.memory_space<vmem>>, %arg8: memref<1x1x128xf32, #tpu.memory_space<vmem>>, %arg9: memref<1x1x128xf32, #tpu.memory_space<vmem>>, %arg10: memref<1x1x128xf32, #tpu.memory_space<vmem>>, %arg11: memref<1x128x256xbf16, #tpu.memory_space<vmem>>, %arg12: memref<1x1x256xf32, #tpu.memory_space<vmem>>, %arg13: memref<1x256x128xbf16, #tpu.memory_space<vmem>>, %arg14: memref<1x1x128xf32, #tpu.memory_space<vmem>>, %arg15: memref<1x1x128xf32, #tpu.memory_space<vmem>>, %arg16: memref<1x1x128xf32, #tpu.memory_space<vmem>>, %arg17: memref<128x128xbf16, #tpu.memory_space<vmem>>, %arg18: memref<1x128xf32, #tpu.memory_space<vmem>>, %arg19: memref<128x32xbf16, #tpu.memory_space<vmem>>, %arg20: memref<1x32xf32, #tpu.memory_space<vmem>>, %arg21: memref<2x32xf32, #tpu.memory_space<vmem>>, %arg22: memref<32x128xf32, #tpu.memory_space<vmem>>, %arg23: memref<128x16xf32, #tpu.memory_space<vmem>>, %arg24: memref<128x16xf32, #tpu.memory_space<vmem>>, %arg25: memref<32x128xf32, #tpu.memory_space<vmem>>) attributes {dimension_semantics = [#tpu.dimension_semantics<arbitrary>], iteration_bounds = array<i64: 2>, scalar_prefetch = 0 : i64, scratch_operands = 4 : i64, tpu.core_type = #tpu.core_type<tc>, window_params = [{pipeline_mode = #tpu.pipeline_mode<synchronous>, transform_indices = @transform_0, window_bounds = array<i64: 32, 128>}, {pipeline_mode = #tpu.pipeline_mode<synchronous>, transform_indices = @transform_1, window_bounds = array<i64: 2, 16>}, {pipeline_mode = #tpu.pipeline_mode<synchronous>, transform_indices = @transform_2, window_bounds = array<i64: 1, 128>}, {pipeline_mode = #tpu.pipeline_mode<synchronous>, transform_indices = @transform_3, window_bounds = array<i64: 1, 128>}, {transform_indices = @transform_4, window_bounds = array<i64: 1, 128, 384>}, {transform_indices = @transform_5, window_bounds = array<i64: 1, 1, 384>}, {transform_indices = @transform_6, window_bounds = array<i64: 1, 128, 128>}, {transform_indices = @transform_7, window_bounds = array<i64: 1, 1, 128>}, {transform_indices = @transform_8, window_bounds = array<i64: 1, 1, 128>}, {transform_indices = @transform_9, window_bounds = array<i64: 1, 1, 128>}, {transform_indices = @transform_10, window_bounds = array<i64: 1, 128, 256>}, {transform_indices = @transform_11, window_bounds = array<i64: 1, 1, 256>}, {transform_indices = @transform_12, window_bounds = array<i64: 1, 256, 128>}, {transform_indices = @transform_13, window_bounds = array<i64: 1, 1, 128>}, {transform_indices = @transform_14, window_bounds = array<i64: 1, 1, 128>}, {transform_indices = @transform_15, window_bounds = array<i64: 1, 1, 128>}, {pipeline_mode = #tpu.pipeline_mode<synchronous>, transform_indices = @transform_16, window_bounds = array<i64: 128, 128>}, {pipeline_mode = #tpu.pipeline_mode<synchronous>, transform_indices = @transform_17, window_bounds = array<i64: 1, 128>}, {pipeline_mode = #tpu.pipeline_mode<synchronous>, transform_indices = @transform_18, window_bounds = array<i64: 128, 32>}, {pipeline_mode = #tpu.pipeline_mode<synchronous>, transform_indices = @transform_19, window_bounds = array<i64: 1, 32>}, {pipeline_mode = #tpu.pipeline_mode<synchronous>, transform_indices = @transform_20, window_bounds = array<i64: 2, 32>}]} {
    %c0_i32 = arith.constant 0 : i32
    %0 = arith.cmpi eq, %arg0, %c0_i32 : i32
    %1 = arith.extui %0 : i1 to i32
    %c0_i32_0 = arith.constant 0 : i32
    %2 = arith.cmpi ne, %1, %c0_i32_0 : i32
    scf.if %2 {
      %c0_108 = arith.constant 0 : index
      %c0_109 = arith.constant 0 : index
      %194 = vector.load %arg1[%c0_108, %c0_109] : memref<32x128xf32, #tpu.memory_space<vmem>>, vector<32x128xf32>
      %c0_110 = arith.constant 0 : index
      %c0_111 = arith.constant 0 : index
      %195 = vector.load %arg3[%c0_110, %c0_111] : memref<1x128xf32, #tpu.memory_space<vmem>>, vector<1x128xf32>
      %c0_112 = arith.constant 0 : index
      %c0_113 = arith.constant 0 : index
      %196 = vector.load %arg4[%c0_112, %c0_113] : memref<1x128xf32, #tpu.memory_space<vmem>>, vector<1x128xf32>
      %cst_114 = arith.constant dense<0.000000e+00> : vector<32xf32>
      %197 = vector.multi_reduction <add>, %194, %cst_114 [1] : vector<32x128xf32> to vector<32xf32>
      %198 = vector.shape_cast %197 : vector<32xf32> to vector<32x1xf32>
      %cst_115 = arith.constant 1.280000e+02 : f32
      %199 = vector.broadcast %cst_115 : f32 to vector<32x1xf32>
      %200 = arith.divf %198, %199 : vector<32x1xf32>
      %201 = vector.broadcast %200 : vector<32x1xf32> to vector<32x128xf32>
      %202 = arith.subf %194, %201 : vector<32x128xf32>
      %203 = arith.mulf %202, %202 : vector<32x128xf32>
      %cst_116 = arith.constant dense<0.000000e+00> : vector<32xf32>
      %204 = vector.multi_reduction <add>, %203, %cst_116 [1] : vector<32x128xf32> to vector<32xf32>
      %205 = vector.shape_cast %204 : vector<32xf32> to vector<32x1xf32>
      %cst_117 = arith.constant 1.280000e+02 : f32
      %206 = vector.broadcast %cst_117 : f32 to vector<32x1xf32>
      %207 = arith.divf %205, %206 : vector<32x1xf32>
      %cst_118 = arith.constant 9.99999996E-13 : f32
      %208 = vector.broadcast %cst_118 : f32 to vector<32x1xf32>
      %209 = arith.addf %207, %208 : vector<32x1xf32>
      %210 = math.rsqrt %209 : vector<32x1xf32>
      %211 = vector.broadcast %210 : vector<32x1xf32> to vector<32x128xf32>
      %212 = arith.mulf %202, %211 : vector<32x128xf32>
      %213 = vector.broadcast %195 : vector<1x128xf32> to vector<32x128xf32>
      %214 = arith.mulf %212, %213 : vector<32x128xf32>
      %215 = vector.broadcast %196 : vector<1x128xf32> to vector<32x128xf32>
      %216 = arith.addf %214, %215 : vector<32x128xf32>
      %c0_119 = arith.constant 0 : index
      %c0_120 = arith.constant 0 : index
      %217 = vector.load %arg22[%c0_119, %c0_120] : memref<32x128xf32, #tpu.memory_space<vmem>>, vector<32x128xf32>
      tpu.vector_store %arg22[%c0_119, %c0_120], %216 {strides = array<i32>} : memref<32x128xf32, #tpu.memory_space<vmem>>, vector<32x128xf32>,
      %c0_121 = arith.constant 0 : index
      %c0_122 = arith.constant 0 : index
      %218 = vector.load %arg2[%c0_121, %c0_122] : memref<2x16xf32, #tpu.memory_space<vmem>>, vector<2x16xf32>
      %cst_123 = arith.constant 1.000000e+00 : f32
      %219 = vector.broadcast %cst_123 : f32 to vector<2x16xf32>
      %220 = arith.subf %219, %218 : vector<2x16xf32>
      %cst_124 = arith.constant -1.000000e+04 : f32
      %221 = vector.broadcast %cst_124 : f32 to vector<2x16xf32>
      %222 = arith.mulf %220, %221 : vector<2x16xf32>
      %223 = vector.extract_strided_slice %222 {offsets = [0, 0], sizes = [1, 16], strides = [1, 1]} : vector<2x16xf32> to vector<1x16xf32>
      %224 = vector.shape_cast %223 : vector<1x16xf32> to vector<1x16xf32>
      %225 = vector.broadcast %224 : vector<1x16xf32> to vector<64x16xf32>
      %226 = vector.extract_strided_slice %222 {offsets = [1, 0], sizes = [1, 16], strides = [1, 1]} : vector<2x16xf32> to vector<1x16xf32>
      %227 = vector.shape_cast %226 : vector<1x16xf32> to vector<1x16xf32>
      %228 = vector.broadcast %227 : vector<1x16xf32> to vector<64x16xf32>
      %229 = tpu.concatenate %225, %228 in 0 : vector<64x16xf32>, vector<64x16xf32> -> vector<128x16xf32>
      %c0_125 = arith.constant 0 : index
      %c0_126 = arith.constant 0 : index
      %230 = vector.load %arg23[%c0_125, %c0_126] : memref<128x16xf32, #tpu.memory_space<vmem>>, vector<128x16xf32>
      tpu.vector_store %arg23[%c0_125, %c0_126], %229 {strides = array<i32>} : memref<128x16xf32, #tpu.memory_space<vmem>>, vector<128x16xf32>,
    } else {
    }
    %c0 = arith.constant 0 : index
    %c0_1 = arith.constant 0 : index
    %3 = vector.load %arg22[%c0, %c0_1] : memref<32x128xf32, #tpu.memory_space<vmem>>, vector<32x128xf32>
    %4 = arith.truncf %3 : vector<32x128xf32> to vector<32x128xbf16>
    %c0_2 = arith.constant 0 : index
    %c0_3 = arith.constant 0 : index
    %c0_4 = arith.constant 0 : index
    %5 = vector.load %arg5[%c0_2, %c0_3, %c0_4] : memref<1x128x384xbf16, #tpu.memory_space<vmem>>, vector<1x128x384xbf16>
    %6 = vector.shape_cast %5 : vector<1x128x384xbf16> to vector<128x384xbf16>
    %cst = arith.constant dense<0.000000e+00> : vector<32x384xf32>
    %7 = tpu.matmul %4, %6, %cst {dimension_numbers = #tpu.dot_dimension_numbers<[1], [0], [0], [1], [0, 0, 1, 1], [], []>} : vector<32x128xbf16>, vector<128x384xbf16>, vector<32x384xf32> -> vector<32x384xf32>
    %c0_5 = arith.constant 0 : index
    %c0_6 = arith.constant 0 : index
    %c0_7 = arith.constant 0 : index
    %8 = vector.load %arg6[%c0_5, %c0_6, %c0_7] : memref<1x1x384xf32, #tpu.memory_space<vmem>>, vector<1x1x384xf32>
    %9 = vector.shape_cast %8 : vector<1x1x384xf32> to vector<1x384xf32>
    %10 = vector.broadcast %9 : vector<1x384xf32> to vector<32x384xf32>
    %11 = arith.addf %7, %10 : vector<32x384xf32>
    %12 = arith.truncf %11 : vector<32x384xf32> to vector<32x384xbf16>
    %13 = vector.extract_strided_slice %12 {offsets = [0, 0], sizes = [32, 128], strides = [1, 1]} : vector<32x384xbf16> to vector<32x128xbf16>
    %14 = vector.extract_strided_slice %12 {offsets = [0, 128], sizes = [32, 128], strides = [1, 1]} : vector<32x384xbf16> to vector<32x128xbf16>
    %15 = vector.extract_strided_slice %12 {offsets = [0, 256], sizes = [32, 128], strides = [1, 1]} : vector<32x384xbf16> to vector<32x128xbf16>
    %16 = vector.extract_strided_slice %13 {offsets = [0, 0], sizes = [16, 128], strides = [1, 1]} : vector<32x128xbf16> to vector<16x128xbf16>
    %17 = vector.extract_strided_slice %14 {offsets = [0, 0], sizes = [16, 128], strides = [1, 1]} : vector<32x128xbf16> to vector<16x128xbf16>
    %18 = vector.extract_strided_slice %16 {offsets = [0, 0], sizes = [16, 32], strides = [1, 1]} : vector<16x128xbf16> to vector<16x32xbf16>
    %19 = vector.extract_strided_slice %17 {offsets = [0, 0], sizes = [16, 32], strides = [1, 1]} : vector<16x128xbf16> to vector<16x32xbf16>
    %cst_8 = arith.constant dense<0.000000e+00> : vector<16x16xf32>
    %20 = tpu.matmul %18, %19, %cst_8 {dimension_numbers = #tpu.dot_dimension_numbers<[1], [1], [0], [0], [0, 0, 1, 0], [], []>} : vector<16x32xbf16>, vector<16x32xbf16>, vector<16x16xf32> -> vector<16x16xf32>
    %c0_9 = arith.constant 0 : index
    %c0_10 = arith.constant 0 : index
    %21 = vector.load %arg24[%c0_9, %c0_10] : memref<128x16xf32, #tpu.memory_space<vmem>>, vector<16x16xf32>
    tpu.vector_store %arg24[%c0_9, %c0_10], %20 {strides = array<i32>} : memref<128x16xf32, #tpu.memory_space<vmem>>, vector<16x16xf32>,
    %22 = vector.extract_strided_slice %16 {offsets = [0, 32], sizes = [16, 32], strides = [1, 1]} : vector<16x128xbf16> to vector<16x32xbf16>
    %23 = vector.extract_strided_slice %17 {offsets = [0, 32], sizes = [16, 32], strides = [1, 1]} : vector<16x128xbf16> to vector<16x32xbf16>
    %cst_11 = arith.constant dense<0.000000e+00> : vector<16x16xf32>
    %24 = tpu.matmul %22, %23, %cst_11 {dimension_numbers = #tpu.dot_dimension_numbers<[1], [1], [0], [0], [0, 0, 1, 0], [], []>} : vector<16x32xbf16>, vector<16x32xbf16>, vector<16x16xf32> -> vector<16x16xf32>
    %c16 = arith.constant 16 : index
    %c0_12 = arith.constant 0 : index
    %25 = vector.load %arg24[%c16, %c0_12] : memref<128x16xf32, #tpu.memory_space<vmem>>, vector<16x16xf32>
    tpu.vector_store %arg24[%c16, %c0_12], %24 {strides = array<i32>} : memref<128x16xf32, #tpu.memory_space<vmem>>, vector<16x16xf32>,
    %26 = vector.extract_strided_slice %16 {offsets = [0, 64], sizes = [16, 32], strides = [1, 1]} : vector<16x128xbf16> to vector<16x32xbf16>
    %27 = vector.extract_strided_slice %17 {offsets = [0, 64], sizes = [16, 32], strides = [1, 1]} : vector<16x128xbf16> to vector<16x32xbf16>
    %cst_13 = arith.constant dense<0.000000e+00> : vector<16x16xf32>
    %28 = tpu.matmul %26, %27, %cst_13 {dimension_numbers = #tpu.dot_dimension_numbers<[1], [1], [0], [0], [0, 0, 1, 0], [], []>} : vector<16x32xbf16>, vector<16x32xbf16>, vector<16x16xf32> -> vector<16x16xf32>
    %c32 = arith.constant 32 : index
    %c0_14 = arith.constant 0 : index
    %29 = vector.load %arg24[%c32, %c0_14] : memref<128x16xf32, #tpu.memory_space<vmem>>, vector<16x16xf32>
    tpu.vector_store %arg24[%c32, %c0_14], %28 {strides = array<i32>} : memref<128x16xf32, #tpu.memory_space<vmem>>, vector<16x16xf32>,
    %30 = vector.extract_strided_slice %16 {offsets = [0, 96], sizes = [16, 32], strides = [1, 1]} : vector<16x128xbf16> to vector<16x32xbf16>
    %31 = vector.extract_strided_slice %17 {offsets = [0, 96], sizes = [16, 32], strides = [1, 1]} : vector<16x128xbf16> to vector<16x32xbf16>
    %cst_15 = arith.constant dense<0.000000e+00> : vector<16x16xf32>
    %32 = tpu.matmul %30, %31, %cst_15 {dimension_numbers = #tpu.dot_dimension_numbers<[1], [1], [0], [0], [0, 0, 1, 0], [], []>} : vector<16x32xbf16>, vector<16x32xbf16>, vector<16x16xf32> -> vector<16x16xf32>
    %c48 = arith.constant 48 : index
    %c0_16 = arith.constant 0 : index
    %33 = vector.load %arg24[%c48, %c0_16] : memref<128x16xf32, #tpu.memory_space<vmem>>, vector<16x16xf32>
    tpu.vector_store %arg24[%c48, %c0_16], %32 {strides = array<i32>} : memref<128x16xf32, #tpu.memory_space<vmem>>, vector<16x16xf32>,
    %34 = vector.extract_strided_slice %13 {offsets = [16, 0], sizes = [16, 128], strides = [1, 1]} : vector<32x128xbf16> to vector<16x128xbf16>
    %35 = vector.extract_strided_slice %14 {offsets = [16, 0], sizes = [16, 128], strides = [1, 1]} : vector<32x128xbf16> to vector<16x128xbf16>
    %36 = vector.extract_strided_slice %34 {offsets = [0, 0], sizes = [16, 32], strides = [1, 1]} : vector<16x128xbf16> to vector<16x32xbf16>
    %37 = vector.extract_strided_slice %35 {offsets = [0, 0], sizes = [16, 32], strides = [1, 1]} : vector<16x128xbf16> to vector<16x32xbf16>
    %cst_17 = arith.constant dense<0.000000e+00> : vector<16x16xf32>
    %38 = tpu.matmul %36, %37, %cst_17 {dimension_numbers = #tpu.dot_dimension_numbers<[1], [1], [0], [0], [0, 0, 1, 0], [], []>} : vector<16x32xbf16>, vector<16x32xbf16>, vector<16x16xf32> -> vector<16x16xf32>
    %c64 = arith.constant 64 : index
    %c0_18 = arith.constant 0 : index
    %39 = vector.load %arg24[%c64, %c0_18] : memref<128x16xf32, #tpu.memory_space<vmem>>, vector<16x16xf32>
    tpu.vector_store %arg24[%c64, %c0_18], %38 {strides = array<i32>} : memref<128x16xf32, #tpu.memory_space<vmem>>, vector<16x16xf32>,
    %40 = vector.extract_strided_slice %34 {offsets = [0, 32], sizes = [16, 32], strides = [1, 1]} : vector<16x128xbf16> to vector<16x32xbf16>
    %41 = vector.extract_strided_slice %35 {offsets = [0, 32], sizes = [16, 32], strides = [1, 1]} : vector<16x128xbf16> to vector<16x32xbf16>
    %cst_19 = arith.constant dense<0.000000e+00> : vector<16x16xf32>
    %42 = tpu.matmul %40, %41, %cst_19 {dimension_numbers = #tpu.dot_dimension_numbers<[1], [1], [0], [0], [0, 0, 1, 0], [], []>} : vector<16x32xbf16>, vector<16x32xbf16>, vector<16x16xf32> -> vector<16x16xf32>
    %c80 = arith.constant 80 : index
    %c0_20 = arith.constant 0 : index
    %43 = vector.load %arg24[%c80, %c0_20] : memref<128x16xf32, #tpu.memory_space<vmem>>, vector<16x16xf32>
    tpu.vector_store %arg24[%c80, %c0_20], %42 {strides = array<i32>} : memref<128x16xf32, #tpu.memory_space<vmem>>, vector<16x16xf32>,
    %44 = vector.extract_strided_slice %34 {offsets = [0, 64], sizes = [16, 32], strides = [1, 1]} : vector<16x128xbf16> to vector<16x32xbf16>
    %45 = vector.extract_strided_slice %35 {offsets = [0, 64], sizes = [16, 32], strides = [1, 1]} : vector<16x128xbf16> to vector<16x32xbf16>
    %cst_21 = arith.constant dense<0.000000e+00> : vector<16x16xf32>
    %46 = tpu.matmul %44, %45, %cst_21 {dimension_numbers = #tpu.dot_dimension_numbers<[1], [1], [0], [0], [0, 0, 1, 0], [], []>} : vector<16x32xbf16>, vector<16x32xbf16>, vector<16x16xf32> -> vector<16x16xf32>
    %c96 = arith.constant 96 : index
    %c0_22 = arith.constant 0 : index
    %47 = vector.load %arg24[%c96, %c0_22] : memref<128x16xf32, #tpu.memory_space<vmem>>, vector<16x16xf32>
    tpu.vector_store %arg24[%c96, %c0_22], %46 {strides = array<i32>} : memref<128x16xf32, #tpu.memory_space<vmem>>, vector<16x16xf32>,
    %48 = vector.extract_strided_slice %34 {offsets = [0, 96], sizes = [16, 32], strides = [1, 1]} : vector<16x128xbf16> to vector<16x32xbf16>
    %49 = vector.extract_strided_slice %35 {offsets = [0, 96], sizes = [16, 32], strides = [1, 1]} : vector<16x128xbf16> to vector<16x32xbf16>
    %cst_23 = arith.constant dense<0.000000e+00> : vector<16x16xf32>
    %50 = tpu.matmul %48, %49, %cst_23 {dimension_numbers = #tpu.dot_dimension_numbers<[1], [1], [0], [0], [0, 0, 1, 0], [], []>} : vector<16x32xbf16>, vector<16x32xbf16>, vector<16x16xf32> -> vector<16x16xf32>
    %c112 = arith.constant 112 : index
    %c0_24 = arith.constant 0 : index
    %51 = vector.load %arg24[%c112, %c0_24] : memref<128x16xf32, #tpu.memory_space<vmem>>, vector<16x16xf32>
    tpu.vector_store %arg24[%c112, %c0_24], %50 {strides = array<i32>} : memref<128x16xf32, #tpu.memory_space<vmem>>, vector<16x16xf32>,
    %c0_25 = arith.constant 0 : index
    %c0_26 = arith.constant 0 : index
    %52 = vector.load %arg24[%c0_25, %c0_26] : memref<128x16xf32, #tpu.memory_space<vmem>>, vector<128x16xf32>
    %cst_27 = arith.constant 0.176776692 : f32
    %53 = vector.broadcast %cst_27 : f32 to vector<128x16xf32>
    %54 = arith.mulf %52, %53 : vector<128x16xf32>
    %c0_28 = arith.constant 0 : index
    %c0_29 = arith.constant 0 : index
    %55 = vector.load %arg23[%c0_28, %c0_29] : memref<128x16xf32, #tpu.memory_space<vmem>>, vector<128x16xf32>
    %56 = arith.addf %54, %55 : vector<128x16xf32>
    %cst_30 = arith.constant dense<0xFF800000> : vector<128xf32>
    %57 = vector.multi_reduction <maximumf>, %56, %cst_30 [1] : vector<128x16xf32> to vector<128xf32>
    %58 = vector.shape_cast %57 : vector<128xf32> to vector<128x1xf32>
    %59 = vector.broadcast %58 : vector<128x1xf32> to vector<128x16xf32>
    %60 = arith.subf %56, %59 : vector<128x16xf32>
    %61 = math.exp %60 : vector<128x16xf32>
    %cst_31 = arith.constant dense<0.000000e+00> : vector<128xf32>
    %62 = vector.multi_reduction <add>, %61, %cst_31 [1] : vector<128x16xf32> to vector<128xf32>
    %63 = vector.shape_cast %62 : vector<128xf32> to vector<128x1xf32>
    %64 = tpu.reciprocal %63 {approx = true} : vector<128x1xf32> -> vector<128x1xf32>
    %65 = vector.broadcast %64 : vector<128x1xf32> to vector<128x16xf32>
    %66 = arith.mulf %61, %65 : vector<128x16xf32>
    %67 = arith.truncf %66 : vector<128x16xf32> to vector<128x16xbf16>
    %68 = vector.extract_strided_slice %15 {offsets = [0, 0], sizes = [16, 128], strides = [1, 1]} : vector<32x128xbf16> to vector<16x128xbf16>
    %69 = vector.extract_strided_slice %67 {offsets = [0, 0], sizes = [16, 16], strides = [1, 1]} : vector<128x16xbf16> to vector<16x16xbf16>
    %70 = vector.extract_strided_slice %68 {offsets = [0, 0], sizes = [16, 32], strides = [1, 1]} : vector<16x128xbf16> to vector<16x32xbf16>
    %cst_32 = arith.constant dense<0.000000e+00> : vector<16x32xf32>
    %71 = tpu.matmul %69, %70, %cst_32 {dimension_numbers = #tpu.dot_dimension_numbers<[1], [0], [0], [1], [0, 0, 1, 1], [], []>} : vector<16x16xbf16>, vector<16x32xbf16>, vector<16x32xf32> -> vector<16x32xf32>
    %c0_33 = arith.constant 0 : index
    %c0_34 = arith.constant 0 : index
    %72 = vector.load %arg25[%c0_33, %c0_34] : memref<32x128xf32, #tpu.memory_space<vmem>>, vector<16x32xf32>
    tpu.vector_store %arg25[%c0_33, %c0_34], %71 {strides = array<i32>} : memref<32x128xf32, #tpu.memory_space<vmem>>, vector<16x32xf32>,
    %73 = vector.extract_strided_slice %67 {offsets = [16, 0], sizes = [16, 16], strides = [1, 1]} : vector<128x16xbf16> to vector<16x16xbf16>
    %74 = vector.extract_strided_slice %68 {offsets = [0, 32], sizes = [16, 32], strides = [1, 1]} : vector<16x128xbf16> to vector<16x32xbf16>
    %cst_35 = arith.constant dense<0.000000e+00> : vector<16x32xf32>
    %75 = tpu.matmul %73, %74, %cst_35 {dimension_numbers = #tpu.dot_dimension_numbers<[1], [0], [0], [1], [0, 0, 1, 1], [], []>} : vector<16x16xbf16>, vector<16x32xbf16>, vector<16x32xf32> -> vector<16x32xf32>
    %c0_36 = arith.constant 0 : index
    %c32_37 = arith.constant 32 : index
    %76 = vector.load %arg25[%c0_36, %c32_37] : memref<32x128xf32, #tpu.memory_space<vmem>>, vector<16x32xf32>
    tpu.vector_store %arg25[%c0_36, %c32_37], %75 {strides = array<i32>} : memref<32x128xf32, #tpu.memory_space<vmem>>, vector<16x32xf32>,
    %77 = vector.extract_strided_slice %67 {offsets = [32, 0], sizes = [16, 16], strides = [1, 1]} : vector<128x16xbf16> to vector<16x16xbf16>
    %78 = vector.extract_strided_slice %68 {offsets = [0, 64], sizes = [16, 32], strides = [1, 1]} : vector<16x128xbf16> to vector<16x32xbf16>
    %cst_38 = arith.constant dense<0.000000e+00> : vector<16x32xf32>
    %79 = tpu.matmul %77, %78, %cst_38 {dimension_numbers = #tpu.dot_dimension_numbers<[1], [0], [0], [1], [0, 0, 1, 1], [], []>} : vector<16x16xbf16>, vector<16x32xbf16>, vector<16x32xf32> -> vector<16x32xf32>
    %c0_39 = arith.constant 0 : index
    %c64_40 = arith.constant 64 : index
    %80 = vector.load %arg25[%c0_39, %c64_40] : memref<32x128xf32, #tpu.memory_space<vmem>>, vector<16x32xf32>
    tpu.vector_store %arg25[%c0_39, %c64_40], %79 {strides = array<i32>} : memref<32x128xf32, #tpu.memory_space<vmem>>, vector<16x32xf32>,
    %81 = vector.extract_strided_slice %67 {offsets = [48, 0], sizes = [16, 16], strides = [1, 1]} : vector<128x16xbf16> to vector<16x16xbf16>
    %82 = vector.extract_strided_slice %68 {offsets = [0, 96], sizes = [16, 32], strides = [1, 1]} : vector<16x128xbf16> to vector<16x32xbf16>
    %cst_41 = arith.constant dense<0.000000e+00> : vector<16x32xf32>
    %83 = tpu.matmul %81, %82, %cst_41 {dimension_numbers = #tpu.dot_dimension_numbers<[1], [0], [0], [1], [0, 0, 1, 1], [], []>} : vector<16x16xbf16>, vector<16x32xbf16>, vector<16x32xf32> -> vector<16x32xf32>
    %c0_42 = arith.constant 0 : index
    %c96_43 = arith.constant 96 : index
    %84 = vector.load %arg25[%c0_42, %c96_43] : memref<32x128xf32, #tpu.memory_space<vmem>>, vector<16x32xf32>
    tpu.vector_store %arg25[%c0_42, %c96_43], %83 {strides = array<i32>} : memref<32x128xf32, #tpu.memory_space<vmem>>, vector<16x32xf32>,
    %85 = vector.extract_strided_slice %15 {offsets = [16, 0], sizes = [16, 128], strides = [1, 1]} : vector<32x128xbf16> to vector<16x128xbf16>
    %86 = vector.extract_strided_slice %67 {offsets = [64, 0], sizes = [16, 16], strides = [1, 1]} : vector<128x16xbf16> to vector<16x16xbf16>
    %87 = vector.extract_strided_slice %85 {offsets = [0, 0], sizes = [16, 32], strides = [1, 1]} : vector<16x128xbf16> to vector<16x32xbf16>
    %cst_44 = arith.constant dense<0.000000e+00> : vector<16x32xf32>
    %88 = tpu.matmul %86, %87, %cst_44 {dimension_numbers = #tpu.dot_dimension_numbers<[1], [0], [0], [1], [0, 0, 1, 1], [], []>} : vector<16x16xbf16>, vector<16x32xbf16>, vector<16x32xf32> -> vector<16x32xf32>
    %c16_45 = arith.constant 16 : index
    %c0_46 = arith.constant 0 : index
    %89 = vector.load %arg25[%c16_45, %c0_46] : memref<32x128xf32, #tpu.memory_space<vmem>>, vector<16x32xf32>
    tpu.vector_store %arg25[%c16_45, %c0_46], %88 {strides = array<i32>} : memref<32x128xf32, #tpu.memory_space<vmem>>, vector<16x32xf32>,
    %90 = vector.extract_strided_slice %67 {offsets = [80, 0], sizes = [16, 16], strides = [1, 1]} : vector<128x16xbf16> to vector<16x16xbf16>
    %91 = vector.extract_strided_slice %85 {offsets = [0, 32], sizes = [16, 32], strides = [1, 1]} : vector<16x128xbf16> to vector<16x32xbf16>
    %cst_47 = arith.constant dense<0.000000e+00> : vector<16x32xf32>
    %92 = tpu.matmul %90, %91, %cst_47 {dimension_numbers = #tpu.dot_dimension_numbers<[1], [0], [0], [1], [0, 0, 1, 1], [], []>} : vector<16x16xbf16>, vector<16x32xbf16>, vector<16x32xf32> -> vector<16x32xf32>
    %c16_48 = arith.constant 16 : index
    %c32_49 = arith.constant 32 : index
    %93 = vector.load %arg25[%c16_48, %c32_49] : memref<32x128xf32, #tpu.memory_space<vmem>>, vector<16x32xf32>
    tpu.vector_store %arg25[%c16_48, %c32_49], %92 {strides = array<i32>} : memref<32x128xf32, #tpu.memory_space<vmem>>, vector<16x32xf32>,
    %94 = vector.extract_strided_slice %67 {offsets = [96, 0], sizes = [16, 16], strides = [1, 1]} : vector<128x16xbf16> to vector<16x16xbf16>
    %95 = vector.extract_strided_slice %85 {offsets = [0, 64], sizes = [16, 32], strides = [1, 1]} : vector<16x128xbf16> to vector<16x32xbf16>
    %cst_50 = arith.constant dense<0.000000e+00> : vector<16x32xf32>
    %96 = tpu.matmul %94, %95, %cst_50 {dimension_numbers = #tpu.dot_dimension_numbers<[1], [0], [0], [1], [0, 0, 1, 1], [], []>} : vector<16x16xbf16>, vector<16x32xbf16>, vector<16x32xf32> -> vector<16x32xf32>
    %c16_51 = arith.constant 16 : index
    %c64_52 = arith.constant 64 : index
    %97 = vector.load %arg25[%c16_51, %c64_52] : memref<32x128xf32, #tpu.memory_space<vmem>>, vector<16x32xf32>
    tpu.vector_store %arg25[%c16_51, %c64_52], %96 {strides = array<i32>} : memref<32x128xf32, #tpu.memory_space<vmem>>, vector<16x32xf32>,
    %98 = vector.extract_strided_slice %67 {offsets = [112, 0], sizes = [16, 16], strides = [1, 1]} : vector<128x16xbf16> to vector<16x16xbf16>
    %99 = vector.extract_strided_slice %85 {offsets = [0, 96], sizes = [16, 32], strides = [1, 1]} : vector<16x128xbf16> to vector<16x32xbf16>
    %cst_53 = arith.constant dense<0.000000e+00> : vector<16x32xf32>
    %100 = tpu.matmul %98, %99, %cst_53 {dimension_numbers = #tpu.dot_dimension_numbers<[1], [0], [0], [1], [0, 0, 1, 1], [], []>} : vector<16x16xbf16>, vector<16x32xbf16>, vector<16x32xf32> -> vector<16x32xf32>
    %c16_54 = arith.constant 16 : index
    %c96_55 = arith.constant 96 : index
    %101 = vector.load %arg25[%c16_54, %c96_55] : memref<32x128xf32, #tpu.memory_space<vmem>>, vector<16x32xf32>
    tpu.vector_store %arg25[%c16_54, %c96_55], %100 {strides = array<i32>} : memref<32x128xf32, #tpu.memory_space<vmem>>, vector<16x32xf32>,
    %c0_56 = arith.constant 0 : index
    %c0_57 = arith.constant 0 : index
    %102 = vector.load %arg25[%c0_56, %c0_57] : memref<32x128xf32, #tpu.memory_space<vmem>>, vector<32x128xf32>
    %103 = arith.truncf %102 : vector<32x128xf32> to vector<32x128xbf16>
    %c0_58 = arith.constant 0 : index
    %c0_59 = arith.constant 0 : index
    %c0_60 = arith.constant 0 : index
    %104 = vector.load %arg7[%c0_58, %c0_59, %c0_60] : memref<1x128x128xbf16, #tpu.memory_space<vmem>>, vector<1x128x128xbf16>
    %105 = vector.shape_cast %104 : vector<1x128x128xbf16> to vector<128x128xbf16>
    %cst_61 = arith.constant dense<0.000000e+00> : vector<32x128xf32>
    %106 = tpu.matmul %103, %105, %cst_61 {dimension_numbers = #tpu.dot_dimension_numbers<[1], [0], [0], [1], [0, 0, 1, 1], [], []>} : vector<32x128xbf16>, vector<128x128xbf16>, vector<32x128xf32> -> vector<32x128xf32>
    %c0_62 = arith.constant 0 : index
    %c0_63 = arith.constant 0 : index
    %c0_64 = arith.constant 0 : index
    %107 = vector.load %arg8[%c0_62, %c0_63, %c0_64] : memref<1x1x128xf32, #tpu.memory_space<vmem>>, vector<1x1x128xf32>
    %108 = vector.shape_cast %107 : vector<1x1x128xf32> to vector<1x128xf32>
    %109 = vector.broadcast %108 : vector<1x128xf32> to vector<32x128xf32>
    %110 = arith.addf %106, %109 : vector<32x128xf32>
    %111 = arith.addf %3, %110 : vector<32x128xf32>
    %c0_65 = arith.constant 0 : index
    %c0_66 = arith.constant 0 : index
    %c0_67 = arith.constant 0 : index
    %112 = vector.load %arg9[%c0_65, %c0_66, %c0_67] : memref<1x1x128xf32, #tpu.memory_space<vmem>>, vector<1x1x128xf32>
    %113 = vector.shape_cast %112 : vector<1x1x128xf32> to vector<1x128xf32>
    %c0_68 = arith.constant 0 : index
    %c0_69 = arith.constant 0 : index
    %c0_70 = arith.constant 0 : index
    %114 = vector.load %arg10[%c0_68, %c0_69, %c0_70] : memref<1x1x128xf32, #tpu.memory_space<vmem>>, vector<1x1x128xf32>
    %115 = vector.shape_cast %114 : vector<1x1x128xf32> to vector<1x128xf32>
    %cst_71 = arith.constant dense<0.000000e+00> : vector<32xf32>
    %116 = vector.multi_reduction <add>, %111, %cst_71 [1] : vector<32x128xf32> to vector<32xf32>
    %117 = vector.shape_cast %116 : vector<32xf32> to vector<32x1xf32>
    %cst_72 = arith.constant 1.280000e+02 : f32
    %118 = vector.broadcast %cst_72 : f32 to vector<32x1xf32>
    %119 = arith.divf %117, %118 : vector<32x1xf32>
    %120 = vector.broadcast %119 : vector<32x1xf32> to vector<32x128xf32>
    %121 = arith.subf %111, %120 : vector<32x128xf32>
    %122 = arith.mulf %121, %121 : vector<32x128xf32>
    %cst_73 = arith.constant dense<0.000000e+00> : vector<32xf32>
    %123 = vector.multi_reduction <add>, %122, %cst_73 [1] : vector<32x128xf32> to vector<32xf32>
    %124 = vector.shape_cast %123 : vector<32xf32> to vector<32x1xf32>
    %cst_74 = arith.constant 1.280000e+02 : f32
    %125 = vector.broadcast %cst_74 : f32 to vector<32x1xf32>
    %126 = arith.divf %124, %125 : vector<32x1xf32>
    %cst_75 = arith.constant 9.99999996E-13 : f32
    %127 = vector.broadcast %cst_75 : f32 to vector<32x1xf32>
    %128 = arith.addf %126, %127 : vector<32x1xf32>
    %129 = math.rsqrt %128 : vector<32x1xf32>
    %130 = vector.broadcast %129 : vector<32x1xf32> to vector<32x128xf32>
    %131 = arith.mulf %121, %130 : vector<32x128xf32>
    %132 = vector.broadcast %113 : vector<1x128xf32> to vector<32x128xf32>
    %133 = arith.mulf %131, %132 : vector<32x128xf32>
    %134 = vector.broadcast %115 : vector<1x128xf32> to vector<32x128xf32>
    %135 = arith.addf %133, %134 : vector<32x128xf32>
    %136 = arith.truncf %135 : vector<32x128xf32> to vector<32x128xbf16>
    %c0_76 = arith.constant 0 : index
    %c0_77 = arith.constant 0 : index
    %c0_78 = arith.constant 0 : index
    %137 = vector.load %arg11[%c0_76, %c0_77, %c0_78] : memref<1x128x256xbf16, #tpu.memory_space<vmem>>, vector<1x128x256xbf16>
    %138 = vector.shape_cast %137 : vector<1x128x256xbf16> to vector<128x256xbf16>
    %cst_79 = arith.constant dense<0.000000e+00> : vector<32x256xf32>
    %139 = tpu.matmul %136, %138, %cst_79 {dimension_numbers = #tpu.dot_dimension_numbers<[1], [0], [0], [1], [0, 0, 1, 1], [], []>} : vector<32x128xbf16>, vector<128x256xbf16>, vector<32x256xf32> -> vector<32x256xf32>
    %c0_80 = arith.constant 0 : index
    %c0_81 = arith.constant 0 : index
    %c0_82 = arith.constant 0 : index
    %140 = vector.load %arg12[%c0_80, %c0_81, %c0_82] : memref<1x1x256xf32, #tpu.memory_space<vmem>>, vector<1x1x256xf32>
    %141 = vector.shape_cast %140 : vector<1x1x256xf32> to vector<1x256xf32>
    %142 = vector.broadcast %141 : vector<1x256xf32> to vector<32x256xf32>
    %143 = arith.addf %139, %142 : vector<32x256xf32>
    %cst_83 = arith.constant 5.000000e-01 : f32
    %144 = vector.broadcast %cst_83 : f32 to vector<32x256xf32>
    %145 = arith.mulf %144, %143 : vector<32x256xf32>
    %cst_84 = arith.constant 4.471500e-02 : f32
    %146 = vector.broadcast %cst_84 : f32 to vector<32x256xf32>
    %147 = arith.mulf %146, %143 : vector<32x256xf32>
    %148 = arith.mulf %147, %143 : vector<32x256xf32>
    %149 = arith.mulf %148, %143 : vector<32x256xf32>
    %150 = arith.addf %143, %149 : vector<32x256xf32>
    %cst_85 = arith.constant 0.797884583 : f32
    %151 = vector.broadcast %cst_85 : f32 to vector<32x256xf32>
    %152 = arith.mulf %151, %150 : vector<32x256xf32>
    %153 = math.tanh %152 : vector<32x256xf32>
    %cst_86 = arith.constant 1.000000e+00 : f32
    %154 = vector.broadcast %cst_86 : f32 to vector<32x256xf32>
    %155 = arith.addf %154, %153 : vector<32x256xf32>
    %156 = arith.mulf %145, %155 : vector<32x256xf32>
    %157 = arith.truncf %156 : vector<32x256xf32> to vector<32x256xbf16>
    %c0_87 = arith.constant 0 : index
    %c0_88 = arith.constant 0 : index
    %c0_89 = arith.constant 0 : index
    %158 = vector.load %arg13[%c0_87, %c0_88, %c0_89] : memref<1x256x128xbf16, #tpu.memory_space<vmem>>, vector<1x256x128xbf16>
    %159 = vector.shape_cast %158 : vector<1x256x128xbf16> to vector<256x128xbf16>
    %cst_90 = arith.constant dense<0.000000e+00> : vector<32x128xf32>
    %160 = tpu.matmul %157, %159, %cst_90 {dimension_numbers = #tpu.dot_dimension_numbers<[1], [0], [0], [1], [0, 0, 1, 1], [], []>} : vector<32x256xbf16>, vector<256x128xbf16>, vector<32x128xf32> -> vector<32x128xf32>
    %c0_91 = arith.constant 0 : index
    %c0_92 = arith.constant 0 : index
    %c0_93 = arith.constant 0 : index
    %161 = vector.load %arg14[%c0_91, %c0_92, %c0_93] : memref<1x1x128xf32, #tpu.memory_space<vmem>>, vector<1x1x128xf32>
    %162 = vector.shape_cast %161 : vector<1x1x128xf32> to vector<1x128xf32>
    %163 = vector.broadcast %162 : vector<1x128xf32> to vector<32x128xf32>
    %164 = arith.addf %160, %163 : vector<32x128xf32>
    %165 = arith.addf %135, %164 : vector<32x128xf32>
    %c0_94 = arith.constant 0 : index
    %c0_95 = arith.constant 0 : index
    %c0_96 = arith.constant 0 : index
    %166 = vector.load %arg15[%c0_94, %c0_95, %c0_96] : memref<1x1x128xf32, #tpu.memory_space<vmem>>, vector<1x1x128xf32>
    %167 = vector.shape_cast %166 : vector<1x1x128xf32> to vector<1x128xf32>
    %c0_97 = arith.constant 0 : index
    %c0_98 = arith.constant 0 : index
    %c0_99 = arith.constant 0 : index
    %168 = vector.load %arg16[%c0_97, %c0_98, %c0_99] : memref<1x1x128xf32, #tpu.memory_space<vmem>>, vector<1x1x128xf32>
    %169 = vector.shape_cast %168 : vector<1x1x128xf32> to vector<1x128xf32>
    %cst_100 = arith.constant dense<0.000000e+00> : vector<32xf32>
    %170 = vector.multi_reduction <add>, %165, %cst_100 [1] : vector<32x128xf32> to vector<32xf32>
    %171 = vector.shape_cast %170 : vector<32xf32> to vector<32x1xf32>
    %cst_101 = arith.constant 1.280000e+02 : f32
    %172 = vector.broadcast %cst_101 : f32 to vector<32x1xf32>
    %173 = arith.divf %171, %172 : vector<32x1xf32>
    %174 = vector.broadcast %173 : vector<32x1xf32> to vector<32x128xf32>
    %175 = arith.subf %165, %174 : vector<32x128xf32>
    %176 = arith.mulf %175, %175 : vector<32x128xf32>
    %cst_102 = arith.constant dense<0.000000e+00> : vector<32xf32>
    %177 = vector.multi_reduction <add>, %176, %cst_102 [1] : vector<32x128xf32> to vector<32xf32>
    %178 = vector.shape_cast %177 : vector<32xf32> to vector<32x1xf32>
    %cst_103 = arith.constant 1.280000e+02 : f32
    %179 = vector.broadcast %cst_103 : f32 to vector<32x1xf32>
    %180 = arith.divf %178, %179 : vector<32x1xf32>
    %cst_104 = arith.constant 9.99999996E-13 : f32
    %181 = vector.broadcast %cst_104 : f32 to vector<32x1xf32>
    %182 = arith.addf %180, %181 : vector<32x1xf32>
    %183 = math.rsqrt %182 : vector<32x1xf32>
    %184 = vector.broadcast %183 : vector<32x1xf32> to vector<32x128xf32>
    %185 = arith.mulf %175, %184 : vector<32x128xf32>
    %186 = vector.broadcast %167 : vector<1x128xf32> to vector<32x128xf32>
    %187 = arith.mulf %185, %186 : vector<32x128xf32>
    %188 = vector.broadcast %169 : vector<1x128xf32> to vector<32x128xf32>
    %189 = arith.addf %187, %188 : vector<32x128xf32>
    %c0_105 = arith.constant 0 : index
    %c0_106 = arith.constant 0 : index
    %190 = vector.load %arg22[%c0_105, %c0_106] : memref<32x128xf32, #tpu.memory_space<vmem>>, vector<32x128xf32>
    tpu.vector_store %arg22[%c0_105, %c0_106], %189 {strides = array<i32>} : memref<32x128xf32, #tpu.memory_space<vmem>>, vector<32x128xf32>,
    %c1_i32 = arith.constant 1 : i32
    %191 = arith.cmpi eq, %arg0, %c1_i32 : i32
    %192 = arith.extui %191 : i1 to i32
    %c0_i32_107 = arith.constant 0 : i32
    %193 = arith.cmpi ne, %192, %c0_i32_107 : i32
    scf.if %193 {
      %194 = vector.extract_strided_slice %189 {offsets = [0, 0], sizes = [1, 128], strides = [1, 1]} : vector<32x128xf32> to vector<1x128xf32>
      %195 = vector.extract_strided_slice %189 {offsets = [16, 0], sizes = [1, 128], strides = [1, 1]} : vector<32x128xf32> to vector<1x128xf32>
      %196 = tpu.concatenate %194, %195 in 0 : vector<1x128xf32>, vector<1x128xf32> -> vector<2x128xf32>
      %197 = arith.truncf %196 : vector<2x128xf32> to vector<2x128xbf16>
      %c0_108 = arith.constant 0 : index
      %c0_109 = arith.constant 0 : index
      %198 = vector.load %arg17[%c0_108, %c0_109] : memref<128x128xbf16, #tpu.memory_space<vmem>>, vector<128x128xbf16>
      %cst_110 = arith.constant dense<0.000000e+00> : vector<2x128xf32>
      %199 = tpu.matmul %197, %198, %cst_110 {dimension_numbers = #tpu.dot_dimension_numbers<[1], [0], [0], [1], [0, 0, 1, 1], [], []>} : vector<2x128xbf16>, vector<128x128xbf16>, vector<2x128xf32> -> vector<2x128xf32>
      %c0_111 = arith.constant 0 : index
      %c0_112 = arith.constant 0 : index
      %200 = vector.load %arg18[%c0_111, %c0_112] : memref<1x128xf32, #tpu.memory_space<vmem>>, vector<1x128xf32>
      %201 = vector.broadcast %200 : vector<1x128xf32> to vector<2x128xf32>
      %202 = arith.addf %199, %201 : vector<2x128xf32>
      %203 = math.tanh %202 : vector<2x128xf32>
      %204 = arith.truncf %203 : vector<2x128xf32> to vector<2x128xbf16>
      %c0_113 = arith.constant 0 : index
      %c0_114 = arith.constant 0 : index
      %205 = vector.load %arg19[%c0_113, %c0_114] : memref<128x32xbf16, #tpu.memory_space<vmem>>, vector<128x32xbf16>
      %cst_115 = arith.constant dense<0.000000e+00> : vector<2x32xf32>
      %206 = tpu.matmul %204, %205, %cst_115 {dimension_numbers = #tpu.dot_dimension_numbers<[1], [0], [0], [1], [0, 0, 1, 1], [], []>} : vector<2x128xbf16>, vector<128x32xbf16>, vector<2x32xf32> -> vector<2x32xf32>
      %c0_116 = arith.constant 0 : index
      %c0_117 = arith.constant 0 : index
      %207 = vector.load %arg20[%c0_116, %c0_117] : memref<1x32xf32, #tpu.memory_space<vmem>>, vector<1x32xf32>
      %208 = vector.broadcast %207 : vector<1x32xf32> to vector<2x32xf32>
      %209 = arith.addf %206, %208 : vector<2x32xf32>
      %c0_118 = arith.constant 0 : index
      %c0_119 = arith.constant 0 : index
      %210 = vector.load %arg21[%c0_118, %c0_119] : memref<2x32xf32, #tpu.memory_space<vmem>>, vector<2x32xf32>
      tpu.vector_store %arg21[%c0_118, %c0_119], %209 {strides = array<i32>} : memref<2x32xf32, #tpu.memory_space<vmem>>, vector<2x32xf32>,
    } else {
    }
    return
  }
  func.func @transform_0(%arg0: i32) -> (i32, i32) {
    %c0_i32 = arith.constant 0 : i32
    %c0_i32_0 = arith.constant 0 : i32
    %c0_i32_1 = arith.constant 0 : i32
    return %c0_i32, %c0_i32_0 : i32, i32
  }
  func.func @transform_1(%arg0: i32) -> (i32, i32) {
    %c0_i32 = arith.constant 0 : i32
    %c0_i32_0 = arith.constant 0 : i32
    %c0_i32_1 = arith.constant 0 : i32
    return %c0_i32, %c0_i32_0 : i32, i32
  }
  func.func @transform_2(%arg0: i32) -> (i32, i32) {
    %c0_i32 = arith.constant 0 : i32
    %c0_i32_0 = arith.constant 0 : i32
    %c0_i32_1 = arith.constant 0 : i32
    return %c0_i32, %c0_i32_0 : i32, i32
  }
  func.func @transform_3(%arg0: i32) -> (i32, i32) {
    %c0_i32 = arith.constant 0 : i32
    %c0_i32_0 = arith.constant 0 : i32
    %c0_i32_1 = arith.constant 0 : i32
    return %c0_i32, %c0_i32_0 : i32, i32
  }
  func.func @transform_4(%arg0: i32) -> (i32, i32, i32) {
    %c0_i32 = arith.constant 0 : i32
    %c0_i32_0 = arith.constant 0 : i32
    %c0_i32_1 = arith.constant 0 : i32
    return %arg0, %c0_i32, %c0_i32_0 : i32, i32, i32
  }
  func.func @transform_5(%arg0: i32) -> (i32, i32, i32) {
    %c0_i32 = arith.constant 0 : i32
    %c0_i32_0 = arith.constant 0 : i32
    %c0_i32_1 = arith.constant 0 : i32
    return %arg0, %c0_i32, %c0_i32_0 : i32, i32, i32
  }
  func.func @transform_6(%arg0: i32) -> (i32, i32, i32) {
    %c0_i32 = arith.constant 0 : i32
    %c0_i32_0 = arith.constant 0 : i32
    %c0_i32_1 = arith.constant 0 : i32
    return %arg0, %c0_i32, %c0_i32_0 : i32, i32, i32
  }
  func.func @transform_7(%arg0: i32) -> (i32, i32, i32) {
    %c0_i32 = arith.constant 0 : i32
    %c0_i32_0 = arith.constant 0 : i32
    %c0_i32_1 = arith.constant 0 : i32
    return %arg0, %c0_i32, %c0_i32_0 : i32, i32, i32
  }
  func.func @transform_8(%arg0: i32) -> (i32, i32, i32) {
    %c0_i32 = arith.constant 0 : i32
    %c0_i32_0 = arith.constant 0 : i32
    %c0_i32_1 = arith.constant 0 : i32
    return %arg0, %c0_i32, %c0_i32_0 : i32, i32, i32
  }
  func.func @transform_9(%arg0: i32) -> (i32, i32, i32) {
    %c0_i32 = arith.constant 0 : i32
    %c0_i32_0 = arith.constant 0 : i32
    %c0_i32_1 = arith.constant 0 : i32
    return %arg0, %c0_i32, %c0_i32_0 : i32, i32, i32
  }
  func.func @transform_10(%arg0: i32) -> (i32, i32, i32) {
    %c0_i32 = arith.constant 0 : i32
    %c0_i32_0 = arith.constant 0 : i32
    %c0_i32_1 = arith.constant 0 : i32
    return %arg0, %c0_i32, %c0_i32_0 : i32, i32, i32
  }
  func.func @transform_11(%arg0: i32) -> (i32, i32, i32) {
    %c0_i32 = arith.constant 0 : i32
    %c0_i32_0 = arith.constant 0 : i32
    %c0_i32_1 = arith.constant 0 : i32
    return %arg0, %c0_i32, %c0_i32_0 : i32, i32, i32
  }
  func.func @transform_12(%arg0: i32) -> (i32, i32, i32) {
    %c0_i32 = arith.constant 0 : i32
    %c0_i32_0 = arith.constant 0 : i32
    %c0_i32_1 = arith.constant 0 : i32
    return %arg0, %c0_i32, %c0_i32_0 : i32, i32, i32
  }
  func.func @transform_13(%arg0: i32) -> (i32, i32, i32) {
    %c0_i32 = arith.constant 0 : i32
    %c0_i32_0 = arith.constant 0 : i32
    %c0_i32_1 = arith.constant 0 : i32
    return %arg0, %c0_i32, %c0_i32_0 : i32, i32, i32
  }
  func.func @transform_14(%arg0: i32) -> (i32, i32, i32) {
    %c0_i32 = arith.constant 0 : i32
    %c0_i32_0 = arith.constant 0 : i32
    %c0_i32_1 = arith.constant 0 : i32
    return %arg0, %c0_i32, %c0_i32_0 : i32, i32, i32
  }
  func.func @transform_15(%arg0: i32) -> (i32, i32, i32) {
    %c0_i32 = arith.constant 0 : i32
    %c0_i32_0 = arith.constant 0 : i32
    %c0_i32_1 = arith.constant 0 : i32
    return %arg0, %c0_i32, %c0_i32_0 : i32, i32, i32
  }
  func.func @transform_16(%arg0: i32) -> (i32, i32) {
    %c0_i32 = arith.constant 0 : i32
    %c0_i32_0 = arith.constant 0 : i32
    %c0_i32_1 = arith.constant 0 : i32
    return %c0_i32, %c0_i32_0 : i32, i32
  }
  func.func @transform_17(%arg0: i32) -> (i32, i32) {
    %c0_i32 = arith.constant 0 : i32
    %c0_i32_0 = arith.constant 0 : i32
    %c0_i32_1 = arith.constant 0 : i32
    return %c0_i32, %c0_i32_0 : i32, i32
  }
  func.func @transform_18(%arg0: i32) -> (i32, i32) {
    %c0_i32 = arith.constant 0 : i32
    %c0_i32_0 = arith.constant 0 : i32
    %c0_i32_1 = arith.constant 0 : i32
    return %c0_i32, %c0_i32_0 : i32, i32
  }
  func.func @transform_19(%arg0: i32) -> (i32, i32) {
    %c0_i32 = arith.constant 0 : i32
    %c0_i32_0 = arith.constant 0 : i32
    %c0_i32_1 = arith.constant 0 : i32
    return %c0_i32, %c0_i32_0 : i32, i32
  }
  func.func @transform_20(%arg0: i32) -> (i32, i32) {
    %c0_i32 = arith.constant 0 : i32
    %c0_i32_0 = arith.constant 0 : i32
    %c0_i32_1 = arith.constant 0 : i32
    return %c0_i32, %c0_i32_0 : i32, i32
  }
}

</mosaic_0001>

<llo_original>
// kernel: text_encoder_forward.1
$region0: #{text_encoder_forward.1}
  #allocation0 [shape = 'u32[]', space=smem, size = 0x4, offset = 0x4, fixed_abs, tag = 'smem constant byte address 0x4 - core index']
  #allocation1 [shape = 'u32[72,128]{1,0:T(1,128)}', space=vmem, size = 0x9000, scoped, tag = 'internal scratch']
  #allocation2 [shape = 'f32[32,128]{1,0:T(8,128)}', space=vmem, size = 0x4000, scoped, tag = 'scratch operand']
  #allocation3 [shape = 'f32[128,16]{1,0:T(8,128)}', space=vmem, size = 0x10000, scoped, tag = 'scratch operand']
  #allocation4 [shape = 'f32[128,16]{1,0:T(8,128)}', space=vmem, size = 0x10000, scoped, tag = 'scratch operand']
  #allocation5 [shape = 'f32[32,128]{1,0:T(8,128)}', space=vmem, size = 0x4000, scoped, tag = 'scratch operand']
  %s0 = inlined_call_operand.vmem [shape: f32[32,128], index: 0, kind: input, shape index: {}]
  %s1 = inlined_call_operand.vmem [shape: f32[2,16], index: 1, kind: input, shape index: {}]
  %s2 = inlined_call_operand.vmem [shape: f32[1,128], index: 2, kind: input, shape index: {}]
  %s3 = inlined_call_operand.vmem [shape: f32[1,128], index: 3, kind: input, shape index: {}]
  %s4 = inlined_call_operand.vmem [shape: bf16[2,128,384], index: 4, kind: input, shape index: {}]
  %s5 = inlined_call_operand.vmem [shape: f32[2,1,384], index: 5, kind: input, shape index: {}]
  %s6 = inlined_call_operand.vmem [shape: bf16[2,128,128], index: 6, kind: input, shape index: {}]
  %s7 = inlined_call_operand.vmem [shape: f32[2,1,128], index: 7, kind: input, shape index: {}]
  %s8 = inlined_call_operand.vmem [shape: f32[2,1,128], index: 8, kind: input, shape index: {}]
  %s9 = inlined_call_operand.vmem [shape: f32[2,1,128], index: 9, kind: input, shape index: {}]
  %s10 = inlined_call_operand.hbm [shape: bf16[2,128,256], index: 10, kind: input, shape index: {}]
  %s11 = inlined_call_operand.vmem [shape: f32[2,1,256], index: 11, kind: input, shape index: {}]
  %s12 = inlined_call_operand.hbm [shape: bf16[2,256,128], index: 12, kind: input, shape index: {}]
  %s13 = inlined_call_operand.vmem [shape: f32[2,1,128], index: 13, kind: input, shape index: {}]
  %s14 = inlined_call_operand.vmem [shape: f32[2,1,128], index: 14, kind: input, shape index: {}]
  %s15 = inlined_call_operand.vmem [shape: f32[2,1,128], index: 15, kind: input, shape index: {}]
  %s16 = inlined_call_operand.hbm [shape: bf16[128,128], index: 16, kind: input, shape index: {}]
  %s17 = inlined_call_operand.vmem [shape: f32[1,128], index: 17, kind: input, shape index: {}]
  %s18 = inlined_call_operand.vmem [shape: bf16[128,32], index: 18, kind: input, shape index: {}]
  %s19 = inlined_call_operand.vmem [shape: f32[1,32], index: 19, kind: input, shape index: {}]
  %s20 = inlined_call_operand.hbm [shape: f32[2,32], index: 20, kind: output, shape index: {}]
  %s21 = sld [smem:[#allocation0]]
  $region133: #{text_encoder_forward.1} parent=0
    _
  %s23 = ssub.s32 1, %s21
  %s24 = scalar_select 0, %s23, %s21
  $region1: #{text_encoder_forward.1} parent=0
    #allocation6 [shape = 'u8[131072]{0}', space=vmem, size = 0x20000, scoped, tag = 'input window, operand 10']
    #allocation7 [shape = 's32[2]{0}', space=sflag, size = 0x8, scoped, tag = 'scoped memory for text_encoder_forward.1']
    #allocation8 [shape = 's32[2]{0}', space=sflag, size = 0x8, scoped, tag = 'scoped memory for text_encoder_forward.1']
    #allocation9 [shape = 'u8[131072]{0}', space=vmem, size = 0x20000, scoped, tag = 'input window, operand 12']
    #allocation10 [shape = 's32[2]{0}', space=sflag, size = 0x8, scoped, tag = 'scoped memory for text_encoder_forward.1']
    #allocation11 [shape = 'u8[32768]{0}', space=vmem, size = 0x8000, scoped, tag = 'input window, operand 16, single buffered']
    #allocation12 [shape = 'u8[1024]{0}', space=vmem, size = 0x400, scoped, tag = 'output window, operand 0, single buffered']
    %25 = vsyncpa [#allocation7], 0
    %s26 = scalar_lea.sflag [#allocation7], 1
    %27 = vsyncpa %s26, 0
    %28 = vsyncpa [#allocation10], 0
    %s29 = scalar_lea.sflag [#allocation10], 1
    %30 = vsyncpa %s29, 0
    %31 = vsyncpa [#allocation8], 0
    loop: start=0, step=1, limit=4
    $region2: #{text_encoder_forward.1} parent=1 // loop_pre_header
      _
    $region3: #{text_encoder_forward.1} parent=1 // loop_header
      %s33 = sphi 0, %s37
      %p34 = scmp.ge.s32.totalorder %s33, 4
      %s41 = sphi 0, %s41
      %s43 = sphi 0, %s41
      %s44 = sphi 0, %s43
      %s58 = sphi 0, %s44
      %s62 = sphi 0, %s62
      %s64 = sphi 0, %s62
      %s65 = sphi 0, %s64
      %s79 = sphi 0, %s65
      %s83 = sphi 0, %s83
      %s85 = sphi 0, %s83
      %s86 = sphi 0, %s85
      %s100 = sphi 0, %s86
      %s104 = sphi 0, %s104
      %s106 = sphi 0, %s104
      %s107 = sphi 0, %s106
      %s121 = sphi 0, %s107
      %s127 = sphi 0, %s129
      %s130 = sphi 0, %s127
      %s131 = sphi 0, %s130
      %s147 = sphi 0, %s131
      %s153 = sphi 0, %s155
      %s156 = sphi 0, %s153
      %s157 = sphi 0, %s156
      %s173 = sphi 0, %s157
      %s179 = sphi 0, %s181
      %s182 = sphi 0, %s179
      %s183 = sphi 0, %s182
      %s199 = sphi 0, %s183
      %s205 = sphi 0, %s207
      %s208 = sphi 0, %s205
      %s209 = sphi 0, %s208
      %s225 = sphi 0, %s209
      %s231 = sphi 0, %s233
      %s234 = sphi 0, %s231
      %s235 = sphi 0, %s234
      %s251 = sphi 0, %s235
      %s257 = sphi 0, %s259
      %s260 = sphi 0, %s257
      %s261 = sphi 0, %s260
      %s277 = sphi 0, %s261
      %s283 = sphi 0, %s285
      %s286 = sphi 0, %s283
      %s287 = sphi 0, %s286
      %s303 = sphi 0, %s287
      %s309 = sphi 0, %s311
      %s312 = sphi 0, %s309
      %s313 = sphi 0, %s312
      %s329 = sphi 0, %s313
      %s335 = sphi 0, %s337
      %s338 = sphi 0, %s335
      %s339 = sphi 0, %s338
      %s355 = sphi 0, %s339
      %s361 = sphi 0, %s363
      %s364 = sphi 0, %s361
      %s365 = sphi 0, %s364
      %s381 = sphi 0, %s365
      %s387 = sphi 0, %s389
      %s390 = sphi 0, %s387
      %s391 = sphi 0, %s390
      %s407 = sphi 0, %s391
      %s413 = sphi 0, %s415
      %s416 = sphi 0, %s413
      %s417 = sphi 0, %s416
      %s433 = sphi 0, %s417
      %s437 = sphi 0, %s437
      %s439 = sphi 0, %s437
      %s440 = sphi 0, %s439
      %s454 = sphi 0, %s440
      %s458 = sphi 0, %s458
      %s460 = sphi 0, %s458
      %s461 = sphi 0, %s460
      %s475 = sphi 0, %s461
      %s479 = sphi 0, %s479
      %s481 = sphi 0, %s479
      %s482 = sphi 0, %s481
      %s496 = sphi 0, %s482
      %s500 = sphi 0, %s500
      %s502 = sphi 0, %s500
      %s503 = sphi 0, %s502
      %s517 = sphi 0, %s503
      %s521 = sphi 0, %s521
      %s523 = sphi 0, %s521
      %s524 = sphi 0, %s523
      %s538 = sphi 0, %s524
    $region4: #{text_encoder_forward.1} parent=1 // loop_header_branch
      %36 = sbr.rel (%p34) target = $region8
    $region5: #{text_encoder_forward.1} parent=1 // loop_body
      %s38 = ssub.s32 %s33, 1
      %s39 = ssub.s32 %s33, 2
      %s40 = sadd.s32 %s33, 1
      %s42 = sadd.s32 %s41, 1
      %p45 = scmp.eq.s32.totalorder %s33, 1
      %p46 = scmp.ne.s32.totalorder %s41, %s43
      %p47 = scmp.eq.s32.totalorder %s33, 0
      %p48 = por %p46, %p47
      %p49 = scmp.ne.s32.totalorder %s41, %s43
      %p50 = scmp.eq.s32.totalorder %s38, 1
      %p51 = por %p49, %p50
      %p52 = scmp.ne.s32.totalorder %s43, %s44
      %p53 = scmp.eq.s32.totalorder %s38, 0
      %p54 = por %p52, %p53
      %p55 = scmp.ne.s32.totalorder %s43, %s44
      %p56 = scmp.eq.s32.totalorder %s39, 1
      %p57 = por %p55, %p56
      %p59 = scmp.ne.s32.totalorder %s44, %s58
      %p60 = scmp.eq.s32.totalorder %s39, 0
      %p61 = por %p59, %p60
      %s63 = sadd.s32 %s62, 1
      %p66 = scmp.eq.s32.totalorder %s33, 1
      %p67 = scmp.ne.s32.totalorder %s62, %s64
      %p68 = scmp.eq.s32.totalorder %s33, 0
      %p69 = por %p67, %p68
      %p70 = scmp.ne.s32.totalorder %s62, %s64
      %p71 = scmp.eq.s32.totalorder %s38, 1
      %p72 = por %p70, %p71
      %p73 = scmp.ne.s32.totalorder %s64, %s65
      %p74 = scmp.eq.s32.totalorder %s38, 0
      %p75 = por %p73, %p74
      %p76 = scmp.ne.s32.totalorder %s64, %s65
      %p77 = scmp.eq.s32.totalorder %s39, 1
      %p78 = por %p76, %p77
      %p80 = scmp.ne.s32.totalorder %s65, %s79
      %p81 = scmp.eq.s32.totalorder %s39, 0
      %p82 = por %p80, %p81
      %s84 = sadd.s32 %s83, 1
      %p87 = scmp.eq.s32.totalorder %s33, 1
      %p88 = scmp.ne.s32.totalorder %s83, %s85
      %p89 = scmp.eq.s32.totalorder %s33, 0
      %p90 = por %p88, %p89
      %p91 = scmp.ne.s32.totalorder %s83, %s85
      %p92 = scmp.eq.s32.totalorder %s38, 1
      %p93 = por %p91, %p92
      %p94 = scmp.ne.s32.totalorder %s85, %s86
      %p95 = scmp.eq.s32.totalorder %s38, 0
      %p96 = por %p94, %p95
      %p97 = scmp.ne.s32.totalorder %s85, %s86
      %p98 = scmp.eq.s32.totalorder %s39, 1
      %p99 = por %p97, %p98
      %p101 = scmp.ne.s32.totalorder %s86, %s100
      %p102 = scmp.eq.s32.totalorder %s39, 0
      %p103 = por %p101, %p102
      %s105 = sadd.s32 %s104, 1
      %p108 = scmp.eq.s32.totalorder %s33, 1
      %p109 = scmp.ne.s32.totalorder %s104, %s106
      %p110 = scmp.eq.s32.totalorder %s33, 0
      %p111 = por %p109, %p110
      %p112 = scmp.ne.s32.totalorder %s104, %s106
      %p113 = scmp.eq.s32.totalorder %s38, 1
      %p114 = por %p112, %p113
      %p115 = scmp.ne.s32.totalorder %s106, %s107
      %p116 = scmp.eq.s32.totalorder %s38, 0
      %p117 = por %p115, %p116
      %p118 = scmp.ne.s32.totalorder %s106, %s107
      %p119 = scmp.eq.s32.totalorder %s39, 1
      %p120 = por %p118, %p119
      %p122 = scmp.ne.s32.totalorder %s107, %s121
      %p123 = scmp.eq.s32.totalorder %s39, 0
      %p124 = por %p122, %p123
      %s125 = ssub.s32 %s33, %s40
      %p126 = scmp.eq.s32.totalorder %s125, 0
      %s128 = sadd.s32 %s127, 1
      %s129 = scalar_select %p126, %s127, %s128
      %p132 = pneg %p126
      %p133 = scmp.eq.s32.totalorder %s33, 1
      %p134 = por %p132, %p133
      %p135 = scmp.ne.s32.totalorder %s127, %s130
      %p136 = scmp.eq.s32.totalorder %s33, 0
      %p137 = por %p135, %p136
      %p138 = scmp.ne.s32.totalorder %s127, %s130
      %p139 = scmp.eq.s32.totalorder %s38, 1
      %p140 = por %p138, %p139
      %p141 = scmp.ne.s32.totalorder %s130, %s131
      %p142 = scmp.eq.s32.totalorder %s38, 0
      %p143 = por %p141, %p142
      %p144 = scmp.ne.s32.totalorder %s130, %s131
      %p145 = scmp.eq.s32.totalorder %s39, 1
      %p146 = por %p144, %p145
      %p148 = scmp.ne.s32.totalorder %s131, %s147
      %p149 = scmp.eq.s32.totalorder %s39, 0
      %p150 = por %p148, %p149
      %s151 = ssub.s32 %s33, %s40
      %p152 = scmp.eq.s32.totalorder %s151, 0
      %s154 = sadd.s32 %s153, 1
      %s155 = scalar_select %p152, %s153, %s154
      %p158 = pneg %p152
      %p159 = scmp.eq.s32.totalorder %s33, 1
      %p160 = por %p158, %p159
      %p161 = scmp.ne.s32.totalorder %s153, %s156
      %p162 = scmp.eq.s32.totalorder %s33, 0
      %p163 = por %p161, %p162
      %p164 = scmp.ne.s32.totalorder %s153, %s156
      %p165 = scmp.eq.s32.totalorder %s38, 1
      %p166 = por %p164, %p165
      %p167 = scmp.ne.s32.totalorder %s156, %s157
      %p168 = scmp.eq.s32.totalorder %s38, 0
      %p169 = por %p167, %p168
      %p170 = scmp.ne.s32.totalorder %s156, %s157
      %p171 = scmp.eq.s32.totalorder %s39, 1
      %p172 = por %p170, %p171
      %p174 = scmp.ne.s32.totalorder %s157, %s173
      %p175 = scmp.eq.s32.totalorder %s39, 0
      %p176 = por %p174, %p175
      %s177 = ssub.s32 %s33, %s40
      %p178 = scmp.eq.s32.totalorder %s177, 0
      %s180 = sadd.s32 %s179, 1
      %s181 = scalar_select %p178, %s179, %s180
      %p184 = pneg %p178
      %p185 = scmp.eq.s32.totalorder %s33, 1
      %p186 = por %p184, %p185
      %p187 = scmp.ne.s32.totalorder %s179, %s182
      %p188 = scmp.eq.s32.totalorder %s33, 0
      %p189 = por %p187, %p188
      %p190 = scmp.ne.s32.totalorder %s179, %s182
      %p191 = scmp.eq.s32.totalorder %s38, 1
      %p192 = por %p190, %p191
      %p193 = scmp.ne.s32.totalorder %s182, %s183
      %p194 = scmp.eq.s32.totalorder %s38, 0
      %p195 = por %p193, %p194
      %p196 = scmp.ne.s32.totalorder %s182, %s183
      %p197 = scmp.eq.s32.totalorder %s39, 1
      %p198 = por %p196, %p197
      %p200 = scmp.ne.s32.totalorder %s183, %s199
      %p201 = scmp.eq.s32.totalorder %s39, 0
      %p202 = por %p200, %p201
      %s203 = ssub.s32 %s33, %s40
      %p204 = scmp.eq.s32.totalorder %s203, 0
      %s206 = sadd.s32 %s205, 1
      %s207 = scalar_select %p204, %s205, %s206
      %p210 = pneg %p204
      %p211 = scmp.eq.s32.totalorder %s33, 1
      %p212 = por %p210, %p211
      %p213 = scmp.ne.s32.totalorder %s205, %s208
      %p214 = scmp.eq.s32.totalorder %s33, 0
      %p215 = por %p213, %p214
      %p216 = scmp.ne.s32.totalorder %s205, %s208
      %p217 = scmp.eq.s32.totalorder %s38, 1
      %p218 = por %p216, %p217
      %p219 = scmp.ne.s32.totalorder %s208, %s209
      %p220 = scmp.eq.s32.totalorder %s38, 0
      %p221 = por %p219, %p220
      %p222 = scmp.ne.s32.totalorder %s208, %s209
      %p223 = scmp.eq.s32.totalorder %s39, 1
      %p224 = por %p222, %p223
      %p226 = scmp.ne.s32.totalorder %s209, %s225
      %p227 = scmp.eq.s32.totalorder %s39, 0
      %p228 = por %p226, %p227
      %s229 = ssub.s32 %s33, %s40
      %p230 = scmp.eq.s32.totalorder %s229, 0
      %s232 = sadd.s32 %s231, 1
      %s233 = scalar_select %p230, %s231, %s232
      %p236 = pneg %p230
      %p237 = scmp.eq.s32.totalorder %s33, 1
      %p238 = por %p236, %p237
      %p239 = scmp.ne.s32.totalorder %s231, %s234
      %p240 = scmp.eq.s32.totalorder %s33, 0
      %p241 = por %p239, %p240
      %p242 = scmp.ne.s32.totalorder %s231, %s234
      %p243 = scmp.eq.s32.totalorder %s38, 1
      %p244 = por %p242, %p243
      %p245 = scmp.ne.s32.totalorder %s234, %s235
      %p246 = scmp.eq.s32.totalorder %s38, 0
      %p247 = por %p245, %p246
      %p248 = scmp.ne.s32.totalorder %s234, %s235
      %p249 = scmp.eq.s32.totalorder %s39, 1
      %p250 = por %p248, %p249
      %p252 = scmp.ne.s32.totalorder %s235, %s251
      %p253 = scmp.eq.s32.totalorder %s39, 0
      %p254 = por %p252, %p253
      %s255 = ssub.s32 %s33, %s40
      %p256 = scmp.eq.s32.totalorder %s255, 0
      %s258 = sadd.s32 %s257, 1
      %s259 = scalar_select %p256, %s257, %s258
      %p262 = pneg %p256
      %p263 = scmp.eq.s32.totalorder %s33, 1
      %p264 = por %p262, %p263
      %p265 = scmp.ne.s32.totalorder %s257, %s260
      %p266 = scmp.eq.s32.totalorder %s33, 0
      %p267 = por %p265, %p266
      %p268 = scmp.ne.s32.totalorder %s257, %s260
      %p269 = scmp.eq.s32.totalorder %s38, 1
      %p270 = por %p268, %p269
      %p271 = scmp.ne.s32.totalorder %s260, %s261
      %p272 = scmp.eq.s32.totalorder %s38, 0
      %p273 = por %p271, %p272
      %p274 = scmp.ne.s32.totalorder %s260, %s261
      %p275 = scmp.eq.s32.totalorder %s39, 1
      %p276 = por %p274, %p275
      %p278 = scmp.ne.s32.totalorder %s261, %s277
      %p279 = scmp.eq.s32.totalorder %s39, 0
      %p280 = por %p278, %p279
      %s281 = ssub.s32 %s33, %s40
      %p282 = scmp.eq.s32.totalorder %s281, 0
      %s284 = sadd.s32 %s283, 1
      %s285 = scalar_select %p282, %s283, %s284
      %p288 = pneg %p282
      %p289 = scmp.eq.s32.totalorder %s33, 1
      %p290 = por %p288, %p289
      %p291 = scmp.ne.s32.totalorder %s283, %s286
      %p292 = scmp.eq.s32.totalorder %s33, 0
      %p293 = por %p291, %p292
      %p294 = scmp.ne.s32.totalorder %s283, %s286
      %p295 = scmp.eq.s32.totalorder %s38, 1
      %p296 = por %p294, %p295
      %p297 = scmp.ne.s32.totalorder %s286, %s287
      %p298 = scmp.eq.s32.totalorder %s38, 0
      %p299 = por %p297, %p298
      %p300 = scmp.ne.s32.totalorder %s286, %s287
      %p301 = scmp.eq.s32.totalorder %s39, 1
      %p302 = por %p300, %p301
      %p304 = scmp.ne.s32.totalorder %s287, %s303
      %p305 = scmp.eq.s32.totalorder %s39, 0
      %p306 = por %p304, %p305
      %s307 = ssub.s32 %s33, %s40
      %p308 = scmp.eq.s32.totalorder %s307, 0
      %s310 = sadd.s32 %s309, 1
      %s311 = scalar_select %p308, %s309, %s310
      %p314 = pneg %p308
      %p315 = scmp.eq.s32.totalorder %s33, 1
      %p316 = por %p314, %p315
      %p317 = scmp.ne.s32.totalorder %s309, %s312
      %p318 = scmp.eq.s32.totalorder %s33, 0
      %p319 = por %p317, %p318
      %p320 = scmp.ne.s32.totalorder %s309, %s312
      %p321 = scmp.eq.s32.totalorder %s38, 1
      %p322 = por %p320, %p321
      %p323 = scmp.ne.s32.totalorder %s312, %s313
      %p324 = scmp.eq.s32.totalorder %s38, 0
      %p325 = por %p323, %p324
      %p326 = scmp.ne.s32.totalorder %s312, %s313
      %p327 = scmp.eq.s32.totalorder %s39, 1
      %p328 = por %p326, %p327
      %p330 = scmp.ne.s32.totalorder %s313, %s329
      %p331 = scmp.eq.s32.totalorder %s39, 0
      %p332 = por %p330, %p331
      %s333 = ssub.s32 %s33, %s40
      %p334 = scmp.eq.s32.totalorder %s333, 0
      %s336 = sadd.s32 %s335, 1
      %s337 = scalar_select %p334, %s335, %s336
      %p340 = pneg %p334
      %p341 = scmp.eq.s32.totalorder %s33, 1
      %p342 = por %p340, %p341
      %p343 = scmp.ne.s32.totalorder %s335, %s338
      %p344 = scmp.eq.s32.totalorder %s33, 0
      %p345 = por %p343, %p344
      %p346 = scmp.ne.s32.totalorder %s335, %s338
      %p347 = scmp.eq.s32.totalorder %s38, 1
      %p348 = por %p346, %p347
      %p349 = scmp.ne.s32.totalorder %s338, %s339
      %p350 = scmp.eq.s32.totalorder %s38, 0
      %p351 = por %p349, %p350
      %p352 = scmp.ne.s32.totalorder %s338, %s339
      %p353 = scmp.eq.s32.totalorder %s39, 1
      %p354 = por %p352, %p353
      %p356 = scmp.ne.s32.totalorder %s339, %s355
      %p357 = scmp.eq.s32.totalorder %s39, 0
      %p358 = por %p356, %p357
      %s359 = ssub.s32 %s33, %s40
      %p360 = scmp.eq.s32.totalorder %s359, 0
      %s362 = sadd.s32 %s361, 1
      %s363 = scalar_select %p360, %s361, %s362
      %p366 = pneg %p360
      %p367 = scmp.eq.s32.totalorder %s33, 1
      %p368 = por %p366, %p367
      %p369 = scmp.ne.s32.totalorder %s361, %s364
      %p370 = scmp.eq.s32.totalorder %s33, 0
      %p371 = por %p369, %p370
      %p372 = scmp.ne.s32.totalorder %s361, %s364
      %p373 = scmp.eq.s32.totalorder %s38, 1
      %p374 = por %p372, %p373
      %p375 = scmp.ne.s32.totalorder %s364, %s365
      %p376 = scmp.eq.s32.totalorder %s38, 0
      %p377 = por %p375, %p376
      %p378 = scmp.ne.s32.totalorder %s364, %s365
      %p379 = scmp.eq.s32.totalorder %s39, 1
      %p380 = por %p378, %p379
      %p382 = scmp.ne.s32.totalorder %s365, %s381
      %p383 = scmp.eq.s32.totalorder %s39, 0
      %p384 = por %p382, %p383
      %s385 = ssub.s32 %s33, %s40
      %p386 = scmp.eq.s32.totalorder %s385, 0
      %s388 = sadd.s32 %s387, 1
      %s389 = scalar_select %p386, %s387, %s388
      %p392 = pneg %p386
      %p393 = scmp.eq.s32.totalorder %s33, 1
      %p394 = por %p392, %p393
      %p395 = scmp.ne.s32.totalorder %s387, %s390
      %p396 = scmp.eq.s32.totalorder %s33, 0
      %p397 = por %p395, %p396
      %p398 = scmp.ne.s32.totalorder %s387, %s390
      %p399 = scmp.eq.s32.totalorder %s38, 1
      %p400 = por %p398, %p399
      %p401 = scmp.ne.s32.totalorder %s390, %s391
      %p402 = scmp.eq.s32.totalorder %s38, 0
      %p403 = por %p401, %p402
      %p404 = scmp.ne.s32.totalorder %s390, %s391
      %p405 = scmp.eq.s32.totalorder %s39, 1
      %p406 = por %p404, %p405
      %p408 = scmp.ne.s32.totalorder %s391, %s407
      %p409 = scmp.eq.s32.totalorder %s39, 0
      %p410 = por %p408, %p409
      %s411 = ssub.s32 %s33, %s40
      %p412 = scmp.eq.s32.totalorder %s411, 0
      %s414 = sadd.s32 %s413, 1
      %s415 = scalar_select %p412, %s413, %s414
      %p418 = pneg %p412
      %p419 = scmp.eq.s32.totalorder %s33, 1
      %p420 = por %p418, %p419
      %p421 = scmp.ne.s32.totalorder %s413, %s416
      %p422 = scmp.eq.s32.totalorder %s33, 0
      %p423 = por %p421, %p422
      %p424 = scmp.ne.s32.totalorder %s413, %s416
      %p425 = scmp.eq.s32.totalorder %s38, 1
      %p426 = por %p424, %p425
      %p427 = scmp.ne.s32.totalorder %s416, %s417
      %p428 = scmp.eq.s32.totalorder %s38, 0
      %p429 = por %p427, %p428
      %p430 = scmp.ne.s32.totalorder %s416, %s417
      %p431 = scmp.eq.s32.totalorder %s39, 1
      %p432 = por %p430, %p431
      %p434 = scmp.ne.s32.totalorder %s417, %s433
      %p435 = scmp.eq.s32.totalorder %s39, 0
      %p436 = por %p434, %p435
      %s438 = sadd.s32 %s437, 1
      %p441 = scmp.eq.s32.totalorder %s33, 1
      %p442 = scmp.ne.s32.totalorder %s437, %s439
      %p443 = scmp.eq.s32.totalorder %s33, 0
      %p444 = por %p442, %p443
      %p445 = scmp.ne.s32.totalorder %s437, %s439
      %p446 = scmp.eq.s32.totalorder %s38, 1
      %p447 = por %p445, %p446
      %p448 = scmp.ne.s32.totalorder %s439, %s440
      %p449 = scmp.eq.s32.totalorder %s38, 0
      %p450 = por %p448, %p449
      %p451 = scmp.ne.s32.totalorder %s439, %s440
      %p452 = scmp.eq.s32.totalorder %s39, 1
      %p453 = por %p451, %p452
      %p455 = scmp.ne.s32.totalorder %s440, %s454
      %p456 = scmp.eq.s32.totalorder %s39, 0
      %p457 = por %p455, %p456
      %s459 = sadd.s32 %s458, 1
      %p462 = scmp.eq.s32.totalorder %s33, 1
      %p463 = scmp.ne.s32.totalorder %s458, %s460
      %p464 = scmp.eq.s32.totalorder %s33, 0
      %p465 = por %p463, %p464
      %p466 = scmp.ne.s32.totalorder %s458, %s460
      %p467 = scmp.eq.s32.totalorder %s38, 1
      %p468 = por %p466, %p467
      %p469 = scmp.ne.s32.totalorder %s460, %s461
      %p470 = scmp.eq.s32.totalorder %s38, 0
      %p471 = por %p469, %p470
      %p472 = scmp.ne.s32.totalorder %s460, %s461
      %p473 = scmp.eq.s32.totalorder %s39, 1
      %p474 = por %p472, %p473
      %p476 = scmp.ne.s32.totalorder %s461, %s475
      %p477 = scmp.eq.s32.totalorder %s39, 0
      %p478 = por %p476, %p477
      %s480 = sadd.s32 %s479, 1
      %p483 = scmp.eq.s32.totalorder %s33, 1
      %p484 = scmp.ne.s32.totalorder %s479, %s481
      %p485 = scmp.eq.s32.totalorder %s33, 0
      %p486 = por %p484, %p485
      %p487 = scmp.ne.s32.totalorder %s479, %s481
      %p488 = scmp.eq.s32.totalorder %s38, 1
      %p489 = por %p487, %p488
      %p490 = scmp.ne.s32.totalorder %s481, %s482
      %p491 = scmp.eq.s32.totalorder %s38, 0
      %p492 = por %p490, %p491
      %p493 = scmp.ne.s32.totalorder %s481, %s482
      %p494 = scmp.eq.s32.totalorder %s39, 1
      %p495 = por %p493, %p494
      %p497 = scmp.ne.s32.totalorder %s482, %s496
      %p498 = scmp.eq.s32.totalorder %s39, 0
      %p499 = por %p497, %p498
      %s501 = sadd.s32 %s500, 1
      %p504 = scmp.eq.s32.totalorder %s33, 1
      %p505 = scmp.ne.s32.totalorder %s500, %s502
      %p506 = scmp.eq.s32.totalorder %s33, 0
      %p507 = por %p505, %p506
      %p508 = scmp.ne.s32.totalorder %s500, %s502
      %p509 = scmp.eq.s32.totalorder %s38, 1
      %p510 = por %p508, %p509
      %p511 = scmp.ne.s32.totalorder %s502, %s503
      %p512 = scmp.eq.s32.totalorder %s38, 0
      %p513 = por %p511, %p512
      %p514 = scmp.ne.s32.totalorder %s502, %s503
      %p515 = scmp.eq.s32.totalorder %s39, 1
      %p516 = por %p514, %p515
      %p518 = scmp.ne.s32.totalorder %s503, %s517
      %p519 = scmp.eq.s32.totalorder %s39, 0
      %p520 = por %p518, %p519
      %s522 = sadd.s32 %s521, 1
      %p525 = scmp.eq.s32.totalorder %s33, 1
      %p526 = scmp.ne.s32.totalorder %s521, %s523
      %p527 = scmp.eq.s32.totalorder %s33, 0
      %p528 = por %p526, %p527
      %p529 = scmp.ne.s32.totalorder %s521, %s523
      %p530 = scmp.eq.s32.totalorder %s38, 1
      %p531 = por %p529, %p530
      %p532 = scmp.ne.s32.totalorder %s523, %s524
      %p533 = scmp.eq.s32.totalorder %s38, 0
      %p534 = por %p532, %p533
      %p535 = scmp.ne.s32.totalorder %s523, %s524
      %p536 = scmp.eq.s32.totalorder %s39, 1
      %p537 = por %p535, %p536
      %p539 = scmp.ne.s32.totalorder %s524, %s538
      %p540 = scmp.eq.s32.totalorder %s39, 0
      %p541 = por %p539, %p540
      %p542 = scmp.le.s32.totalorder 1, %s33
      %p543 = scmp.lt.s32.totalorder %s33, 3
      %p544 = pnand %p542, %p543
      %p545 = pneg %p544
      // Predicated region
      $region9: #{text_encoder_forward.1} parent=5 // pred_check
        _
      $region10: #{text_encoder_forward.1} parent=5 // pred_check_branch
        %547 = sbr.rel (%p544) target = $region12
      $region11: #{text_encoder_forward.1} parent=5 // pred_region
        %s548 = ssub.s32 %s33, 1
        // Predicated region
        $region13: #{text_encoder_forward.1} parent=11 // pred_check
          %p549 = pneg %p54
        $region14: #{text_encoder_forward.1} parent=11 // pred_check_branch
          %551 = sbr.rel (%p549) target = $region16
        $region15: #{text_encoder_forward.1} parent=11 // pred_region
          _
        $region16: #{text_encoder_forward.1} parent=11 // pred_fallthru
          _
        // Predicated region
        $region17: #{text_encoder_forward.1} parent=11 // pred_check
          %p552 = pneg %p75
        $region18: #{text_encoder_forward.1} parent=11 // pred_check_branch
          %554 = sbr.rel (%p552) target = $region20
        $region19: #{text_encoder_forward.1} parent=11 // pred_region
          _
        $region20: #{text_encoder_forward.1} parent=11 // pred_fallthru
          _
        // Predicated region
        $region21: #{text_encoder_forward.1} parent=11 // pred_check
          %p555 = pneg %p96
        $region22: #{text_encoder_forward.1} parent=11 // pred_check_branch
          %557 = sbr.rel (%p555) target = $region24
        $region23: #{text_encoder_forward.1} parent=11 // pred_region
          _
        $region24: #{text_encoder_forward.1} parent=11 // pred_fallthru
          _
        // Predicated region
        $region25: #{text_encoder_forward.1} parent=11 // pred_check
          %p558 = pneg %p117
        $region26: #{text_encoder_forward.1} parent=11 // pred_check_branch
          %560 = sbr.rel (%p558) target = $region28
        $region27: #{text_encoder_forward.1} parent=11 // pred_region
          _
        $region28: #{text_encoder_forward.1} parent=11 // pred_fallthru
          _
        // Predicated region
        $region29: #{text_encoder_forward.1} parent=11 // pred_check
          %p561 = pneg %p450
        $region30: #{text_encoder_forward.1} parent=11 // pred_check_branch
          %563 = sbr.rel (%p561) target = $region32
        $region31: #{text_encoder_forward.1} parent=11 // pred_region
          %565 = vsyncadd [#allocation10], 0
          %s566 = sshll.u32 %s16, 4
          %s567 = int_to_ptr.hbm [resolvable:$true] %s566
          %s568 = sshll.u32 [#allocation11], 4
          %s569 = int_to_ptr.vmem [resolvable:$true] %s568
          %574 = dma.hbm_to_vmem [thread:$0]  %s567, 1024, %s569, [#allocation10], 64, 64, 4
        $region32: #{text_encoder_forward.1} parent=11 // pred_fallthru
          _
        // Predicated region
        $region33: #{text_encoder_forward.1} parent=11 // pred_check
          %p575 = pneg %p471
        $region34: #{text_encoder_forward.1} parent=11 // pred_check_branch
          %577 = sbr.rel (%p575) target = $region36
        $region35: #{text_encoder_forward.1} parent=11 // pred_region
          _
        $region36: #{text_encoder_forward.1} parent=11 // pred_fallthru
          _
        // Predicated region
        $region37: #{text_encoder_forward.1} parent=11 // pred_check
          %p578 = pneg %p492
        $region38: #{text_encoder_forward.1} parent=11 // pred_check_branch
          %580 = sbr.rel (%p578) target = $region40
        $region39: #{text_encoder_forward.1} parent=11 // pred_region
          _
        $region40: #{text_encoder_forward.1} parent=11 // pred_fallthru
          _
        // Predicated region
        $region41: #{text_encoder_forward.1} parent=11 // pred_check
          %p581 = pneg %p513
        $region42: #{text_encoder_forward.1} parent=11 // pred_check_branch
          %583 = sbr.rel (%p581) target = $region44
        $region43: #{text_encoder_forward.1} parent=11 // pred_region
          _
        $region44: #{text_encoder_forward.1} parent=11 // pred_fallthru
          _
      $region12: #{text_encoder_forward.1} parent=5 // pred_fallthru
        _
      %p584 = scmp.lt.s32.totalorder %s33, 2
      // Predicated region
      $region45: #{text_encoder_forward.1} parent=5 // pred_check
        %p585 = pneg %p584
      $region46: #{text_encoder_forward.1} parent=5 // pred_check_branch
        %587 = sbr.rel (%p585) target = $region48
      $region47: #{text_encoder_forward.1} parent=5 // pred_region
        // Predicated region
        $region49: #{text_encoder_forward.1} parent=47 // pred_check
          %p588 = pneg %p137
        $region50: #{text_encoder_forward.1} parent=47 // pred_check_branch
          %590 = sbr.rel (%p588) target = $region52
        $region51: #{text_encoder_forward.1} parent=47 // pred_region
          %p591 = scmp.lt.s32.totalorder %s33, 1
          %s592 = scalar_select %p591, %s33, 1
          %s593 = smul.addr %s592, 48
          %s594 = smul.addr %s593, 4
          %s595 = scalar_lea.vmem %s4, %s594
        $region52: #{text_encoder_forward.1} parent=47 // pred_fallthru
          _
        // Predicated region
        $region53: #{text_encoder_forward.1} parent=47 // pred_check
          %p596 = pneg %p163
        $region54: #{text_encoder_forward.1} parent=47 // pred_check_branch
          %598 = sbr.rel (%p596) target = $region56
        $region55: #{text_encoder_forward.1} parent=47 // pred_region
          %p599 = scmp.lt.s32.totalorder %s33, 1
          %s600 = scalar_select %p599, %s33, 1
          %s601 = smul.addr %s600, 3
          %s602 = scalar_lea.vmem %s5, %s601
        $region56: #{text_encoder_forward.1} parent=47 // pred_fallthru
          _
        // Predicated region
        $region57: #{text_encoder_forward.1} parent=47 // pred_check
          %p603 = pneg %p189
        $region58: #{text_encoder_forward.1} parent=47 // pred_check_branch
          %605 = sbr.rel (%p603) target = $region60
        $region59: #{text_encoder_forward.1} parent=47 // pred_region
          %p606 = scmp.lt.s32.totalorder %s33, 1
          %s607 = scalar_select %p606, %s33, 1
          %s608 = smul.addr %s607, 16
          %s609 = smul.addr %s608, 4
          %s610 = scalar_lea.vmem %s6, %s609
        $region60: #{text_encoder_forward.1} parent=47 // pred_fallthru
          _
        // Predicated region
        $region61: #{text_encoder_forward.1} parent=47 // pred_check
          %p611 = pneg %p215
        $region62: #{text_encoder_forward.1} parent=47 // pred_check_branch
          %613 = sbr.rel (%p611) target = $region64
        $region63: #{text_encoder_forward.1} parent=47 // pred_region
          %p614 = scmp.lt.s32.totalorder %s33, 1
          %s615 = scalar_select %p614, %s33, 1
          %s616 = scalar_lea.vmem %s7, %s615
        $region64: #{text_encoder_forward.1} parent=47 // pred_fallthru
          _
        // Predicated region
        $region65: #{text_encoder_forward.1} parent=47 // pred_check
          %p617 = pneg %p241
        $region66: #{text_encoder_forward.1} parent=47 // pred_check_branch
          %619 = sbr.rel (%p617) target = $region68
        $region67: #{text_encoder_forward.1} parent=47 // pred_region
          %p620 = scmp.lt.s32.totalorder %s33, 1
          %s621 = scalar_select %p620, %s33, 1
          %s622 = scalar_lea.vmem %s8, %s621
        $region68: #{text_encoder_forward.1} parent=47 // pred_fallthru
          _
        // Predicated region
        $region69: #{text_encoder_forward.1} parent=47 // pred_check
          %p623 = pneg %p267
        $region70: #{text_encoder_forward.1} parent=47 // pred_check_branch
          %625 = sbr.rel (%p623) target = $region72
        $region71: #{text_encoder_forward.1} parent=47 // pred_region
          %p626 = scmp.lt.s32.totalorder %s33, 1
          %s627 = scalar_select %p626, %s33, 1
          %s628 = scalar_lea.vmem %s9, %s627
        $region72: #{text_encoder_forward.1} parent=47 // pred_fallthru
          _
        // Predicated region
        $region73: #{text_encoder_forward.1} parent=47 // pred_check
          %p629 = pneg %p293
        $region74: #{text_encoder_forward.1} parent=47 // pred_check_branch
          %631 = sbr.rel (%p629) target = $region76
        $region75: #{text_encoder_forward.1} parent=47 // pred_region
          %s632 = sand.u32 %s283, 1
          %s633 = scalar_lea.sflag [#allocation7], %s632
          %s634 = sand.u32 %s283, 1
          %s635 = smul.addr %s634, 128
          %s636 = scalar_lea.vmem [#allocation6], %s635
          %638 = vsyncadd %s633, 0
          %s639 = smul.addr %s33, 32
          %s640 = smul.addr %s639, 4
          %s641 = scalar_lea.hbm %s10, %s640
          %s642 = sshll.u32 %s641, 4
          %s643 = int_to_ptr.hbm [resolvable:$true] %s642
          %s644 = sshll.u32 %s636, 4
          %s645 = int_to_ptr.vmem [resolvable:$true] %s644
          %650 = dma.hbm_to_vmem [thread:$0]  %s643, 2048, %s645, %s633, 128, 128, 8
        $region76: #{text_encoder_forward.1} parent=47 // pred_fallthru
          _
        // Predicated region
        $region77: #{text_encoder_forward.1} parent=47 // pred_check
          %p651 = pneg %p319
        $region78: #{text_encoder_forward.1} parent=47 // pred_check_branch
          %653 = sbr.rel (%p651) target = $region80
        $region79: #{text_encoder_forward.1} parent=47 // pred_region
          %p654 = scmp.lt.s32.totalorder %s33, 1
          %s655 = scalar_select %p654, %s33, 1
          %s656 = smul.addr %s655, 2
          %s657 = scalar_lea.vmem %s11, %s656
        $region80: #{text_encoder_forward.1} parent=47 // pred_fallthru
          _
        // Predicated region
        $region81: #{text_encoder_forward.1} parent=47 // pred_check
          %p658 = pneg %p345
        $region82: #{text_encoder_forward.1} parent=47 // pred_check_branch
          %660 = sbr.rel (%p658) target = $region84
        $region83: #{text_encoder_forward.1} parent=47 // pred_region
          %s661 = sand.u32 %s33, 1
          %s662 = scalar_lea.sflag [#allocation10], %s661
          %s663 = sand.u32 %s335, 1
          %s664 = smul.addr %s663, 128
          %s665 = scalar_lea.vmem [#allocation9], %s664
          %667 = vsyncadd %s662, 0
          %s668 = smul.addr %s33, 32
          %s669 = smul.addr %s668, 4
          %s670 = scalar_lea.hbm %s12, %s669
          %s671 = sshll.u32 %s670, 4
          %s672 = int_to_ptr.hbm [resolvable:$true] %s671
          %s673 = sshll.u32 %s665, 4
          %s674 = int_to_ptr.vmem [resolvable:$true] %s673
          %679 = dma.hbm_to_vmem [thread:$0]  %s672, 2048, %s674, %s662, 64, 64, 4
        $region84: #{text_encoder_forward.1} parent=47 // pred_fallthru
          _
        // Predicated region
        $region85: #{text_encoder_forward.1} parent=47 // pred_check
          %p680 = pneg %p371
        $region86: #{text_encoder_forward.1} parent=47 // pred_check_branch
          %682 = sbr.rel (%p680) target = $region88
        $region87: #{text_encoder_forward.1} parent=47 // pred_region
          %p683 = scmp.lt.s32.totalorder %s33, 1
          %s684 = scalar_select %p683, %s33, 1
          %s685 = scalar_lea.vmem %s13, %s684
        $region88: #{text_encoder_forward.1} parent=47 // pred_fallthru
          _
        // Predicated region
        $region89: #{text_encoder_forward.1} parent=47 // pred_check
          %p686 = pneg %p397
        $region90: #{text_encoder_forward.1} parent=47 // pred_check_branch
          %688 = sbr.rel (%p686) target = $region92
        $region91: #{text_encoder_forward.1} parent=47 // pred_region
          %p689 = scmp.lt.s32.totalorder %s33, 1
          %s690 = scalar_select %p689, %s33, 1
          %s691 = scalar_lea.vmem %s14, %s690
        $region92: #{text_encoder_forward.1} parent=47 // pred_fallthru
          _
        // Predicated region
        $region93: #{text_encoder_forward.1} parent=47 // pred_check
          %p692 = pneg %p423
        $region94: #{text_encoder_forward.1} parent=47 // pred_check_branch
          %694 = sbr.rel (%p692) target = $region96
        $region95: #{text_encoder_forward.1} parent=47 // pred_region
          %p695 = scmp.lt.s32.totalorder %s33, 1
          %s696 = scalar_select %p695, %s33, 1
          %s697 = scalar_lea.vmem %s15, %s696
        $region96: #{text_encoder_forward.1} parent=47 // pred_fallthru
          _
      $region48: #{text_encoder_forward.1} parent=5 // pred_fallthru
        _
      %p698 = scmp.le.s32.totalorder 1, %s33
      %p699 = scmp.lt.s32.totalorder %s33, 3
      %p700 = pnand %p698, %p699
      %p701 = pneg %p700
      // Predicated region
      $region97: #{text_encoder_forward.1} parent=5 // pred_check
        _
      $region98: #{text_encoder_forward.1} parent=5 // pred_check_branch
        %703 = sbr.rel (%p700) target = $region100
      $region99: #{text_encoder_forward.1} parent=5 // pred_region
        %s704 = ssub.s32 %s33, 1
        %s705 = sand.u32 %s286, 1
        %s706 = scalar_lea.sflag [#allocation7], %s705
        %s707 = sand.u32 %s286, 1
        %s708 = smul.addr %s707, 128
        %s709 = scalar_lea.vmem [#allocation6], %s708
        // Predicated region
        $region101: #{text_encoder_forward.1} parent=99 // pred_check
          %p710 = pneg %p299
        $region102: #{text_encoder_forward.1} parent=99 // pred_check_branch
          %712 = sbr.rel (%p710) target = $region104
        $region103: #{text_encoder_forward.1} parent=99 // pred_region
          %714 = dma.done %s706, 2048
        $region104: #{text_encoder_forward.1} parent=99 // pred_fallthru
          _
        %s715 = sand.u32 %s38, 1
        %s716 = scalar_lea.sflag [#allocation10], %s715
        %s717 = sand.u32 %s338, 1
        %s718 = smul.addr %s717, 128
        %s719 = scalar_lea.vmem [#allocation9], %s718
        // Predicated region
        $region105: #{text_encoder_forward.1} parent=99 // pred_check
          %p720 = pneg %p351
        $region106: #{text_encoder_forward.1} parent=99 // pred_check_branch
          %722 = sbr.rel (%p720) target = $region108
        $region107: #{text_encoder_forward.1} parent=99 // pred_region
          %724 = dma.done %s716, 2048
        $region108: #{text_encoder_forward.1} parent=99 // pred_fallthru
          _
        // Predicated region
        $region109: #{text_encoder_forward.1} parent=99 // pred_check
          %p725 = pneg %p450
        $region110: #{text_encoder_forward.1} parent=99 // pred_check_branch
          %727 = sbr.rel (%p725) target = $region112
        $region111: #{text_encoder_forward.1} parent=99 // pred_region
          %729 = dma.done [#allocation10], 1024
        $region112: #{text_encoder_forward.1} parent=99 // pred_fallthru
          _
        %p730 = pneg %p54
        %p731 = pneg %p51
        %p732 = pneg %p75
        %p733 = pneg %p72
        %p734 = pneg %p96
        %p735 = pneg %p93
        %p736 = pneg %p117
        %p737 = pneg %p114
        %p738 = scmp.lt.s32.totalorder %s38, 1
        %s739 = scalar_select %p738, %s38, 1
        %s740 = smul.addr %s739, 48
        %s741 = smul.addr %s740, 4
        %s742 = scalar_lea.vmem %s4, %s741
        %p743 = pneg %p143
        %p744 = pneg %p140
        %p745 = scmp.lt.s32.totalorder %s38, 1
        %s746 = scalar_select %p745, %s38, 1
        %s747 = smul.addr %s746, 3
        %s748 = scalar_lea.vmem %s5, %s747
        %p749 = pneg %p169
        %p750 = pneg %p166
        %p751 = scmp.lt.s32.totalorder %s38, 1
        %s752 = scalar_select %p751, %s38, 1
        %s753 = smul.addr %s752, 16
        %s754 = smul.addr %s753, 4
        %s755 = scalar_lea.vmem %s6, %s754
        %p756 = pneg %p195
        %p757 = pneg %p192
        %p758 = scmp.lt.s32.totalorder %s38, 1
        %s759 = scalar_select %p758, %s38, 1
        %s760 = scalar_lea.vmem %s7, %s759
        %p761 = pneg %p221
        %p762 = pneg %p218
        %p763 = scmp.lt.s32.totalorder %s38, 1
        %s764 = scalar_select %p763, %s38, 1
        %s765 = scalar_lea.vmem %s8, %s764
        %p766 = pneg %p247
        %p767 = pneg %p244
        %p768 = scmp.lt.s32.totalorder %s38, 1
        %s769 = scalar_select %p768, %s38, 1
        %s770 = scalar_lea.vmem %s9, %s769
        %p771 = pneg %p273
        %p772 = pneg %p270
        %s773 = sand.u32 %s286, 1
        %s774 = scalar_lea.sflag [#allocation7], %s773
        %s775 = sand.u32 %s286, 1
        %s776 = smul.addr %s775, 128
        %s777 = scalar_lea.vmem [#allocation6], %s776
        %p778 = pneg %p299
        %p779 = pneg %p296
        %p780 = scmp.lt.s32.totalorder %s38, 1
        %s781 = scalar_select %p780, %s38, 1
        %s782 = smul.addr %s781, 2
        %s783 = scalar_lea.vmem %s11, %s782
        %p784 = pneg %p325
        %p785 = pneg %p322
        %s786 = sand.u32 %s38, 1
        %s787 = scalar_lea.sflag [#allocation10], %s786
        %s788 = sand.u32 %s338, 1
        %s789 = smul.addr %s788, 128
        %s790 = scalar_lea.vmem [#allocation9], %s789
        %p791 = pneg %p351
        %p792 = pneg %p348
        %p793 = scmp.lt.s32.totalorder %s38, 1
        %s794 = scalar_select %p793, %s38, 1
        %s795 = scalar_lea.vmem %s13, %s794
        %p796 = pneg %p377
        %p797 = pneg %p374
        %p798 = scmp.lt.s32.totalorder %s38, 1
        %s799 = scalar_select %p798, %s38, 1
        %s800 = scalar_lea.vmem %s14, %s799
        %p801 = pneg %p403
        %p802 = pneg %p400
        %p803 = scmp.lt.s32.totalorder %s38, 1
        %s804 = scalar_select %p803, %s38, 1
        %s805 = scalar_lea.vmem %s15, %s804
        %p806 = pneg %p429
        %p807 = pneg %p426
        %p808 = pneg %p450
        %p809 = pneg %p447
        %p810 = pneg %p471
        %p811 = pneg %p468
        %p812 = pneg %p492
        %p813 = pneg %p489
        %p814 = pneg %p513
        %p815 = pneg %p510
        %p816 = pneg %p534
        %p817 = pneg %p531
        %p818 = scmp.lt.s32.totalorder %s38, 1
        %s819 = scalar_select %p818, %s38, 1
        %s820 = smul.addr %s819, 48
        %s821 = smul.addr %s820, 4
        %s822 = scalar_lea.vmem %s4, %s821
        %p823 = scmp.lt.s32.totalorder %s38, 1
        %s824 = scalar_select %p823, %s38, 1
        %s825 = smul.addr %s824, 3
        %s826 = scalar_lea.vmem %s5, %s825
        %p827 = scmp.lt.s32.totalorder %s38, 1
        %s828 = scalar_select %p827, %s38, 1
        %s829 = smul.addr %s828, 16
        %s830 = smul.addr %s829, 4
        %s831 = scalar_lea.vmem %s6, %s830
        %p832 = scmp.lt.s32.totalorder %s38, 1
        %s833 = scalar_select %p832, %s38, 1
        %s834 = scalar_lea.vmem %s7, %s833
        %p835 = scmp.lt.s32.totalorder %s38, 1
        %s836 = scalar_select %p835, %s38, 1
        %s837 = scalar_lea.vmem %s8, %s836
        %p838 = scmp.lt.s32.totalorder %s38, 1
        %s839 = scalar_select %p838, %s38, 1
        %s840 = scalar_lea.vmem %s9, %s839
        %p841 = scmp.lt.s32.totalorder %s38, 1
        %s842 = scalar_select %p841, %s38, 1
        %s843 = smul.addr %s842, 2
        %s844 = scalar_lea.vmem %s11, %s843
        %p845 = scmp.lt.s32.totalorder %s38, 1
        %s846 = scalar_select %p845, %s38, 1
        %s847 = scalar_lea.vmem %s13, %s846
        %p848 = scmp.lt.s32.totalorder %s38, 1
        %s849 = scalar_select %p848, %s38, 1
        %s850 = scalar_lea.vmem %s14, %s849
        %p851 = scmp.lt.s32.totalorder %s38, 1
        %s852 = scalar_select %p851, %s38, 1
        %s853 = scalar_lea.vmem %s15, %s852
        %p855 = scmp.eq.s32.totalorder %s38, 0
        // Predicated region
        $region113: #{text_encoder_forward.1} parent=99 // pred_check
          %p856 = pneg %p855
        $region114: #{text_encoder_forward.1} parent=99 // pred_check_branch
          %858 = sbr.rel (%p856) target = $region116
        $region115: #{text_encoder_forward.1} parent=99 // pred_region
          %v859 = vld [vmem:[%s0] sm:$0xff]
          %v860 = vld [vmem:[%s0 + $0x8] sm:$0xff]
          %v861 = vld [vmem:[%s0 + $0x10] sm:$0xff]
          %v862 = vld [vmem:[%s0 + $0x18] sm:$0xff]
          %v863 = vld [vmem:[%s2] sm:$0x1]
          %v864 = vld [vmem:[%s3] sm:$0x1]
          %865 = vadd.xlane.f32.xlu0 %v859
          %v866 = vpop.xlane.xlu0 %865
          %867 = vadd.xlane.f32.xlu0 %v860
          %v868 = vpop.xlane.xlu0 %867
          %869 = vadd.xlane.f32.xlu0 %v861
          %v870 = vpop.xlane.xlu0 %869
          %871 = vadd.xlane.f32.xlu0 %v862
          %v872 = vpop.xlane.xlu0 %871
          %v873 = vrcp.pop 128.0
          %v874 = vmul.f32 128.0, %v873
          %v875 = vsub.f32 1.0, %v874
          %v876 = vmul.f32 %v873, %v875
          %v877 = vadd.f32 %v873, %v876
          %vm878 = vweird.f32 %v873
          %v879 = vsel %vm878, %v873, %v877
          %v880 = vmul.f32 %v866, %v879
          %v881 = vmul.f32 %v868, %v879
          %v882 = vmul.f32 %v870, %v879
          %v883 = vmul.f32 %v872, %v879
          %v884 = vsub.f32 %v859, %v880
          %v885 = vsub.f32 %v860, %v881
          %v886 = vsub.f32 %v861, %v882
          %v887 = vsub.f32 %v862, %v883
          %v888 = vmul.f32 %v884, %v884
          %v889 = vmul.f32 %v885, %v885
          %v890 = vmul.f32 %v886, %v886
          %v891 = vmul.f32 %v887, %v887
          %892 = vadd.xlane.f32.xlu0 %v888
          %v893 = vpop.xlane.xlu0 %892
          %894 = vadd.xlane.f32.xlu0 %v889
          %v895 = vpop.xlane.xlu0 %894
          %896 = vadd.xlane.f32.xlu0 %v890
          %v897 = vpop.xlane.xlu0 %896
          %898 = vadd.xlane.f32.xlu0 %v891
          %v899 = vpop.xlane.xlu0 %898
          %v900 = vmul.f32 %v893, %v879
          %v901 = vmul.f32 %v895, %v879
          %v902 = vmul.f32 %v897, %v879
          %v903 = vmul.f32 %v899, %v879
          %v904 = vadd.f32 %v900, 1e-12
          %v905 = vadd.f32 %v901, 1e-12
          %v906 = vadd.f32 %v902, 1e-12
          %v907 = vadd.f32 %v903, 1e-12
          %v908 = vrsqrt.pop %v904
          %v909 = vmul.f32 %v908, %v904
          %v910 = vmul.f32 %v909, %v908
          %v911 = vmul.f32 0.5, %v910
          %v912 = vsub.f32 1.5, %v911
          %v913 = vmul.f32 %v908, %v912
          %vm914 = vweird.f32 %v904
          %vm915 = vweird.f32 %v908
          %vm916 = vmor %vm914, %vm915
          %v917 = vsel %vm916, %v908, %v913
          %v918 = vrsqrt.pop %v905
          %v919 = vmul.f32 %v918, %v905
          %v920 = vmul.f32 %v919, %v918
          %v921 = vmul.f32 0.5, %v920
          %v922 = vsub.f32 1.5, %v921
          %v923 = vmul.f32 %v918, %v922
          %vm924 = vweird.f32 %v905
          %vm925 = vweird.f32 %v918
          %vm926 = vmor %vm924, %vm925
          %v927 = vsel %vm926, %v918, %v923
          %v928 = vrsqrt.pop %v906
          %v929 = vmul.f32 %v928, %v906
          %v930 = vmul.f32 %v929, %v928
          %v931 = vmul.f32 0.5, %v930
          %v932 = vsub.f32 1.5, %v931
          %v933 = vmul.f32 %v928, %v932
          %vm934 = vweird.f32 %v906
          %vm935 = vweird.f32 %v928
          %vm936 = vmor %vm934, %vm935
          %v937 = vsel %vm936, %v928, %v933
          %v938 = vrsqrt.pop %v907
          %v939 = vmul.f32 %v938, %v907
          %v940 = vmul.f32 %v939, %v938
          %v941 = vmul.f32 0.5, %v940
          %v942 = vsub.f32 1.5, %v941
          %v943 = vmul.f32 %v938, %v942
          %vm944 = vweird.f32 %v907
          %vm945 = vweird.f32 %v938
          %vm946 = vmor %vm944, %vm945
          %v947 = vsel %vm946, %v938, %v943
          %v948 = vmul.f32 %v884, %v917
          %v949 = vmul.f32 %v885, %v927
          %v950 = vmul.f32 %v886, %v937
          %v951 = vmul.f32 %v887, %v947
          %v953 = vperm.slane %v863, 0
          %v955 = vmul.f32 %v948, %v953
          %v956 = vmul.f32 %v949, %v953
          %v957 = vmul.f32 %v950, %v953
          %v958 = vmul.f32 %v951, %v953
          %v960 = vperm.slane %v864, 0
          %v962 = vadd.f32 %v955, %v960
          %v963 = vadd.f32 %v956, %v960
          %v964 = vadd.f32 %v957, %v960
          %v965 = vadd.f32 %v958, %v960
          %966 = vst [vmem:[#allocation2] sm:$0xff] %v962
          %967 = vst [vmem:[#allocation2 + $0x8] sm:$0xff] %v963
          %968 = vst [vmem:[#allocation2 + $0x10] sm:$0xff] %v964
          %969 = vst [vmem:[#allocation2 + $0x18] sm:$0xff] %v965
          %v970 = vld [vmem:[%s1] sm:$0x3]
          %v971 = vsub.f32 1.0, %v970
          %v972 = vmul.f32 %v971, -10000.0
          %v973 = vperm.slane %v972, 0
          %v974 = vperm.slane %v972, 1
          %vm975 = vcmask 130048
          %976 = vst.msk [vmem:[#allocation3] sm:$0xff] %vm975, %v973
          %977 = vst.msk [vmem:[#allocation3 + $0x8] sm:$0xff] %vm975, %v973
          %978 = vst.msk [vmem:[#allocation3 + $0x10] sm:$0xff] %vm975, %v973
          %979 = vst.msk [vmem:[#allocation3 + $0x18] sm:$0xff] %vm975, %v973
          %980 = vst.msk [vmem:[#allocation3 + $0x20] sm:$0xff] %vm975, %v973
          %981 = vst.msk [vmem:[#allocation3 + $0x28] sm:$0xff] %vm975, %v973
          %982 = vst.msk [vmem:[#allocation3 + $0x30] sm:$0xff] %vm975, %v973
          %983 = vst.msk [vmem:[#allocation3 + $0x38] sm:$0xff] %vm975, %v973
          %984 = vst.msk [vmem:[#allocation3 + $0x40] sm:$0xff] %vm975, %v974
          %985 = vst.msk [vmem:[#allocation3 + $0x48] sm:$0xff] %vm975, %v974
          %986 = vst.msk [vmem:[#allocation3 + $0x50] sm:$0xff] %vm975, %v974
          %987 = vst.msk [vmem:[#allocation3 + $0x58] sm:$0xff] %vm975, %v974
          %988 = vst.msk [vmem:[#allocation3 + $0x60] sm:$0xff] %vm975, %v974
          %989 = vst.msk [vmem:[#allocation3 + $0x68] sm:$0xff] %vm975, %v974
          %990 = vst.msk [vmem:[#allocation3 + $0x70] sm:$0xff] %vm975, %v974
          %991 = vst.msk [vmem:[#allocation3 + $0x78] sm:$0xff] %vm975, %v974
        $region116: #{text_encoder_forward.1} parent=99 // pred_fallthru
          _
        %v992 = vld [vmem:[#allocation2] sm:$0xff]
        %v993 = vld [vmem:[#allocation2 + $0x8] sm:$0xff]
        %v994 = vld [vmem:[#allocation2 + $0x10] sm:$0xff]
        %v995 = vld [vmem:[#allocation2 + $0x18] sm:$0xff]
        %v996 = vpack.c.bf16 %v993, %v992
        %v997 = vpack.c.bf16 %v995, %v994
        %v998 = vld [vmem:[%s822] sm:$0xff]
        %v999 = vld [vmem:[%s822 + $0x8] sm:$0xf]
        %v1000 = vld [vmem:[%s822 + $0xc] sm:$0xff]
        %v1001 = vld [vmem:[%s822 + $0x14] sm:$0xf]
        %v1002 = vld [vmem:[%s822 + $0x18] sm:$0xff]
        %v1003 = vld [vmem:[%s822 + $0x20] sm:$0xf]
        %v1004 = vld [vmem:[%s822 + $0x24] sm:$0xff]
        %v1005 = vld [vmem:[%s822 + $0x2c] sm:$0xf]
        %v1006 = vld [vmem:[%s822 + $0x30] sm:$0xff]
        %v1007 = vld [vmem:[%s822 + $0x38] sm:$0xf]
        %v1008 = vld [vmem:[%s822 + $0x3c] sm:$0xff]
        %v1009 = vld [vmem:[%s822 + $0x44] sm:$0xf]
        %v1010 = vld [vmem:[%s822 + $0x48] sm:$0xff]
        %v1011 = vld [vmem:[%s822 + $0x50] sm:$0xf]
        %v1012 = vld [vmem:[%s822 + $0x54] sm:$0xff]
        %v1013 = vld [vmem:[%s822 + $0x5c] sm:$0xf]
        %v1014 = vld [vmem:[%s822 + $0x60] sm:$0xff]
        %v1015 = vld [vmem:[%s822 + $0x68] sm:$0xf]
        %v1016 = vld [vmem:[%s822 + $0x6c] sm:$0xff]
        %v1017 = vld [vmem:[%s822 + $0x74] sm:$0xf]
        %v1018 = vld [vmem:[%s822 + $0x78] sm:$0xff]
        %v1019 = vld [vmem:[%s822 + $0x80] sm:$0xf]
        %v1020 = vld [vmem:[%s822 + $0x84] sm:$0xff]
        %v1021 = vld [vmem:[%s822 + $0x8c] sm:$0xf]
        %v1022 = vld [vmem:[%s822 + $0x90] sm:$0xff]
        %v1023 = vld [vmem:[%s822 + $0x98] sm:$0xf]
        %v1024 = vld [vmem:[%s822 + $0x9c] sm:$0xff]
        %v1025 = vld [vmem:[%s822 + $0xa4] sm:$0xf]
        %v1026 = vld [vmem:[%s822 + $0xa8] sm:$0xff]
        %v1027 = vld [vmem:[%s822 + $0xb0] sm:$0xf]
        %v1028 = vld [vmem:[%s822 + $0xb4] sm:$0xff]
        %v1029 = vld [vmem:[%s822 + $0xbc] sm:$0xf]
        %v1030 = vld [vmem:[%s826] sm:$0x7]
        %v1032 = vperm.slane %v1030, 0
        %v1033 = vperm.slane %v1030, 1
        %v1034 = vperm.slane %v1030, 2
        %v1070 = vunpack.c.l.b16 %v998
        %v1071 = vunpack.c.h.b16 %v998
        %v1072 = vunpack.c.l.b16 %v999
        %v1073 = vunpack.c.l.b16 %v1000
        %v1074 = vunpack.c.h.b16 %v1000
        %v1075 = vunpack.c.l.b16 %v1001
        %v1076 = vunpack.c.l.b16 %v1002
        %v1077 = vunpack.c.h.b16 %v1002
        %v1078 = vunpack.c.l.b16 %v1003
        %v1079 = vunpack.c.l.b16 %v1004
        %v1080 = vunpack.c.h.b16 %v1004
        %v1081 = vunpack.c.l.b16 %v1005
        %v1082 = vunpack.c.l.b16 %v1006
        %v1083 = vunpack.c.h.b16 %v1006
        %v1084 = vunpack.c.l.b16 %v1007
        %v1085 = vunpack.c.l.b16 %v1008
        %v1086 = vunpack.c.h.b16 %v1008
        %v1087 = vunpack.c.l.b16 %v1009
        %v1088 = vunpack.c.l.b16 %v1010
        %v1089 = vunpack.c.h.b16 %v1010
        %v1090 = vunpack.c.l.b16 %v1011
        %v1091 = vunpack.c.l.b16 %v1012
        %v1092 = vunpack.c.h.b16 %v1012
        %v1093 = vunpack.c.l.b16 %v1013
        %v1094 = vunpack.c.l.b16 %v1014
        %v1095 = vunpack.c.h.b16 %v1014
        %v1096 = vunpack.c.l.b16 %v1015
        %v1097 = vunpack.c.l.b16 %v1016
        %v1098 = vunpack.c.h.b16 %v1016
        %v1099 = vunpack.c.l.b16 %v1017
        %v1100 = vunpack.c.l.b16 %v1018
        %v1101 = vunpack.c.h.b16 %v1018
        %v1102 = vunpack.c.l.b16 %v1019
        %v1103 = vunpack.c.l.b16 %v1020
        %v1104 = vunpack.c.h.b16 %v1020
        %v1105 = vunpack.c.l.b16 %v1021
        %v1106 = vunpack.c.l.b16 %v1022
        %v1107 = vunpack.c.h.b16 %v1022
        %v1108 = vunpack.c.l.b16 %v1023
        %v1109 = vunpack.c.l.b16 %v1024
        %v1110 = vunpack.c.h.b16 %v1024
        %v1111 = vunpack.c.l.b16 %v1025
        %v1112 = vunpack.c.l.b16 %v1026
        %v1113 = vunpack.c.h.b16 %v1026
        %v1114 = vunpack.c.l.b16 %v1027
        %v1115 = vunpack.c.l.b16 %v1028
        %v1116 = vunpack.c.h.b16 %v1028
        %v1117 = vunpack.c.l.b16 %v1029
        %v1118 = vpack.c.b16 %v1073, %v1070
        %v1119 = vpack.c.b16 %v1074, %v1071
        %v1120 = vpack.c.b16 %v1075, %v1072
        %v1121 = vpack.c.b16 %v1079, %v1076
        %v1122 = vpack.c.b16 %v1080, %v1077
        %v1123 = vpack.c.b16 %v1081, %v1078
        %v1124 = vpack.c.b16 %v1085, %v1082
        %v1125 = vpack.c.b16 %v1086, %v1083
        %v1126 = vpack.c.b16 %v1087, %v1084
        %v1127 = vpack.c.b16 %v1091, %v1088
        %v1128 = vpack.c.b16 %v1092, %v1089
        %v1129 = vpack.c.b16 %v1093, %v1090
        %v1130 = vpack.c.b16 %v1097, %v1094
        %v1131 = vpack.c.b16 %v1098, %v1095
        %v1132 = vpack.c.b16 %v1099, %v1096
        %v1133 = vpack.c.b16 %v1103, %v1100
        %v1134 = vpack.c.b16 %v1104, %v1101
        %v1135 = vpack.c.b16 %v1105, %v1102
        %v1136 = vpack.c.b16 %v1109, %v1106
        %v1137 = vpack.c.b16 %v1110, %v1107
        %v1138 = vpack.c.b16 %v1111, %v1108
        %v1139 = vpack.c.b16 %v1115, %v1112
        %v1140 = vpack.c.b16 %v1116, %v1113
        %v1141 = vpack.c.b16 %v1117, %v1114
        %1166 = vmatpush.bf16.msra.mxu0 %v1139
        %1167 = vmatpush.bf16.msra.mxu0 %v1136
        %1168 = vmatpush.bf16.msra.mxu0 %v1133
        %1169 = vmatpush.bf16.msra.mxu0 %v1130
        %1170 = vmatpush.bf16.msra.mxu0 %v1127
        %1171 = vmatpush.bf16.msra.mxu0 %v1124
        %1172 = vmatpush.bf16.msra.mxu0 %v1121
        %1173 = vmatpush.bf16.msra.mxu0 %v1118
        %1174 = vmatmul.bf16.gmra.mxu0 %v996
        %v1175 = vpop.f32.mrf.mxu0
        %v1176 = vadd.f32 %v1032, %v1175
        %v1177 = vpop.f32.mrf.mxu0
        %v1178 = vadd.f32 %v1032, %v1177
        %1179 = vmatmul.bf16.gmra.mxu0 %v997
        %v1180 = vpop.f32.mrf.mxu0
        %v1181 = vadd.f32 %v1032, %v1180
        %v1182 = vpop.f32.mrf.mxu0
        %v1183 = vadd.f32 %v1032, %v1182
        %1184 = vdwg.mxu0
        %1185 = vmatpush.bf16.msra.mxu0 %v1140
        %1186 = vmatpush.bf16.msra.mxu0 %v1137
        %1187 = vmatpush.bf16.msra.mxu0 %v1134
        %1188 = vmatpush.bf16.msra.mxu0 %v1131
        %1189 = vmatpush.bf16.msra.mxu0 %v1128
        %1190 = vmatpush.bf16.msra.mxu0 %v1125
        %1191 = vmatpush.bf16.msra.mxu0 %v1122
        %1192 = vmatpush.bf16.msra.mxu0 %v1119
        %1193 = vmatmul.bf16.gmra.mxu0 %v996
        %v1194 = vpop.f32.mrf.mxu0
        %v1195 = vadd.f32 %v1033, %v1194
        %v1196 = vpop.f32.mrf.mxu0
        %v1197 = vadd.f32 %v1033, %v1196
        %1198 = vmatmul.bf16.gmra.mxu0 %v997
        %v1199 = vpop.f32.mrf.mxu0
        %v1200 = vadd.f32 %v1033, %v1199
        %v1201 = vpop.f32.mrf.mxu0
        %v1202 = vadd.f32 %v1033, %v1201
        %1203 = vdwg.mxu0
        %1204 = vmatpush.bf16.msra.mxu0 %v1141
        %1205 = vmatpush.bf16.msra.mxu0 %v1138
        %1206 = vmatpush.bf16.msra.mxu0 %v1135
        %1207 = vmatpush.bf16.msra.mxu0 %v1132
        %1208 = vmatpush.bf16.msra.mxu0 %v1129
        %1209 = vmatpush.bf16.msra.mxu0 %v1126
        %1210 = vmatpush.bf16.msra.mxu0 %v1123
        %1211 = vmatpush.bf16.msra.mxu0 %v1120
        %1212 = vmatmul.bf16.gmra.mxu0 %v996
        %v1213 = vpop.f32.mrf.mxu0
        %v1214 = vadd.f32 %v1034, %v1213
        %v1215 = vpop.f32.mrf.mxu0
        %v1216 = vadd.f32 %v1034, %v1215
        %1217 = vmatmul.bf16.gmra.mxu0 %v997
        %v1218 = vpop.f32.mrf.mxu0
        %v1219 = vadd.f32 %v1034, %v1218
        %v1220 = vpop.f32.mrf.mxu0
        %v1221 = vadd.f32 %v1034, %v1220
        %1222 = vdwg.mxu0
        %v1223 = vpack.c.bf16 %v1195, %v1176
        %v1224 = vpack.c.bf16 %v1214, %v1214
        %v1225 = vpack.c.bf16 %v1197, %v1178
        %v1226 = vpack.c.bf16 %v1216, %v1216
        %v1227 = vpack.c.bf16 %v1200, %v1181
        %v1228 = vpack.c.bf16 %v1219, %v1219
        %v1229 = vpack.c.bf16 %v1202, %v1183
        %v1230 = vpack.c.bf16 %v1221, %v1221
        %v1233 = vunpack.c.l.b16 %v1223
        %v1234 = vunpack.c.l.b16 %v1225
        %v1235 = vpack.c.b16 %v1234, %v1233
        %v1236 = vunpack.c.h.b16 %v1223
        %v1237 = vunpack.c.h.b16 %v1225
        %v1238 = vpack.c.b16 %v1237, %v1236
        %vm1239 = vcmask 261120
        %v1241 = vsel %vm1239, %v1235, 0
        %v1244 = vsel %vm1239, %v1238, 0
        %1246 = vmatpush.bf16.xpose.msra.mxu0 0
        %1247 = vmatpush.bf16.xpose.msra.mxu0 0
        %1248 = vmatpush.bf16.xpose.msra.mxu0 0
        %1249 = vmatpush.bf16.xpose.msra.mxu0 0
        %1250 = vmatpush.bf16.xpose.msra.mxu0 0
        %1251 = vmatpush.bf16.xpose.msra.mxu0 0
        %1252 = vmatpush.bf16.xpose.msra.mxu0 0
        %1253 = vmatpush.bf16.xpose.msra.mxu0 %v1244
        %1254 = vmatmul.bf16.gmra.mxu0 %v1241
        %v1255 = vpop.f32.mrf.mxu0
        %v1256 = vadd.f32 0.0, %v1255
        %v1257 = vpop.f32.mrf.mxu0
        %v1258 = vadd.f32 0.0, %v1257
        %1259 = vdwg.mxu0
        %vm1260 = vcmask 130048
        %1261 = vst.msk [vmem:[#allocation4] sm:$0xff] %vm1260, %v1256
        %1262 = vst.msk [vmem:[#allocation4 + $0x8] sm:$0xff] %vm1260, %v1258
        %1263 = vrot.lane.b32.xlu0 %v1235, 96
        %v1264 = vpop.permute.xlu0 %1263
        %1265 = vrot.lane.b32.xlu0 %v1238, 96
        %v1266 = vpop.permute.xlu0 %1265
        %v1268 = vsel %vm1239, %v1264, 0
        %v1271 = vsel %vm1239, %v1266, 0
        %1273 = vmatpush.bf16.xpose.msra.mxu0 0
        %1274 = vmatpush.bf16.xpose.msra.mxu0 0
        %1275 = vmatpush.bf16.xpose.msra.mxu0 0
        %1276 = vmatpush.bf16.xpose.msra.mxu0 0
        %1277 = vmatpush.bf16.xpose.msra.mxu0 0
        %1278 = vmatpush.bf16.xpose.msra.mxu0 0
        %1279 = vmatpush.bf16.xpose.msra.mxu0 0
        %1280 = vmatpush.bf16.xpose.msra.mxu0 %v1271
        %1281 = vmatmul.bf16.gmra.mxu0 %v1268
        %v1282 = vpop.f32.mrf.mxu0
        %v1283 = vadd.f32 0.0, %v1282
        %v1284 = vpop.f32.mrf.mxu0
        %v1285 = vadd.f32 0.0, %v1284
        %1286 = vdwg.mxu0
        %1287 = vst.msk [vmem:[#allocation4 + $0x10] sm:$0xff] %vm1260, %v1283
        %1288 = vst.msk [vmem:[#allocation4 + $0x18] sm:$0xff] %vm1260, %v1285
        %1289 = vrot.lane.b32.xlu0 %v1235, 64
        %v1290 = vpop.permute.xlu0 %1289
        %1291 = vrot.lane.b32.xlu0 %v1238, 64
        %v1292 = vpop.permute.xlu0 %1291
        %v1294 = vsel %vm1239, %v1290, 0
        %v1297 = vsel %vm1239, %v1292, 0
        %1299 = vmatpush.bf16.xpose.msra.mxu0 0
        %1300 = vmatpush.bf16.xpose.msra.mxu0 0
        %1301 = vmatpush.bf16.xpose.msra.mxu0 0
        %1302 = vmatpush.bf16.xpose.msra.mxu0 0
        %1303 = vmatpush.bf16.xpose.msra.mxu0 0
        %1304 = vmatpush.bf16.xpose.msra.mxu0 0
        %1305 = vmatpush.bf16.xpose.msra.mxu0 0
        %1306 = vmatpush.bf16.xpose.msra.mxu0 %v1297
        %1307 = vmatmul.bf16.gmra.mxu0 %v1294
        %v1308 = vpop.f32.mrf.mxu0
        %v1309 = vadd.f32 0.0, %v1308
        %v1310 = vpop.f32.mrf.mxu0
        %v1311 = vadd.f32 0.0, %v1310
        %1312 = vdwg.mxu0
        %1313 = vst.msk [vmem:[#allocation4 + $0x20] sm:$0xff] %vm1260, %v1309
        %1314 = vst.msk [vmem:[#allocation4 + $0x28] sm:$0xff] %vm1260, %v1311
        %1315 = vrot.lane.b32.xlu0 %v1235, 32
        %v1316 = vpop.permute.xlu0 %1315
        %1317 = vrot.lane.b32.xlu0 %v1238, 32
        %v1318 = vpop.permute.xlu0 %1317
        %v1320 = vsel %vm1239, %v1316, 0
        %v1323 = vsel %vm1239, %v1318, 0
        %1325 = vmatpush.bf16.xpose.msra.mxu0 0
        %1326 = vmatpush.bf16.xpose.msra.mxu0 0
        %1327 = vmatpush.bf16.xpose.msra.mxu0 0
        %1328 = vmatpush.bf16.xpose.msra.mxu0 0
        %1329 = vmatpush.bf16.xpose.msra.mxu0 0
        %1330 = vmatpush.bf16.xpose.msra.mxu0 0
        %1331 = vmatpush.bf16.xpose.msra.mxu0 0
        %1332 = vmatpush.bf16.xpose.msra.mxu0 %v1323
        %1333 = vmatmul.bf16.gmra.mxu0 %v1320
        %v1334 = vpop.f32.mrf.mxu0
        %v1335 = vadd.f32 0.0, %v1334
        %v1336 = vpop.f32.mrf.mxu0
        %v1337 = vadd.f32 0.0, %v1336
        %1338 = vdwg.mxu0
        %1339 = vst.msk [vmem:[#allocation4 + $0x30] sm:$0xff] %vm1260, %v1335
        %1340 = vst.msk [vmem:[#allocation4 + $0x38] sm:$0xff] %vm1260, %v1337
        %v1343 = vunpack.c.l.b16 %v1227
        %v1344 = vunpack.c.l.b16 %v1229
        %v1345 = vpack.c.b16 %v1344, %v1343
        %v1346 = vunpack.c.h.b16 %v1227
        %v1347 = vunpack.c.h.b16 %v1229
        %v1348 = vpack.c.b16 %v1347, %v1346
        %v1350 = vsel %vm1239, %v1345, 0
        %v1353 = vsel %vm1239, %v1348, 0
        %1355 = vmatpush.bf16.xpose.msra.mxu0 0
        %1356 = vmatpush.bf16.xpose.msra.mxu0 0
        %1357 = vmatpush.bf16.xpose.msra.mxu0 0
        %1358 = vmatpush.bf16.xpose.msra.mxu0 0
        %1359 = vmatpush.bf16.xpose.msra.mxu0 0
        %1360 = vmatpush.bf16.xpose.msra.mxu0 0
        %1361 = vmatpush.bf16.xpose.msra.mxu0 0
        %1362 = vmatpush.bf16.xpose.msra.mxu0 %v1353
        %1363 = vmatmul.bf16.gmra.mxu0 %v1350
        %v1364 = vpop.f32.mrf.mxu0
        %v1365 = vadd.f32 0.0, %v1364
        %v1366 = vpop.f32.mrf.mxu0
        %v1367 = vadd.f32 0.0, %v1366
        %1368 = vdwg.mxu0
        %1369 = vst.msk [vmem:[#allocation4 + $0x40] sm:$0xff] %vm1260, %v1365
        %1370 = vst.msk [vmem:[#allocation4 + $0x48] sm:$0xff] %vm1260, %v1367
        %1371 = vrot.lane.b32.xlu0 %v1345, 96
        %v1372 = vpop.permute.xlu0 %1371
        %1373 = vrot.lane.b32.xlu0 %v1348, 96
        %v1374 = vpop.permute.xlu0 %1373
        %v1376 = vsel %vm1239, %v1372, 0
        %v1379 = vsel %vm1239, %v1374, 0
        %1381 = vmatpush.bf16.xpose.msra.mxu0 0
        %1382 = vmatpush.bf16.xpose.msra.mxu0 0
        %1383 = vmatpush.bf16.xpose.msra.mxu0 0
        %1384 = vmatpush.bf16.xpose.msra.mxu0 0
        %1385 = vmatpush.bf16.xpose.msra.mxu0 0
        %1386 = vmatpush.bf16.xpose.msra.mxu0 0
        %1387 = vmatpush.bf16.xpose.msra.mxu0 0
        %1388 = vmatpush.bf16.xpose.msra.mxu0 %v1379
        %1389 = vmatmul.bf16.gmra.mxu0 %v1376
        %v1390 = vpop.f32.mrf.mxu0
        %v1391 = vadd.f32 0.0, %v1390
        %v1392 = vpop.f32.mrf.mxu0
        %v1393 = vadd.f32 0.0, %v1392
        %1394 = vdwg.mxu0
        %1395 = vst.msk [vmem:[#allocation4 + $0x50] sm:$0xff] %vm1260, %v1391
        %1396 = vst.msk [vmem:[#allocation4 + $0x58] sm:$0xff] %vm1260, %v1393
        %1397 = vrot.lane.b32.xlu0 %v1345, 64
        %v1398 = vpop.permute.xlu0 %1397
        %1399 = vrot.lane.b32.xlu0 %v1348, 64
        %v1400 = vpop.permute.xlu0 %1399
        %v1402 = vsel %vm1239, %v1398, 0
        %v1405 = vsel %vm1239, %v1400, 0
        %1407 = vmatpush.bf16.xpose.msra.mxu0 0
        %1408 = vmatpush.bf16.xpose.msra.mxu0 0
        %1409 = vmatpush.bf16.xpose.msra.mxu0 0
        %1410 = vmatpush.bf16.xpose.msra.mxu0 0
        %1411 = vmatpush.bf16.xpose.msra.mxu0 0
        %1412 = vmatpush.bf16.xpose.msra.mxu0 0
        %1413 = vmatpush.bf16.xpose.msra.mxu0 0
        %1414 = vmatpush.bf16.xpose.msra.mxu0 %v1405
        %1415 = vmatmul.bf16.gmra.mxu0 %v1402
        %v1416 = vpop.f32.mrf.mxu0
        %v1417 = vadd.f32 0.0, %v1416
        %v1418 = vpop.f32.mrf.mxu0
        %v1419 = vadd.f32 0.0, %v1418
        %1420 = vdwg.mxu0
        %1421 = vst.msk [vmem:[#allocation4 + $0x60] sm:$0xff] %vm1260, %v1417
        %1422 = vst.msk [vmem:[#allocation4 + $0x68] sm:$0xff] %vm1260, %v1419
        %1423 = vrot.lane.b32.xlu0 %v1345, 32
        %v1424 = vpop.permute.xlu0 %1423
        %1425 = vrot.lane.b32.xlu0 %v1348, 32
        %v1426 = vpop.permute.xlu0 %1425
        %v1428 = vsel %vm1239, %v1424, 0
        %v1431 = vsel %vm1239, %v1426, 0
        %1433 = vmatpush.bf16.xpose.msra.mxu0 0
        %1434 = vmatpush.bf16.xpose.msra.mxu0 0
        %1435 = vmatpush.bf16.xpose.msra.mxu0 0
        %1436 = vmatpush.bf16.xpose.msra.mxu0 0
        %1437 = vmatpush.bf16.xpose.msra.mxu0 0
        %1438 = vmatpush.bf16.xpose.msra.mxu0 0
        %1439 = vmatpush.bf16.xpose.msra.mxu0 0
        %1440 = vmatpush.bf16.xpose.msra.mxu0 %v1431
        %1441 = vmatmul.bf16.gmra.mxu0 %v1428
        %v1442 = vpop.f32.mrf.mxu0
        %v1443 = vadd.f32 0.0, %v1442
        %v1444 = vpop.f32.mrf.mxu0
        %v1445 = vadd.f32 0.0, %v1444
        %1446 = vdwg.mxu0
        %1447 = vst.msk [vmem:[#allocation4 + $0x70] sm:$0xff] %vm1260, %v1443
        %1448 = vst.msk [vmem:[#allocation4 + $0x78] sm:$0xff] %vm1260, %v1445
        %v1449 = vld [vmem:[#allocation4] sm:$0xff]
        %v1450 = vld [vmem:[#allocation4 + $0x8] sm:$0xff]
        %v1451 = vld [vmem:[#allocation4 + $0x10] sm:$0xff]
        %v1452 = vld [vmem:[#allocation4 + $0x18] sm:$0xff]
        %v1453 = vld [vmem:[#allocation4 + $0x20] sm:$0xff]
        %v1454 = vld [vmem:[#allocation4 + $0x28] sm:$0xff]
        %v1455 = vld [vmem:[#allocation4 + $0x30] sm:$0xff]
        %v1456 = vld [vmem:[#allocation4 + $0x38] sm:$0xff]
        %v1457 = vld [vmem:[#allocation4 + $0x40] sm:$0xff]
        %v1458 = vld [vmem:[#allocation4 + $0x48] sm:$0xff]
        %v1459 = vld [vmem:[#allocation4 + $0x50] sm:$0xff]
        %v1460 = vld [vmem:[#allocation4 + $0x58] sm:$0xff]
        %v1461 = vld [vmem:[#allocation4 + $0x60] sm:$0xff]
        %v1462 = vld [vmem:[#allocation4 + $0x68] sm:$0xff]
        %v1463 = vld [vmem:[#allocation4 + $0x70] sm:$0xff]
        %v1464 = vld [vmem:[#allocation4 + $0x78] sm:$0xff]
        %v1465 = vmul.f32 %v1449, 0.17677669
        %v1466 = vmul.f32 %v1450, 0.17677669
        %v1467 = vmul.f32 %v1451, 0.17677669
        %v1468 = vmul.f32 %v1452, 0.17677669
        %v1469 = vmul.f32 %v1453, 0.17677669
        %v1470 = vmul.f32 %v1454, 0.17677669
        %v1471 = vmul.f32 %v1455, 0.17677669
        %v1472 = vmul.f32 %v1456, 0.17677669
        %v1473 = vmul.f32 %v1457, 0.17677669
        %v1474 = vmul.f32 %v1458, 0.17677669
        %v1475 = vmul.f32 %v1459, 0.17677669
        %v1476 = vmul.f32 %v1460, 0.17677669
        %v1477 = vmul.f32 %v1461, 0.17677669
        %v1478 = vmul.f32 %v1462, 0.17677669
        %v1479 = vmul.f32 %v1463, 0.17677669
        %v1480 = vmul.f32 %v1464, 0.17677669
        %v1481 = vld [vmem:[#allocation3] sm:$0xff]
        %v1482 = vld [vmem:[#allocation3 + $0x8] sm:$0xff]
        %v1483 = vld [vmem:[#allocation3 + $0x10] sm:$0xff]
        %v1484 = vld [vmem:[#allocation3 + $0x18] sm:$0xff]
        %v1485 = vld [vmem:[#allocation3 + $0x20] sm:$0xff]
        %v1486 = vld [vmem:[#allocation3 + $0x28] sm:$0xff]
        %v1487 = vld [vmem:[#allocation3 + $0x30] sm:$0xff]
        %v1488 = vld [vmem:[#allocation3 + $0x38] sm:$0xff]
        %v1489 = vld [vmem:[#allocation3 + $0x40] sm:$0xff]
        %v1490 = vld [vmem:[#allocation3 + $0x48] sm:$0xff]
        %v1491 = vld [vmem:[#allocation3 + $0x50] sm:$0xff]
        %v1492 = vld [vmem:[#allocation3 + $0x58] sm:$0xff]
        %v1493 = vld [vmem:[#allocation3 + $0x60] sm:$0xff]
        %v1494 = vld [vmem:[#allocation3 + $0x68] sm:$0xff]
        %v1495 = vld [vmem:[#allocation3 + $0x70] sm:$0xff]
        %v1496 = vld [vmem:[#allocation3 + $0x78] sm:$0xff]
        %v1497 = vadd.f32 %v1465, %v1481
        %v1498 = vadd.f32 %v1466, %v1482
        %v1499 = vadd.f32 %v1467, %v1483
        %v1500 = vadd.f32 %v1468, %v1484
        %v1501 = vadd.f32 %v1469, %v1485
        %v1502 = vadd.f32 %v1470, %v1486
        %v1503 = vadd.f32 %v1471, %v1487
        %v1504 = vadd.f32 %v1472, %v1488
        %v1505 = vadd.f32 %v1473, %v1489
        %v1506 = vadd.f32 %v1474, %v1490
        %v1507 = vadd.f32 %v1475, %v1491
        %v1508 = vadd.f32 %v1476, %v1492
        %v1509 = vadd.f32 %v1477, %v1493
        %v1510 = vadd.f32 %v1478, %v1494
        %v1511 = vadd.f32 %v1479, %v1495
        %v1512 = vadd.f32 %v1480, %v1496
        %v1513 = vsel %vm1260, %v1497, -inf
        %1514 = vmax.xlane.f32.xlu0 %v1513
        %v1515 = vpop.xlane.xlu0 %1514
        %v1516 = vsel %vm1260, %v1498, -inf
        %1517 = vmax.xlane.f32.xlu0 %v1516
        %v1518 = vpop.xlane.xlu0 %1517
        %v1519 = vsel %vm1260, %v1499, -inf
        %1520 = vmax.xlane.f32.xlu0 %v1519
        %v1521 = vpop.xlane.xlu0 %1520
        %v1522 = vsel %vm1260, %v1500, -inf
        %1523 = vmax.xlane.f32.xlu0 %v1522
        %v1524 = vpop.xlane.xlu0 %1523
        %v1525 = vsel %vm1260, %v1501, -inf
        %1526 = vmax.xlane.f32.xlu0 %v1525
        %v1527 = vpop.xlane.xlu0 %1526
        %v1528 = vsel %vm1260, %v1502, -inf
        %1529 = vmax.xlane.f32.xlu0 %v1528
        %v1530 = vpop.xlane.xlu0 %1529
        %v1531 = vsel %vm1260, %v1503, -inf
        %1532 = vmax.xlane.f32.xlu0 %v1531
        %v1533 = vpop.xlane.xlu0 %1532
        %v1534 = vsel %vm1260, %v1504, -inf
        %1535 = vmax.xlane.f32.xlu0 %v1534
        %v1536 = vpop.xlane.xlu0 %1535
        %v1537 = vsel %vm1260, %v1505, -inf
        %1538 = vmax.xlane.f32.xlu0 %v1537
        %v1539 = vpop.xlane.xlu0 %1538
        %v1540 = vsel %vm1260, %v1506, -inf
        %1541 = vmax.xlane.f32.xlu0 %v1540
        %v1542 = vpop.xlane.xlu0 %1541
        %v1543 = vsel %vm1260, %v1507, -inf
        %1544 = vmax.xlane.f32.xlu0 %v1543
        %v1545 = vpop.xlane.xlu0 %1544
        %v1546 = vsel %vm1260, %v1508, -inf
        %1547 = vmax.xlane.f32.xlu0 %v1546
        %v1548 = vpop.xlane.xlu0 %1547
        %v1549 = vsel %vm1260, %v1509, -inf
        %1550 = vmax.xlane.f32.xlu0 %v1549
        %v1551 = vpop.xlane.xlu0 %1550
        %v1552 = vsel %vm1260, %v1510, -inf
        %1553 = vmax.xlane.f32.xlu0 %v1552
        %v1554 = vpop.xlane.xlu0 %1553
        %v1555 = vsel %vm1260, %v1511, -inf
        %1556 = vmax.xlane.f32.xlu0 %v1555
        %v1557 = vpop.xlane.xlu0 %1556
        %v1558 = vsel %vm1260, %v1512, -inf
        %1559 = vmax.xlane.f32.xlu0 %v1558
        %v1560 = vpop.xlane.xlu0 %1559
        %v1561 = vsub.f32 %v1497, %v1515
        %v1562 = vsub.f32 %v1498, %v1518
        %v1563 = vsub.f32 %v1499, %v1521
        %v1564 = vsub.f32 %v1500, %v1524
        %v1565 = vsub.f32 %v1501, %v1527
        %v1566 = vsub.f32 %v1502, %v1530
        %v1567 = vsub.f32 %v1503, %v1533
        %v1568 = vsub.f32 %v1504, %v1536
        %v1569 = vsub.f32 %v1505, %v1539
        %v1570 = vsub.f32 %v1506, %v1542
        %v1571 = vsub.f32 %v1507, %v1545
        %v1572 = vsub.f32 %v1508, %v1548
        %v1573 = vsub.f32 %v1509, %v1551
        %v1574 = vsub.f32 %v1510, %v1554
        %v1575 = vsub.f32 %v1511, %v1557
        %v1576 = vsub.f32 %v1512, %v1560
        %v1577 = vmul.f32 %v1561, 1.442695
        %v1578 = vpow.pop %v1577
        %v1579 = vmul.f32 %v1562, 1.442695
        %v1580 = vpow.pop %v1579
        %v1581 = vmul.f32 %v1563, 1.442695
        %v1582 = vpow.pop %v1581
        %v1583 = vmul.f32 %v1564, 1.442695
        %v1584 = vpow.pop %v1583
        %v1585 = vmul.f32 %v1565, 1.442695
        %v1586 = vpow.pop %v1585
        %v1587 = vmul.f32 %v1566, 1.442695
        %v1588 = vpow.pop %v1587
        %v1589 = vmul.f32 %v1567, 1.442695
        %v1590 = vpow.pop %v1589
        %v1591 = vmul.f32 %v1568, 1.442695
        %v1592 = vpow.pop %v1591
        %v1593 = vmul.f32 %v1569, 1.442695
        %v1594 = vpow.pop %v1593
        %v1595 = vmul.f32 %v1570, 1.442695
        %v1596 = vpow.pop %v1595
        %v1597 = vmul.f32 %v1571, 1.442695
        %v1598 = vpow.pop %v1597
        %v1599 = vmul.f32 %v1572, 1.442695
        %v1600 = vpow.pop %v1599
        %v1601 = vmul.f32 %v1573, 1.442695
        %v1602 = vpow.pop %v1601
        %v1603 = vmul.f32 %v1574, 1.442695
        %v1604 = vpow.pop %v1603
        %v1605 = vmul.f32 %v1575, 1.442695
        %v1606 = vpow.pop %v1605
        %v1607 = vmul.f32 %v1576, 1.442695
        %v1608 = vpow.pop %v1607
        %v1609 = vsel %vm1260, %v1578, 0.0
        %1610 = vadd.xlane.f32.xlu0 %v1609
        %v1611 = vpop.xlane.xlu0 %1610
        %v1612 = vsel %vm1260, %v1580, 0.0
        %1613 = vadd.xlane.f32.xlu0 %v1612
        %v1614 = vpop.xlane.xlu0 %1613
        %v1615 = vsel %vm1260, %v1582, 0.0
        %1616 = vadd.xlane.f32.xlu0 %v1615
        %v1617 = vpop.xlane.xlu0 %1616
        %v1618 = vsel %vm1260, %v1584, 0.0
        %1619 = vadd.xlane.f32.xlu0 %v1618
        %v1620 = vpop.xlane.xlu0 %1619
        %v1621 = vsel %vm1260, %v1586, 0.0
        %1622 = vadd.xlane.f32.xlu0 %v1621
        %v1623 = vpop.xlane.xlu0 %1622
        %v1624 = vsel %vm1260, %v1588, 0.0
        %1625 = vadd.xlane.f32.xlu0 %v1624
        %v1626 = vpop.xlane.xlu0 %1625
        %v1627 = vsel %vm1260, %v1590, 0.0
        %1628 = vadd.xlane.f32.xlu0 %v1627
        %v1629 = vpop.xlane.xlu0 %1628
        %v1630 = vsel %vm1260, %v1592, 0.0
        %1631 = vadd.xlane.f32.xlu0 %v1630
        %v1632 = vpop.xlane.xlu0 %1631
        %v1633 = vsel %vm1260, %v1594, 0.0
        %1634 = vadd.xlane.f32.xlu0 %v1633
        %v1635 = vpop.xlane.xlu0 %1634
        %v1636 = vsel %vm1260, %v1596, 0.0
        %1637 = vadd.xlane.f32.xlu0 %v1636
        %v1638 = vpop.xlane.xlu0 %1637
        %v1639 = vsel %vm1260, %v1598, 0.0
        %1640 = vadd.xlane.f32.xlu0 %v1639
        %v1641 = vpop.xlane.xlu0 %1640
        %v1642 = vsel %vm1260, %v1600, 0.0
        %1643 = vadd.xlane.f32.xlu0 %v1642
        %v1644 = vpop.xlane.xlu0 %1643
        %v1645 = vsel %vm1260, %v1602, 0.0
        %1646 = vadd.xlane.f32.xlu0 %v1645
        %v1647 = vpop.xlane.xlu0 %1646
        %v1648 = vsel %vm1260, %v1604, 0.0
        %1649 = vadd.xlane.f32.xlu0 %v1648
        %v1650 = vpop.xlane.xlu0 %1649
        %v1651 = vsel %vm1260, %v1606, 0.0
        %1652 = vadd.xlane.f32.xlu0 %v1651
        %v1653 = vpop.xlane.xlu0 %1652
        %v1654 = vsel %vm1260, %v1608, 0.0
        %1655 = vadd.xlane.f32.xlu0 %v1654
        %v1656 = vpop.xlane.xlu0 %1655
        %v1657 = vrcp.pop %v1611
        %v1658 = vrcp.pop %v1614
        %v1659 = vrcp.pop %v1617
        %v1660 = vrcp.pop %v1620
        %v1661 = vrcp.pop %v1623
        %v1662 = vrcp.pop %v1626
        %v1663 = vrcp.pop %v1629
        %v1664 = vrcp.pop %v1632
        %v1665 = vrcp.pop %v1635
        %v1666 = vrcp.pop %v1638
        %v1667 = vrcp.pop %v1641
        %v1668 = vrcp.pop %v1644
        %v1669 = vrcp.pop %v1647
        %v1670 = vrcp.pop %v1650
        %v1671 = vrcp.pop %v1653
        %v1672 = vrcp.pop %v1656
        %v1673 = vmul.f32 %v1578, %v1657
        %v1674 = vmul.f32 %v1580, %v1658
        %v1675 = vmul.f32 %v1582, %v1659
        %v1676 = vmul.f32 %v1584, %v1660
        %v1677 = vmul.f32 %v1586, %v1661
        %v1678 = vmul.f32 %v1588, %v1662
        %v1679 = vmul.f32 %v1590, %v1663
        %v1680 = vmul.f32 %v1592, %v1664
        %v1681 = vmul.f32 %v1594, %v1665
        %v1682 = vmul.f32 %v1596, %v1666
        %v1683 = vmul.f32 %v1598, %v1667
        %v1684 = vmul.f32 %v1600, %v1668
        %v1685 = vmul.f32 %v1602, %v1669
        %v1686 = vmul.f32 %v1604, %v1670
        %v1687 = vmul.f32 %v1606, %v1671
        %v1688 = vmul.f32 %v1608, %v1672
        %v1689 = vpack.c.bf16 %v1673, %v1673
        %v1690 = vpack.c.bf16 %v1674, %v1674
        %v1691 = vpack.c.bf16 %v1675, %v1675
        %v1692 = vpack.c.bf16 %v1676, %v1676
        %v1693 = vpack.c.bf16 %v1677, %v1677
        %v1694 = vpack.c.bf16 %v1678, %v1678
        %v1695 = vpack.c.bf16 %v1679, %v1679
        %v1696 = vpack.c.bf16 %v1680, %v1680
        %v1697 = vpack.c.bf16 %v1681, %v1681
        %v1698 = vpack.c.bf16 %v1682, %v1682
        %v1699 = vpack.c.bf16 %v1683, %v1683
        %v1700 = vpack.c.bf16 %v1684, %v1684
        %v1701 = vpack.c.bf16 %v1685, %v1685
        %v1702 = vpack.c.bf16 %v1686, %v1686
        %v1703 = vpack.c.bf16 %v1687, %v1687
        %v1704 = vpack.c.bf16 %v1688, %v1688
        %v1707 = vunpack.c.l.b16 %v1689
        %v1708 = vunpack.c.l.b16 %v1690
        %v1709 = vpack.c.b16 %v1708, %v1707
        %v1712 = vunpack.c.l.b16 %v1224
        %v1713 = vunpack.c.l.b16 %v1226
        %v1714 = vpack.c.b16 %v1713, %v1712
        %v1717 = vsel %vm1260, %v1709, 0
        %1719 = vmatpush.bf16.msra.mxu0 0
        %1720 = vmatpush.bf16.msra.mxu0 0
        %1721 = vmatpush.bf16.msra.mxu0 0
        %1722 = vmatpush.bf16.msra.mxu0 0
        %1723 = vmatpush.bf16.msra.mxu0 0
        %1724 = vmatpush.bf16.msra.mxu0 0
        %1725 = vmatpush.bf16.msra.mxu0 0
        %1726 = vmatpush.bf16.msra.mxu0 %v1714
        %1727 = vmatmul.bf16.gmra.mxu0 %v1717
        %v1728 = vpop.f32.mrf.mxu0
        %v1729 = vadd.f32 0.0, %v1728
        %v1730 = vpop.f32.mrf.mxu0
        %v1731 = vadd.f32 0.0, %v1730
        %1732 = vdwg.mxu0
        %1733 = vst.msk [vmem:[#allocation5] sm:$0xff] %vm1239, %v1729
        %1734 = vst.msk [vmem:[#allocation5 + $0x8] sm:$0xff] %vm1239, %v1731
        %v1737 = vunpack.c.l.b16 %v1691
        %v1738 = vunpack.c.l.b16 %v1692
        %v1739 = vpack.c.b16 %v1738, %v1737
        %1740 = vrot.lane.b32.xlu0 %v1714, 96
        %v1741 = vpop.permute.xlu0 %1740
        %v1744 = vsel %vm1260, %v1739, 0
        %1746 = vmatpush.bf16.msra.mxu0 0
        %1747 = vmatpush.bf16.msra.mxu0 0
        %1748 = vmatpush.bf16.msra.mxu0 0
        %1749 = vmatpush.bf16.msra.mxu0 0
        %1750 = vmatpush.bf16.msra.mxu0 0
        %1751 = vmatpush.bf16.msra.mxu0 0
        %1752 = vmatpush.bf16.msra.mxu0 0
        %1753 = vmatpush.bf16.msra.mxu0 %v1741
        %1754 = vmatmul.bf16.gmra.mxu0 %v1744
        %v1755 = vpop.f32.mrf.mxu0
        %v1756 = vadd.f32 0.0, %v1755
        %v1757 = vpop.f32.mrf.mxu0
        %v1758 = vadd.f32 0.0, %v1757
        %1759 = vdwg.mxu0
        %1762 = vrot.lane.b32.xlu0 %v1756, 32
        %v1763 = vpop.permute.xlu0 %1762
        %1764 = vrot.lane.b32.xlu0 %v1758, 32
        %v1765 = vpop.permute.xlu0 %1764
        %vm1768 = vcmask 523520
        %1769 = vst.msk [vmem:[#allocation5] sm:$0xff] %vm1768, %v1763
        %1770 = vst.msk [vmem:[#allocation5 + $0x8] sm:$0xff] %vm1768, %v1765
        %v1773 = vunpack.c.l.b16 %v1693
        %v1774 = vunpack.c.l.b16 %v1694
        %v1775 = vpack.c.b16 %v1774, %v1773
        %1776 = vrot.lane.b32.xlu0 %v1714, 64
        %v1777 = vpop.permute.xlu0 %1776
        %v1780 = vsel %vm1260, %v1775, 0
        %1782 = vmatpush.bf16.msra.mxu0 0
        %1783 = vmatpush.bf16.msra.mxu0 0
        %1784 = vmatpush.bf16.msra.mxu0 0
        %1785 = vmatpush.bf16.msra.mxu0 0
        %1786 = vmatpush.bf16.msra.mxu0 0
        %1787 = vmatpush.bf16.msra.mxu0 0
        %1788 = vmatpush.bf16.msra.mxu0 0
        %1789 = vmatpush.bf16.msra.mxu0 %v1777
        %1790 = vmatmul.bf16.gmra.mxu0 %v1780
        %v1791 = vpop.f32.mrf.mxu0
        %v1792 = vadd.f32 0.0, %v1791
        %v1793 = vpop.f32.mrf.mxu0
        %v1794 = vadd.f32 0.0, %v1793
        %1795 = vdwg.mxu0
        %1798 = vrot.lane.b32.xlu0 %v1792, 64
        %v1799 = vpop.permute.xlu0 %1798
        %1800 = vrot.lane.b32.xlu0 %v1794, 64
        %v1801 = vpop.permute.xlu0 %1800
        %vm1804 = vcmask 785920
        %1805 = vst.msk [vmem:[#allocation5] sm:$0xff] %vm1804, %v1799
        %1806 = vst.msk [vmem:[#allocation5 + $0x8] sm:$0xff] %vm1804, %v1801
        %v1809 = vunpack.c.l.b16 %v1695
        %v1810 = vunpack.c.l.b16 %v1696
        %v1811 = vpack.c.b16 %v1810, %v1809
        %1812 = vrot.lane.b32.xlu0 %v1714, 32
        %v1813 = vpop.permute.xlu0 %1812
        %v1816 = vsel %vm1260, %v1811, 0
        %1818 = vmatpush.bf16.msra.mxu0 0
        %1819 = vmatpush.bf16.msra.mxu0 0
        %1820 = vmatpush.bf16.msra.mxu0 0
        %1821 = vmatpush.bf16.msra.mxu0 0
        %1822 = vmatpush.bf16.msra.mxu0 0
        %1823 = vmatpush.bf16.msra.mxu0 0
        %1824 = vmatpush.bf16.msra.mxu0 0
        %1825 = vmatpush.bf16.msra.mxu0 %v1813
        %1826 = vmatmul.bf16.gmra.mxu0 %v1816
        %v1827 = vpop.f32.mrf.mxu0
        %v1828 = vadd.f32 0.0, %v1827
        %v1829 = vpop.f32.mrf.mxu0
        %v1830 = vadd.f32 0.0, %v1829
        %1831 = vdwg.mxu0
        %1834 = vrot.lane.b32.xlu0 %v1828, 96
        %v1835 = vpop.permute.xlu0 %1834
        %1836 = vrot.lane.b32.xlu0 %v1830, 96
        %v1837 = vpop.permute.xlu0 %1836
        %vm1840 = vcmask 1048320
        %1841 = vst.msk [vmem:[#allocation5] sm:$0xff] %vm1840, %v1835
        %1842 = vst.msk [vmem:[#allocation5 + $0x8] sm:$0xff] %vm1840, %v1837
        %v1845 = vunpack.c.l.b16 %v1697
        %v1846 = vunpack.c.l.b16 %v1698
        %v1847 = vpack.c.b16 %v1846, %v1845
        %v1850 = vunpack.c.l.b16 %v1228
        %v1851 = vunpack.c.l.b16 %v1230
        %v1852 = vpack.c.b16 %v1851, %v1850
        %v1855 = vsel %vm1260, %v1847, 0
        %1857 = vmatpush.bf16.msra.mxu0 0
        %1858 = vmatpush.bf16.msra.mxu0 0
        %1859 = vmatpush.bf16.msra.mxu0 0
        %1860 = vmatpush.bf16.msra.mxu0 0
        %1861 = vmatpush.bf16.msra.mxu0 0
        %1862 = vmatpush.bf16.msra.mxu0 0
        %1863 = vmatpush.bf16.msra.mxu0 0
        %1864 = vmatpush.bf16.msra.mxu0 %v1852
        %1865 = vmatmul.bf16.gmra.mxu0 %v1855
        %v1866 = vpop.f32.mrf.mxu0
        %v1867 = vadd.f32 0.0, %v1866
        %v1868 = vpop.f32.mrf.mxu0
        %v1869 = vadd.f32 0.0, %v1868
        %1870 = vdwg.mxu0
        %1871 = vst.msk [vmem:[#allocation5 + $0x10] sm:$0xff] %vm1239, %v1867
        %1872 = vst.msk [vmem:[#allocation5 + $0x18] sm:$0xff] %vm1239, %v1869
        %v1875 = vunpack.c.l.b16 %v1699
        %v1876 = vunpack.c.l.b16 %v1700
        %v1877 = vpack.c.b16 %v1876, %v1875
        %1878 = vrot.lane.b32.xlu0 %v1852, 96
        %v1879 = vpop.permute.xlu0 %1878
        %v1882 = vsel %vm1260, %v1877, 0
        %1884 = vmatpush.bf16.msra.mxu0 0
        %1885 = vmatpush.bf16.msra.mxu0 0
        %1886 = vmatpush.bf16.msra.mxu0 0
        %1887 = vmatpush.bf16.msra.mxu0 0
        %1888 = vmatpush.bf16.msra.mxu0 0
        %1889 = vmatpush.bf16.msra.mxu0 0
        %1890 = vmatpush.bf16.msra.mxu0 0
        %1891 = vmatpush.bf16.msra.mxu0 %v1879
        %1892 = vmatmul.bf16.gmra.mxu0 %v1882
        %v1893 = vpop.f32.mrf.mxu0
        %v1894 = vadd.f32 0.0, %v1893
        %v1895 = vpop.f32.mrf.mxu0
        %v1896 = vadd.f32 0.0, %v1895
        %1897 = vdwg.mxu0
        %1900 = vrot.lane.b32.xlu0 %v1894, 32
        %v1901 = vpop.permute.xlu0 %1900
        %1902 = vrot.lane.b32.xlu0 %v1896, 32
        %v1903 = vpop.permute.xlu0 %1902
        %1906 = vst.msk [vmem:[#allocation5 + $0x10] sm:$0xff] %vm1768, %v1901
        %1907 = vst.msk [vmem:[#allocation5 + $0x18] sm:$0xff] %vm1768, %v1903
        %v1910 = vunpack.c.l.b16 %v1701
        %v1911 = vunpack.c.l.b16 %v1702
        %v1912 = vpack.c.b16 %v1911, %v1910
        %1913 = vrot.lane.b32.xlu0 %v1852, 64
        %v1914 = vpop.permute.xlu0 %1913
        %v1917 = vsel %vm1260, %v1912, 0
        %1919 = vmatpush.bf16.msra.mxu0 0
        %1920 = vmatpush.bf16.msra.mxu0 0
        %1921 = vmatpush.bf16.msra.mxu0 0
        %1922 = vmatpush.bf16.msra.mxu0 0
        %1923 = vmatpush.bf16.msra.mxu0 0
        %1924 = vmatpush.bf16.msra.mxu0 0
        %1925 = vmatpush.bf16.msra.mxu0 0
        %1926 = vmatpush.bf16.msra.mxu0 %v1914
        %1927 = vmatmul.bf16.gmra.mxu0 %v1917
        %v1928 = vpop.f32.mrf.mxu0
        %v1929 = vadd.f32 0.0, %v1928
        %v1930 = vpop.f32.mrf.mxu0
        %v1931 = vadd.f32 0.0, %v1930
        %1932 = vdwg.mxu0
        %1935 = vrot.lane.b32.xlu0 %v1929, 64
        %v1936 = vpop.permute.xlu0 %1935
        %1937 = vrot.lane.b32.xlu0 %v1931, 64
        %v1938 = vpop.permute.xlu0 %1937
        %1941 = vst.msk [vmem:[#allocation5 + $0x10] sm:$0xff] %vm1804, %v1936
        %1942 = vst.msk [vmem:[#allocation5 + $0x18] sm:$0xff] %vm1804, %v1938
        %v1945 = vunpack.c.l.b16 %v1703
        %v1946 = vunpack.c.l.b16 %v1704
        %v1947 = vpack.c.b16 %v1946, %v1945
        %1948 = vrot.lane.b32.xlu0 %v1852, 32
        %v1949 = vpop.permute.xlu0 %1948
        %v1952 = vsel %vm1260, %v1947, 0
        %1954 = vmatpush.bf16.msra.mxu0 0
        %1955 = vmatpush.bf16.msra.mxu0 0
        %1956 = vmatpush.bf16.msra.mxu0 0
        %1957 = vmatpush.bf16.msra.mxu0 0
        %1958 = vmatpush.bf16.msra.mxu0 0
        %1959 = vmatpush.bf16.msra.mxu0 0
        %1960 = vmatpush.bf16.msra.mxu0 0
        %1961 = vmatpush.bf16.msra.mxu0 %v1949
        %1962 = vmatmul.bf16.gmra.mxu0 %v1952
        %v1963 = vpop.f32.mrf.mxu0
        %v1964 = vadd.f32 0.0, %v1963
        %v1965 = vpop.f32.mrf.mxu0
        %v1966 = vadd.f32 0.0, %v1965
        %1967 = vdwg.mxu0
        %1970 = vrot.lane.b32.xlu0 %v1964, 96
        %v1971 = vpop.permute.xlu0 %1970
        %1972 = vrot.lane.b32.xlu0 %v1966, 96
        %v1973 = vpop.permute.xlu0 %1972
        %1976 = vst.msk [vmem:[#allocation5 + $0x10] sm:$0xff] %vm1840, %v1971
        %1977 = vst.msk [vmem:[#allocation5 + $0x18] sm:$0xff] %vm1840, %v1973
        %v1978 = vld [vmem:[#allocation5] sm:$0xff]
        %v1979 = vld [vmem:[#allocation5 + $0x8] sm:$0xff]
        %v1980 = vld [vmem:[#allocation5 + $0x10] sm:$0xff]
        %v1981 = vld [vmem:[#allocation5 + $0x18] sm:$0xff]
        %v1982 = vpack.c.bf16 %v1979, %v1978
        %v1983 = vpack.c.bf16 %v1981, %v1980
        %v1984 = vld [vmem:[%s831] sm:$0xf]
        %v1985 = vld [vmem:[%s831 + $0x4] sm:$0xf]
        %v1986 = vld [vmem:[%s831 + $0x8] sm:$0xf]
        %v1987 = vld [vmem:[%s831 + $0xc] sm:$0xf]
        %v1988 = vld [vmem:[%s831 + $0x10] sm:$0xf]
        %v1989 = vld [vmem:[%s831 + $0x14] sm:$0xf]
        %v1990 = vld [vmem:[%s831 + $0x18] sm:$0xf]
        %v1991 = vld [vmem:[%s831 + $0x1c] sm:$0xf]
        %v1992 = vld [vmem:[%s831 + $0x20] sm:$0xf]
        %v1993 = vld [vmem:[%s831 + $0x24] sm:$0xf]
        %v1994 = vld [vmem:[%s831 + $0x28] sm:$0xf]
        %v1995 = vld [vmem:[%s831 + $0x2c] sm:$0xf]
        %v1996 = vld [vmem:[%s831 + $0x30] sm:$0xf]
        %v1997 = vld [vmem:[%s831 + $0x34] sm:$0xf]
        %v1998 = vld [vmem:[%s831 + $0x38] sm:$0xf]
        %v1999 = vld [vmem:[%s831 + $0x3c] sm:$0xf]
        %v2000 = vld [vmem:[%s834] sm:$0x1]
        %v2002 = vperm.slane %v2000, 0
        %v2020 = vunpack.c.l.b16 %v1984
        %v2021 = vunpack.c.l.b16 %v1985
        %v2022 = vunpack.c.l.b16 %v1986
        %v2023 = vunpack.c.l.b16 %v1987
        %v2024 = vunpack.c.l.b16 %v1988
        %v2025 = vunpack.c.l.b16 %v1989
        %v2026 = vunpack.c.l.b16 %v1990
        %v2027 = vunpack.c.l.b16 %v1991
        %v2028 = vunpack.c.l.b16 %v1992
        %v2029 = vunpack.c.l.b16 %v1993
        %v2030 = vunpack.c.l.b16 %v1994
        %v2031 = vunpack.c.l.b16 %v1995
        %v2032 = vunpack.c.l.b16 %v1996
        %v2033 = vunpack.c.l.b16 %v1997
        %v2034 = vunpack.c.l.b16 %v1998
        %v2035 = vunpack.c.l.b16 %v1999
        %v2036 = vpack.c.b16 %v2021, %v2020
        %v2037 = vpack.c.b16 %v2023, %v2022
        %v2038 = vpack.c.b16 %v2025, %v2024
        %v2039 = vpack.c.b16 %v2027, %v2026
        %v2040 = vpack.c.b16 %v2029, %v2028
        %v2041 = vpack.c.b16 %v2031, %v2030
        %v2042 = vpack.c.b16 %v2033, %v2032
        %v2043 = vpack.c.b16 %v2035, %v2034
        %2052 = vmatpush.bf16.msra.mxu0 %v2043
        %2053 = vmatpush.bf16.msra.mxu0 %v2042
        %2054 = vmatpush.bf16.msra.mxu0 %v2041
        %2055 = vmatpush.bf16.msra.mxu0 %v2040
        %2056 = vmatpush.bf16.msra.mxu0 %v2039
        %2057 = vmatpush.bf16.msra.mxu0 %v2038
        %2058 = vmatpush.bf16.msra.mxu0 %v2037
        %2059 = vmatpush.bf16.msra.mxu0 %v2036
        %2060 = vmatmul.bf16.gmra.mxu0 %v1982
        %v2061 = vpop.f32.mrf.mxu0
        %v2062 = vadd.f32 %v2002, %v2061
        %v2063 = vpop.f32.mrf.mxu0
        %v2064 = vadd.f32 %v2002, %v2063
        %2065 = vmatmul.bf16.gmra.mxu0 %v1983
        %v2066 = vpop.f32.mrf.mxu0
        %v2067 = vadd.f32 %v2002, %v2066
        %v2068 = vpop.f32.mrf.mxu0
        %v2069 = vadd.f32 %v2002, %v2068
        %2070 = vdwg.mxu0
        %v2071 = vadd.f32 %v992, %v2062
        %v2072 = vadd.f32 %v993, %v2064
        %v2073 = vadd.f32 %v994, %v2067
        %v2074 = vadd.f32 %v995, %v2069
        %v2075 = vld [vmem:[%s837] sm:$0x1]
        %v2076 = vld [vmem:[%s840] sm:$0x1]
        %2077 = vadd.xlane.f32.xlu0 %v2071
        %v2078 = vpop.xlane.xlu0 %2077
        %2079 = vadd.xlane.f32.xlu0 %v2072
        %v2080 = vpop.xlane.xlu0 %2079
        %2081 = vadd.xlane.f32.xlu0 %v2073
        %v2082 = vpop.xlane.xlu0 %2081
        %2083 = vadd.xlane.f32.xlu0 %v2074
        %v2084 = vpop.xlane.xlu0 %2083
        %v2085 = vrcp.pop 128.0
        %v2086 = vmul.f32 128.0, %v2085
        %v2087 = vsub.f32 1.0, %v2086
        %v2088 = vmul.f32 %v2085, %v2087
        %v2089 = vadd.f32 %v2085, %v2088
        %vm2090 = vweird.f32 %v2085
        %v2091 = vsel %vm2090, %v2085, %v2089
        %v2092 = vmul.f32 %v2078, %v2091
        %v2093 = vmul.f32 %v2080, %v2091
        %v2094 = vmul.f32 %v2082, %v2091
        %v2095 = vmul.f32 %v2084, %v2091
        %v2096 = vsub.f32 %v2071, %v2092
        %v2097 = vsub.f32 %v2072, %v2093
        %v2098 = vsub.f32 %v2073, %v2094
        %v2099 = vsub.f32 %v2074, %v2095
        %v2100 = vmul.f32 %v2096, %v2096
        %v2101 = vmul.f32 %v2097, %v2097
        %v2102 = vmul.f32 %v2098, %v2098
        %v2103 = vmul.f32 %v2099, %v2099
        %2104 = vadd.xlane.f32.xlu0 %v2100
        %v2105 = vpop.xlane.xlu0 %2104
        %2106 = vadd.xlane.f32.xlu0 %v2101
        %v2107 = vpop.xlane.xlu0 %2106
        %2108 = vadd.xlane.f32.xlu0 %v2102
        %v2109 = vpop.xlane.xlu0 %2108
        %2110 = vadd.xlane.f32.xlu0 %v2103
        %v2111 = vpop.xlane.xlu0 %2110
        %v2112 = vmul.f32 %v2105, %v2091
        %v2113 = vmul.f32 %v2107, %v2091
        %v2114 = vmul.f32 %v2109, %v2091
        %v2115 = vmul.f32 %v2111, %v2091
        %v2116 = vadd.f32 %v2112, 1e-12
        %v2117 = vadd.f32 %v2113, 1e-12
        %v2118 = vadd.f32 %v2114, 1e-12
        %v2119 = vadd.f32 %v2115, 1e-12
        %v2120 = vrsqrt.pop %v2116
        %v2121 = vmul.f32 %v2120, %v2116
        %v2122 = vmul.f32 %v2121, %v2120
        %v2123 = vmul.f32 0.5, %v2122
        %v2124 = vsub.f32 1.5, %v2123
        %v2125 = vmul.f32 %v2120, %v2124
        %vm2126 = vweird.f32 %v2116
        %vm2127 = vweird.f32 %v2120
        %vm2128 = vmor %vm2126, %vm2127
        %v2129 = vsel %vm2128, %v2120, %v2125
        %v2130 = vrsqrt.pop %v2117
        %v2131 = vmul.f32 %v2130, %v2117
        %v2132 = vmul.f32 %v2131, %v2130
        %v2133 = vmul.f32 0.5, %v2132
        %v2134 = vsub.f32 1.5, %v2133
        %v2135 = vmul.f32 %v2130, %v2134
        %vm2136 = vweird.f32 %v2117
        %vm2137 = vweird.f32 %v2130
        %vm2138 = vmor %vm2136, %vm2137
        %v2139 = vsel %vm2138, %v2130, %v2135
        %v2140 = vrsqrt.pop %v2118
        %v2141 = vmul.f32 %v2140, %v2118
        %v2142 = vmul.f32 %v2141, %v2140
        %v2143 = vmul.f32 0.5, %v2142
        %v2144 = vsub.f32 1.5, %v2143
        %v2145 = vmul.f32 %v2140, %v2144
        %vm2146 = vweird.f32 %v2118
        %vm2147 = vweird.f32 %v2140
        %vm2148 = vmor %vm2146, %vm2147
        %v2149 = vsel %vm2148, %v2140, %v2145
        %v2150 = vrsqrt.pop %v2119
        %v2151 = vmul.f32 %v2150, %v2119
        %v2152 = vmul.f32 %v2151, %v2150
        %v2153 = vmul.f32 0.5, %v2152
        %v2154 = vsub.f32 1.5, %v2153
        %v2155 = vmul.f32 %v2150, %v2154
        %vm2156 = vweird.f32 %v2119
        %vm2157 = vweird.f32 %v2150
        %vm2158 = vmor %vm2156, %vm2157
        %v2159 = vsel %vm2158, %v2150, %v2155
        %v2160 = vmul.f32 %v2096, %v2129
        %v2161 = vmul.f32 %v2097, %v2139
        %v2162 = vmul.f32 %v2098, %v2149
        %v2163 = vmul.f32 %v2099, %v2159
        %v2165 = vperm.slane %v2075, 0
        %v2167 = vmul.f32 %v2160, %v2165
        %v2168 = vmul.f32 %v2161, %v2165
        %v2169 = vmul.f32 %v2162, %v2165
        %v2170 = vmul.f32 %v2163, %v2165
        %v2172 = vperm.slane %v2076, 0
        %v2174 = vadd.f32 %v2167, %v2172
        %v2175 = vadd.f32 %v2168, %v2172
        %v2176 = vadd.f32 %v2169, %v2172
        %v2177 = vadd.f32 %v2170, %v2172
        %v2178 = vpack.c.bf16 %v2175, %v2174
        %v2179 = vpack.c.bf16 %v2177, %v2176
        %v2180 = vld [vmem:[%s709] sm:$0xff]
        %v2181 = vld [vmem:[%s709 + $0x8] sm:$0xff]
        %v2182 = vld [vmem:[%s709 + $0x10] sm:$0xff]
        %v2183 = vld [vmem:[%s709 + $0x18] sm:$0xff]
        %v2184 = vld [vmem:[%s709 + $0x20] sm:$0xff]
        %v2185 = vld [vmem:[%s709 + $0x28] sm:$0xff]
        %v2186 = vld [vmem:[%s709 + $0x30] sm:$0xff]
        %v2187 = vld [vmem:[%s709 + $0x38] sm:$0xff]
        %v2188 = vld [vmem:[%s709 + $0x40] sm:$0xff]
        %v2189 = vld [vmem:[%s709 + $0x48] sm:$0xff]
        %v2190 = vld [vmem:[%s709 + $0x50] sm:$0xff]
        %v2191 = vld [vmem:[%s709 + $0x58] sm:$0xff]
        %v2192 = vld [vmem:[%s709 + $0x60] sm:$0xff]
        %v2193 = vld [vmem:[%s709 + $0x68] sm:$0xff]
        %v2194 = vld [vmem:[%s709 + $0x70] sm:$0xff]
        %v2195 = vld [vmem:[%s709 + $0x78] sm:$0xff]
        %v2196 = vld [vmem:[%s844] sm:$0x3]
        %v2198 = vperm.slane %v2196, 0
        %v2199 = vperm.slane %v2196, 1
        %v2218 = vunpack.c.l.b16 %v2180
        %v2219 = vunpack.c.h.b16 %v2180
        %v2220 = vunpack.c.l.b16 %v2181
        %v2221 = vunpack.c.h.b16 %v2181
        %v2222 = vunpack.c.l.b16 %v2182
        %v2223 = vunpack.c.h.b16 %v2182
        %v2224 = vunpack.c.l.b16 %v2183
        %v2225 = vunpack.c.h.b16 %v2183
        %v2226 = vunpack.c.l.b16 %v2184
        %v2227 = vunpack.c.h.b16 %v2184
        %v2228 = vunpack.c.l.b16 %v2185
        %v2229 = vunpack.c.h.b16 %v2185
        %v2230 = vunpack.c.l.b16 %v2186
        %v2231 = vunpack.c.h.b16 %v2186
        %v2232 = vunpack.c.l.b16 %v2187
        %v2233 = vunpack.c.h.b16 %v2187
        %v2234 = vunpack.c.l.b16 %v2188
        %v2235 = vunpack.c.h.b16 %v2188
        %v2236 = vunpack.c.l.b16 %v2189
        %v2237 = vunpack.c.h.b16 %v2189
        %v2238 = vunpack.c.l.b16 %v2190
        %v2239 = vunpack.c.h.b16 %v2190
        %v2240 = vunpack.c.l.b16 %v2191
        %v2241 = vunpack.c.h.b16 %v2191
        %v2242 = vunpack.c.l.b16 %v2192
        %v2243 = vunpack.c.h.b16 %v2192
        %v2244 = vunpack.c.l.b16 %v2193
        %v2245 = vunpack.c.h.b16 %v2193
        %v2246 = vunpack.c.l.b16 %v2194
        %v2247 = vunpack.c.h.b16 %v2194
        %v2248 = vunpack.c.l.b16 %v2195
        %v2249 = vunpack.c.h.b16 %v2195
        %v2250 = vpack.c.b16 %v2220, %v2218
        %v2251 = vpack.c.b16 %v2221, %v2219
        %v2252 = vpack.c.b16 %v2224, %v2222
        %v2253 = vpack.c.b16 %v2225, %v2223
        %v2254 = vpack.c.b16 %v2228, %v2226
        %v2255 = vpack.c.b16 %v2229, %v2227
        %v2256 = vpack.c.b16 %v2232, %v2230
        %v2257 = vpack.c.b16 %v2233, %v2231
        %v2258 = vpack.c.b16 %v2236, %v2234
        %v2259 = vpack.c.b16 %v2237, %v2235
        %v2260 = vpack.c.b16 %v2240, %v2238
        %v2261 = vpack.c.b16 %v2241, %v2239
        %v2262 = vpack.c.b16 %v2244, %v2242
        %v2263 = vpack.c.b16 %v2245, %v2243
        %v2264 = vpack.c.b16 %v2248, %v2246
        %v2265 = vpack.c.b16 %v2249, %v2247
        %2282 = vmatpush.bf16.msra.mxu0 %v2264
        %2283 = vmatpush.bf16.msra.mxu0 %v2262
        %2284 = vmatpush.bf16.msra.mxu0 %v2260
        %2285 = vmatpush.bf16.msra.mxu0 %v2258
        %2286 = vmatpush.bf16.msra.mxu0 %v2256
        %2287 = vmatpush.bf16.msra.mxu0 %v2254
        %2288 = vmatpush.bf16.msra.mxu0 %v2252
        %2289 = vmatpush.bf16.msra.mxu0 %v2250
        %2290 = vmatmul.bf16.gmra.mxu0 %v2178
        %v2291 = vpop.f32.mrf.mxu0
        %v2292 = vadd.f32 %v2198, %v2291
        %v2293 = vpop.f32.mrf.mxu0
        %v2294 = vadd.f32 %v2198, %v2293
        %2295 = vmatmul.bf16.gmra.mxu0 %v2179
        %v2296 = vpop.f32.mrf.mxu0
        %v2297 = vadd.f32 %v2198, %v2296
        %v2298 = vpop.f32.mrf.mxu0
        %v2299 = vadd.f32 %v2198, %v2298
        %2300 = vdwg.mxu0
        %2301 = vmatpush.bf16.msra.mxu0 %v2265
        %2302 = vmatpush.bf16.msra.mxu0 %v2263
        %2303 = vmatpush.bf16.msra.mxu0 %v2261
        %2304 = vmatpush.bf16.msra.mxu0 %v2259
        %2305 = vmatpush.bf16.msra.mxu0 %v2257
        %2306 = vmatpush.bf16.msra.mxu0 %v2255
        %2307 = vmatpush.bf16.msra.mxu0 %v2253
        %2308 = vmatpush.bf16.msra.mxu0 %v2251
        %2309 = vmatmul.bf16.gmra.mxu0 %v2178
        %v2310 = vpop.f32.mrf.mxu0
        %v2311 = vadd.f32 %v2199, %v2310
        %v2312 = vpop.f32.mrf.mxu0
        %v2313 = vadd.f32 %v2199, %v2312
        %2314 = vmatmul.bf16.gmra.mxu0 %v2179
        %v2315 = vpop.f32.mrf.mxu0
        %v2316 = vadd.f32 %v2199, %v2315
        %v2317 = vpop.f32.mrf.mxu0
        %v2318 = vadd.f32 %v2199, %v2317
        %2319 = vdwg.mxu0
        %v2320 = vmul.f32 %v2292, 0.5
        %v2321 = vmul.f32 %v2311, 0.5
        %v2322 = vmul.f32 %v2294, 0.5
        %v2323 = vmul.f32 %v2313, 0.5
        %v2324 = vmul.f32 %v2297, 0.5
        %v2325 = vmul.f32 %v2316, 0.5
        %v2326 = vmul.f32 %v2299, 0.5
        %v2327 = vmul.f32 %v2318, 0.5
        %v2328 = vmul.f32 %v2292, 0.044715
        %v2329 = vmul.f32 %v2311, 0.044715
        %v2330 = vmul.f32 %v2294, 0.044715
        %v2331 = vmul.f32 %v2313, 0.044715
        %v2332 = vmul.f32 %v2297, 0.044715
        %v2333 = vmul.f32 %v2316, 0.044715
        %v2334 = vmul.f32 %v2299, 0.044715
        %v2335 = vmul.f32 %v2318, 0.044715
        %v2336 = vmul.f32 %v2328, %v2292
        %v2337 = vmul.f32 %v2329, %v2311
        %v2338 = vmul.f32 %v2330, %v2294
        %v2339 = vmul.f32 %v2331, %v2313
        %v2340 = vmul.f32 %v2332, %v2297
        %v2341 = vmul.f32 %v2333, %v2316
        %v2342 = vmul.f32 %v2334, %v2299
        %v2343 = vmul.f32 %v2335, %v2318
        %v2344 = vmul.f32 %v2336, %v2292
        %v2345 = vmul.f32 %v2337, %v2311
        %v2346 = vmul.f32 %v2338, %v2294
        %v2347 = vmul.f32 %v2339, %v2313
        %v2348 = vmul.f32 %v2340, %v2297
        %v2349 = vmul.f32 %v2341, %v2316
        %v2350 = vmul.f32 %v2342, %v2299
        %v2351 = vmul.f32 %v2343, %v2318
        %v2352 = vadd.f32 %v2292, %v2344
        %v2353 = vadd.f32 %v2311, %v2345
        %v2354 = vadd.f32 %v2294, %v2346
        %v2355 = vadd.f32 %v2313, %v2347
        %v2356 = vadd.f32 %v2297, %v2348
        %v2357 = vadd.f32 %v2316, %v2349
        %v2358 = vadd.f32 %v2299, %v2350
        %v2359 = vadd.f32 %v2318, %v2351
        %v2360 = vmul.f32 %v2352, 0.7978846
        %v2361 = vmul.f32 %v2353, 0.7978846
        %v2362 = vmul.f32 %v2354, 0.7978846
        %v2363 = vmul.f32 %v2355, 0.7978846
        %v2364 = vmul.f32 %v2356, 0.7978846
        %v2365 = vmul.f32 %v2357, 0.7978846
        %v2366 = vmul.f32 %v2358, 0.7978846
        %v2367 = vmul.f32 %v2359, 0.7978846
        %v2368 = vtanh.pop %v2360
        %v2369 = vtanh.pop %v2361
        %v2370 = vtanh.pop %v2362
        %v2371 = vtanh.pop %v2363
        %v2372 = vtanh.pop %v2364
        %v2373 = vtanh.pop %v2365
        %v2374 = vtanh.pop %v2366
        %v2375 = vtanh.pop %v2367
        %v2376 = vadd.f32 %v2368, 1.0
        %v2377 = vadd.f32 %v2369, 1.0
        %v2378 = vadd.f32 %v2370, 1.0
        %v2379 = vadd.f32 %v2371, 1.0
        %v2380 = vadd.f32 %v2372, 1.0
        %v2381 = vadd.f32 %v2373, 1.0
        %v2382 = vadd.f32 %v2374, 1.0
        %v2383 = vadd.f32 %v2375, 1.0
        %v2384 = vmul.f32 %v2320, %v2376
        %v2385 = vmul.f32 %v2321, %v2377
        %v2386 = vmul.f32 %v2322, %v2378
        %v2387 = vmul.f32 %v2323, %v2379
        %v2388 = vmul.f32 %v2324, %v2380
        %v2389 = vmul.f32 %v2325, %v2381
        %v2390 = vmul.f32 %v2326, %v2382
        %v2391 = vmul.f32 %v2327, %v2383
        %v2392 = vpack.c.bf16 %v2386, %v2384
        %v2393 = vpack.c.bf16 %v2387, %v2385
        %v2394 = vpack.c.bf16 %v2390, %v2388
        %v2395 = vpack.c.bf16 %v2391, %v2389
        %v2396 = vld [vmem:[%s719] sm:$0xf]
        %v2397 = vld [vmem:[%s719 + $0x4] sm:$0xf]
        %v2398 = vld [vmem:[%s719 + $0x8] sm:$0xf]
        %v2399 = vld [vmem:[%s719 + $0xc] sm:$0xf]
        %v2400 = vld [vmem:[%s719 + $0x10] sm:$0xf]
        %v2401 = vld [vmem:[%s719 + $0x14] sm:$0xf]
        %v2402 = vld [vmem:[%s719 + $0x18] sm:$0xf]
        %v2403 = vld [vmem:[%s719 + $0x1c] sm:$0xf]
        %v2404 = vld [vmem:[%s719 + $0x20] sm:$0xf]
        %v2405 = vld [vmem:[%s719 + $0x24] sm:$0xf]
        %v2406 = vld [vmem:[%s719 + $0x28] sm:$0xf]
        %v2407 = vld [vmem:[%s719 + $0x2c] sm:$0xf]
        %v2408 = vld [vmem:[%s719 + $0x30] sm:$0xf]
        %v2409 = vld [vmem:[%s719 + $0x34] sm:$0xf]
        %v2410 = vld [vmem:[%s719 + $0x38] sm:$0xf]
        %v2411 = vld [vmem:[%s719 + $0x3c] sm:$0xf]
        %v2412 = vld [vmem:[%s719 + $0x40] sm:$0xf]
        %v2413 = vld [vmem:[%s719 + $0x44] sm:$0xf]
        %v2414 = vld [vmem:[%s719 + $0x48] sm:$0xf]
        %v2415 = vld [vmem:[%s719 + $0x4c] sm:$0xf]
        %v2416 = vld [vmem:[%s719 + $0x50] sm:$0xf]
        %v2417 = vld [vmem:[%s719 + $0x54] sm:$0xf]
        %v2418 = vld [vmem:[%s719 + $0x58] sm:$0xf]
        %v2419 = vld [vmem:[%s719 + $0x5c] sm:$0xf]
        %v2420 = vld [vmem:[%s719 + $0x60] sm:$0xf]
        %v2421 = vld [vmem:[%s719 + $0x64] sm:$0xf]
        %v2422 = vld [vmem:[%s719 + $0x68] sm:$0xf]
        %v2423 = vld [vmem:[%s719 + $0x6c] sm:$0xf]
        %v2424 = vld [vmem:[%s719 + $0x70] sm:$0xf]
        %v2425 = vld [vmem:[%s719 + $0x74] sm:$0xf]
        %v2426 = vld [vmem:[%s719 + $0x78] sm:$0xf]
        %v2427 = vld [vmem:[%s719 + $0x7c] sm:$0xf]
        %v2428 = vld [vmem:[%s847] sm:$0x1]
        %v2430 = vperm.slane %v2428, 0
        %v2464 = vunpack.c.l.b16 %v2396
        %v2465 = vunpack.c.l.b16 %v2397
        %v2466 = vunpack.c.l.b16 %v2398
        %v2467 = vunpack.c.l.b16 %v2399
        %v2468 = vunpack.c.l.b16 %v2400
        %v2469 = vunpack.c.l.b16 %v2401
        %v2470 = vunpack.c.l.b16 %v2402
        %v2471 = vunpack.c.l.b16 %v2403
        %v2472 = vunpack.c.l.b16 %v2404
        %v2473 = vunpack.c.l.b16 %v2405
        %v2474 = vunpack.c.l.b16 %v2406
        %v2475 = vunpack.c.l.b16 %v2407
        %v2476 = vunpack.c.l.b16 %v2408
        %v2477 = vunpack.c.l.b16 %v2409
        %v2478 = vunpack.c.l.b16 %v2410
        %v2479 = vunpack.c.l.b16 %v2411
        %v2480 = vunpack.c.l.b16 %v2412
        %v2481 = vunpack.c.l.b16 %v2413
        %v2482 = vunpack.c.l.b16 %v2414
        %v2483 = vunpack.c.l.b16 %v2415
        %v2484 = vunpack.c.l.b16 %v2416
        %v2485 = vunpack.c.l.b16 %v2417
        %v2486 = vunpack.c.l.b16 %v2418
        %v2487 = vunpack.c.l.b16 %v2419
        %v2488 = vunpack.c.l.b16 %v2420
        %v2489 = vunpack.c.l.b16 %v2421
        %v2490 = vunpack.c.l.b16 %v2422
        %v2491 = vunpack.c.l.b16 %v2423
        %v2492 = vunpack.c.l.b16 %v2424
        %v2493 = vunpack.c.l.b16 %v2425
        %v2494 = vunpack.c.l.b16 %v2426
        %v2495 = vunpack.c.l.b16 %v2427
        %v2496 = vpack.c.b16 %v2465, %v2464
        %v2497 = vpack.c.b16 %v2467, %v2466
        %v2498 = vpack.c.b16 %v2469, %v2468
        %v2499 = vpack.c.b16 %v2471, %v2470
        %v2500 = vpack.c.b16 %v2473, %v2472
        %v2501 = vpack.c.b16 %v2475, %v2474
        %v2502 = vpack.c.b16 %v2477, %v2476
        %v2503 = vpack.c.b16 %v2479, %v2478
        %v2504 = vpack.c.b16 %v2481, %v2480
        %v2505 = vpack.c.b16 %v2483, %v2482
        %v2506 = vpack.c.b16 %v2485, %v2484
        %v2507 = vpack.c.b16 %v2487, %v2486
        %v2508 = vpack.c.b16 %v2489, %v2488
        %v2509 = vpack.c.b16 %v2491, %v2490
        %v2510 = vpack.c.b16 %v2493, %v2492
        %v2511 = vpack.c.b16 %v2495, %v2494
        %2528 = vmatpush.bf16.msra.mxu0 %v2503
        %2529 = vmatpush.bf16.msra.mxu0 %v2502
        %2530 = vmatpush.bf16.msra.mxu0 %v2501
        %2531 = vmatpush.bf16.msra.mxu0 %v2500
        %2532 = vmatpush.bf16.msra.mxu0 %v2499
        %2533 = vmatpush.bf16.msra.mxu0 %v2498
        %2534 = vmatpush.bf16.msra.mxu0 %v2497
        %2535 = vmatpush.bf16.msra.mxu0 %v2496
        %2536 = vmatmul.bf16.gmra.mxu0 %v2392
        %v2537 = vpop.f32.mrf.mxu0
        %v2538 = vadd.f32 %v2430, %v2537
        %v2539 = vpop.f32.mrf.mxu0
        %v2540 = vadd.f32 %v2430, %v2539
        %2541 = vmatmul.bf16.gmra.mxu0 %v2394
        %v2542 = vpop.f32.mrf.mxu0
        %v2543 = vadd.f32 %v2430, %v2542
        %v2544 = vpop.f32.mrf.mxu0
        %v2545 = vadd.f32 %v2430, %v2544
        %2546 = vdwg.mxu0
        %2547 = vmatpush.bf16.msra.mxu0 %v2511
        %2548 = vmatpush.bf16.msra.mxu0 %v2510
        %2549 = vmatpush.bf16.msra.mxu0 %v2509
        %2550 = vmatpush.bf16.msra.mxu0 %v2508
        %2551 = vmatpush.bf16.msra.mxu0 %v2507
        %2552 = vmatpush.bf16.msra.mxu0 %v2506
        %2553 = vmatpush.bf16.msra.mxu0 %v2505
        %2554 = vmatpush.bf16.msra.mxu0 %v2504
        %2555 = vmatmul.bf16.gmra.mxu0 %v2393
        %v2556 = vpop.f32.mrf.mxu0
        %v2557 = vadd.f32 %v2538, %v2556
        %v2558 = vpop.f32.mrf.mxu0
        %v2559 = vadd.f32 %v2540, %v2558
        %2560 = vmatmul.bf16.gmra.mxu0 %v2395
        %v2561 = vpop.f32.mrf.mxu0
        %v2562 = vadd.f32 %v2543, %v2561
        %v2563 = vpop.f32.mrf.mxu0
        %v2564 = vadd.f32 %v2545, %v2563
        %2565 = vdwg.mxu0
        %v2566 = vadd.f32 %v2174, %v2557
        %v2567 = vadd.f32 %v2175, %v2559
        %v2568 = vadd.f32 %v2176, %v2562
        %v2569 = vadd.f32 %v2177, %v2564
        %v2570 = vld [vmem:[%s850] sm:$0x1]
        %v2571 = vld [vmem:[%s853] sm:$0x1]
        %2572 = vadd.xlane.f32.xlu0 %v2566
        %v2573 = vpop.xlane.xlu0 %2572
        %2574 = vadd.xlane.f32.xlu0 %v2567
        %v2575 = vpop.xlane.xlu0 %2574
        %2576 = vadd.xlane.f32.xlu0 %v2568
        %v2577 = vpop.xlane.xlu0 %2576
        %2578 = vadd.xlane.f32.xlu0 %v2569
        %v2579 = vpop.xlane.xlu0 %2578
        %v2580 = vmul.f32 %v2573, %v2091
        %v2581 = vmul.f32 %v2575, %v2091
        %v2582 = vmul.f32 %v2577, %v2091
        %v2583 = vmul.f32 %v2579, %v2091
        %v2584 = vsub.f32 %v2566, %v2580
        %v2585 = vsub.f32 %v2567, %v2581
        %v2586 = vsub.f32 %v2568, %v2582
        %v2587 = vsub.f32 %v2569, %v2583
        %v2588 = vmul.f32 %v2584, %v2584
        %v2589 = vmul.f32 %v2585, %v2585
        %v2590 = vmul.f32 %v2586, %v2586
        %v2591 = vmul.f32 %v2587, %v2587
        %2592 = vadd.xlane.f32.xlu0 %v2588
        %v2593 = vpop.xlane.xlu0 %2592
        %2594 = vadd.xlane.f32.xlu0 %v2589
        %v2595 = vpop.xlane.xlu0 %2594
        %2596 = vadd.xlane.f32.xlu0 %v2590
        %v2597 = vpop.xlane.xlu0 %2596
        %2598 = vadd.xlane.f32.xlu0 %v2591
        %v2599 = vpop.xlane.xlu0 %2598
        %v2600 = vmul.f32 %v2593, %v2091
        %v2601 = vmul.f32 %v2595, %v2091
        %v2602 = vmul.f32 %v2597, %v2091
        %v2603 = vmul.f32 %v2599, %v2091
        %v2604 = vadd.f32 %v2600, 1e-12
        %v2605 = vadd.f32 %v2601, 1e-12
        %v2606 = vadd.f32 %v2602, 1e-12
        %v2607 = vadd.f32 %v2603, 1e-12
        %v2608 = vrsqrt.pop %v2604
        %v2609 = vmul.f32 %v2608, %v2604
        %v2610 = vmul.f32 %v2609, %v2608
        %v2611 = vmul.f32 0.5, %v2610
        %v2612 = vsub.f32 1.5, %v2611
        %v2613 = vmul.f32 %v2608, %v2612
        %vm2614 = vweird.f32 %v2604
        %vm2615 = vweird.f32 %v2608
        %vm2616 = vmor %vm2614, %vm2615
        %v2617 = vsel %vm2616, %v2608, %v2613
        %v2618 = vrsqrt.pop %v2605
        %v2619 = vmul.f32 %v2618, %v2605
        %v2620 = vmul.f32 %v2619, %v2618
        %v2621 = vmul.f32 0.5, %v2620
        %v2622 = vsub.f32 1.5, %v2621
        %v2623 = vmul.f32 %v2618, %v2622
        %vm2624 = vweird.f32 %v2605
        %vm2625 = vweird.f32 %v2618
        %vm2626 = vmor %vm2624, %vm2625
        %v2627 = vsel %vm2626, %v2618, %v2623
        %v2628 = vrsqrt.pop %v2606
        %v2629 = vmul.f32 %v2628, %v2606
        %v2630 = vmul.f32 %v2629, %v2628
        %v2631 = vmul.f32 0.5, %v2630
        %v2632 = vsub.f32 1.5, %v2631
        %v2633 = vmul.f32 %v2628, %v2632
        %vm2634 = vweird.f32 %v2606
        %vm2635 = vweird.f32 %v2628
        %vm2636 = vmor %vm2634, %vm2635
        %v2637 = vsel %vm2636, %v2628, %v2633
        %v2638 = vrsqrt.pop %v2607
        %v2639 = vmul.f32 %v2638, %v2607
        %v2640 = vmul.f32 %v2639, %v2638
        %v2641 = vmul.f32 0.5, %v2640
        %v2642 = vsub.f32 1.5, %v2641
        %v2643 = vmul.f32 %v2638, %v2642
        %vm2644 = vweird.f32 %v2607
        %vm2645 = vweird.f32 %v2638
        %vm2646 = vmor %vm2644, %vm2645
        %v2647 = vsel %vm2646, %v2638, %v2643
        %v2648 = vmul.f32 %v2584, %v2617
        %v2649 = vmul.f32 %v2585, %v2627
        %v2650 = vmul.f32 %v2586, %v2637
        %v2651 = vmul.f32 %v2587, %v2647
        %v2653 = vperm.slane %v2570, 0
        %v2655 = vmul.f32 %v2648, %v2653
        %v2656 = vmul.f32 %v2649, %v2653
        %v2657 = vmul.f32 %v2650, %v2653
        %v2658 = vmul.f32 %v2651, %v2653
        %v2660 = vperm.slane %v2571, 0
        %v2662 = vadd.f32 %v2655, %v2660
        %v2663 = vadd.f32 %v2656, %v2660
        %v2664 = vadd.f32 %v2657, %v2660
        %v2665 = vadd.f32 %v2658, %v2660
        %2666 = vst [vmem:[#allocation2] sm:$0xff] %v2662
        %2667 = vst [vmem:[#allocation2 + $0x8] sm:$0xff] %v2663
        %2668 = vst [vmem:[#allocation2 + $0x10] sm:$0xff] %v2664
        %2669 = vst [vmem:[#allocation2 + $0x18] sm:$0xff] %v2665
        %p2670 = scmp.eq.s32.totalorder %s38, 1
        // Predicated region
        $region117: #{text_encoder_forward.1} parent=99 // pred_check
          %p2671 = pneg %p2670
        $region118: #{text_encoder_forward.1} parent=99 // pred_check_branch
          %2673 = sbr.rel (%p2671) target = $region120
        $region119: #{text_encoder_forward.1} parent=99 // pred_region
          %v2675 = vrot.slane %v2664, 7
          %vm2677 = vcmask 1040384
          %v2678 = vsel %vm2677, %v2662, %v2675
          %v2679 = vpack.c.bf16 %v2678, %v2678
          %v2680 = vld [vmem:[#allocation11] sm:$0xf]
          %v2681 = vld [vmem:[#allocation11 + $0x4] sm:$0xf]
          %v2682 = vld [vmem:[#allocation11 + $0x8] sm:$0xf]
          %v2683 = vld [vmem:[#allocation11 + $0xc] sm:$0xf]
          %v2684 = vld [vmem:[#allocation11 + $0x10] sm:$0xf]
          %v2685 = vld [vmem:[#allocation11 + $0x14] sm:$0xf]
          %v2686 = vld [vmem:[#allocation11 + $0x18] sm:$0xf]
          %v2687 = vld [vmem:[#allocation11 + $0x1c] sm:$0xf]
          %v2688 = vld [vmem:[#allocation11 + $0x20] sm:$0xf]
          %v2689 = vld [vmem:[#allocation11 + $0x24] sm:$0xf]
          %v2690 = vld [vmem:[#allocation11 + $0x28] sm:$0xf]
          %v2691 = vld [vmem:[#allocation11 + $0x2c] sm:$0xf]
          %v2692 = vld [vmem:[#allocation11 + $0x30] sm:$0xf]
          %v2693 = vld [vmem:[#allocation11 + $0x34] sm:$0xf]
          %v2694 = vld [vmem:[#allocation11 + $0x38] sm:$0xf]
          %v2695 = vld [vmem:[#allocation11 + $0x3c] sm:$0xf]
          %v2696 = vld [vmem:[%s17] sm:$0x1]
          %v2698 = vperm.slane %v2696, 0
          %v2716 = vunpack.c.l.b16 %v2680
          %v2717 = vunpack.c.l.b16 %v2681
          %v2718 = vunpack.c.l.b16 %v2682
          %v2719 = vunpack.c.l.b16 %v2683
          %v2720 = vunpack.c.l.b16 %v2684
          %v2721 = vunpack.c.l.b16 %v2685
          %v2722 = vunpack.c.l.b16 %v2686
          %v2723 = vunpack.c.l.b16 %v2687
          %v2724 = vunpack.c.l.b16 %v2688
          %v2725 = vunpack.c.l.b16 %v2689
          %v2726 = vunpack.c.l.b16 %v2690
          %v2727 = vunpack.c.l.b16 %v2691
          %v2728 = vunpack.c.l.b16 %v2692
          %v2729 = vunpack.c.l.b16 %v2693
          %v2730 = vunpack.c.l.b16 %v2694
          %v2731 = vunpack.c.l.b16 %v2695
          %v2732 = vpack.c.b16 %v2717, %v2716
          %v2733 = vpack.c.b16 %v2719, %v2718
          %v2734 = vpack.c.b16 %v2721, %v2720
          %v2735 = vpack.c.b16 %v2723, %v2722
          %v2736 = vpack.c.b16 %v2725, %v2724
          %v2737 = vpack.c.b16 %v2727, %v2726
          %v2738 = vpack.c.b16 %v2729, %v2728
          %v2739 = vpack.c.b16 %v2731, %v2730
          %2748 = vmatpush.bf16.msra.mxu0 %v2739
          %2749 = vmatpush.bf16.msra.mxu0 %v2738
          %2750 = vmatpush.bf16.msra.mxu0 %v2737
          %2751 = vmatpush.bf16.msra.mxu0 %v2736
          %2752 = vmatpush.bf16.msra.mxu0 %v2735
          %2753 = vmatpush.bf16.msra.mxu0 %v2734
          %2754 = vmatpush.bf16.msra.mxu0 %v2733
          %2755 = vmatpush.bf16.msra.mxu0 %v2732
          %2756 = vmatmul.bf16.gmra.mxu0 %v2679
          %v2757 = vpop.f32.mrf.mxu0
          %v2758 = vadd.f32 %v2698, %v2757
          %v2759 = vpop.f32.mrf.mxu0
          %2760 = vdwg.mxu0
          %v2761 = vtanh.pop %v2758
          %v2762 = vpack.c.bf16 %v2761, %v2761
          %v2763 = vld [vmem:[%s18] sm:$0xf]
          %v2764 = vld [vmem:[%s18 + $0x4] sm:$0xf]
          %v2765 = vld [vmem:[%s18 + $0x8] sm:$0xf]
          %v2766 = vld [vmem:[%s18 + $0xc] sm:$0xf]
          %v2767 = vld [vmem:[%s18 + $0x10] sm:$0xf]
          %v2768 = vld [vmem:[%s18 + $0x14] sm:$0xf]
          %v2769 = vld [vmem:[%s18 + $0x18] sm:$0xf]
          %v2770 = vld [vmem:[%s18 + $0x1c] sm:$0xf]
          %v2771 = vld [vmem:[%s18 + $0x20] sm:$0xf]
          %v2772 = vld [vmem:[%s18 + $0x24] sm:$0xf]
          %v2773 = vld [vmem:[%s18 + $0x28] sm:$0xf]
          %v2774 = vld [vmem:[%s18 + $0x2c] sm:$0xf]
          %v2775 = vld [vmem:[%s18 + $0x30] sm:$0xf]
          %v2776 = vld [vmem:[%s18 + $0x34] sm:$0xf]
          %v2777 = vld [vmem:[%s18 + $0x38] sm:$0xf]
          %v2778 = vld [vmem:[%s18 + $0x3c] sm:$0xf]
          %v2779 = vld [vmem:[%s19] sm:$0x1]
          %v2781 = vperm.slane %v2779, 0
          %v2799 = vunpack.c.l.b16 %v2763
          %v2800 = vunpack.c.l.b16 %v2764
          %v2801 = vunpack.c.l.b16 %v2765
          %v2802 = vunpack.c.l.b16 %v2766
          %v2803 = vunpack.c.l.b16 %v2767
          %v2804 = vunpack.c.l.b16 %v2768
          %v2805 = vunpack.c.l.b16 %v2769
          %v2806 = vunpack.c.l.b16 %v2770
          %v2807 = vunpack.c.l.b16 %v2771
          %v2808 = vunpack.c.l.b16 %v2772
          %v2809 = vunpack.c.l.b16 %v2773
          %v2810 = vunpack.c.l.b16 %v2774
          %v2811 = vunpack.c.l.b16 %v2775
          %v2812 = vunpack.c.l.b16 %v2776
          %v2813 = vunpack.c.l.b16 %v2777
          %v2814 = vunpack.c.l.b16 %v2778
          %v2815 = vpack.c.b16 %v2800, %v2799
          %v2816 = vpack.c.b16 %v2802, %v2801
          %v2817 = vpack.c.b16 %v2804, %v2803
          %v2818 = vpack.c.b16 %v2806, %v2805
          %v2819 = vpack.c.b16 %v2808, %v2807
          %v2820 = vpack.c.b16 %v2810, %v2809
          %v2821 = vpack.c.b16 %v2812, %v2811
          %v2822 = vpack.c.b16 %v2814, %v2813
          %2831 = vmatpush.bf16.msra.mxu0 %v2822
          %2832 = vmatpush.bf16.msra.mxu0 %v2821
          %2833 = vmatpush.bf16.msra.mxu0 %v2820
          %2834 = vmatpush.bf16.msra.mxu0 %v2819
          %2835 = vmatpush.bf16.msra.mxu0 %v2818
          %2836 = vmatpush.bf16.msra.mxu0 %v2817
          %2837 = vmatpush.bf16.msra.mxu0 %v2816
          %2838 = vmatpush.bf16.msra.mxu0 %v2815
          %2839 = vmatmul.bf16.gmra.mxu0 %v2762
          %v2840 = vpop.f32.mrf.mxu0
          %v2841 = vadd.f32 %v2781, %v2840
          %v2842 = vpop.f32.mrf.mxu0
          %2843 = vdwg.mxu0
          %vm2844 = vcmask 254976
          %2845 = vst.msk [vmem:[#allocation12] sm:$0x3] %vm2844, %v2841
        $region120: #{text_encoder_forward.1} parent=99 // pred_fallthru
          _
        // Predicated region
        $region121: #{text_encoder_forward.1} parent=99 // pred_check
          %p2846 = pneg %p531
        $region122: #{text_encoder_forward.1} parent=99 // pred_check_branch
          %2848 = sbr.rel (%p2846) target = $region124
        $region123: #{text_encoder_forward.1} parent=99 // pred_region
          %2850 = vsyncadd [#allocation8], 0
          %s2852 = sshll.u32 [#allocation12], 4
          %s2853 = int_to_ptr.vmem [resolvable:$true] %s2852
          %s2854 = sshll.u32 %s20, 4
          %s2855 = int_to_ptr.hbm [resolvable:$true] %s2854
          %2857 = dma.vmem_to_hbm [thread:$0]  %s2853, 32, %s2855, [#allocation8]
        $region124: #{text_encoder_forward.1} parent=99 // pred_fallthru
          _
        // Predicated region
        $region125: #{text_encoder_forward.1} parent=99 // pred_check
          %p2858 = pneg %p531
        $region126: #{text_encoder_forward.1} parent=99 // pred_check_branch
          %2860 = sbr.rel (%p2858) target = $region128
        $region127: #{text_encoder_forward.1} parent=99 // pred_region
          %2862 = dma.done [#allocation8], 32
        $region128: #{text_encoder_forward.1} parent=99 // pred_fallthru
          _
      $region100: #{text_encoder_forward.1} parent=5 // pred_fallthru
        _
      %p2863 = scmp.le.s32.totalorder 2, %s33
      // Predicated region
      $region129: #{text_encoder_forward.1} parent=5 // pred_check
        %p2864 = pneg %p2863
      $region130: #{text_encoder_forward.1} parent=5 // pred_check_branch
        %2866 = sbr.rel (%p2864) target = $region132
      $region131: #{text_encoder_forward.1} parent=5 // pred_region
        %s2867 = ssub.s32 %s33, 2
      $region132: #{text_encoder_forward.1} parent=5 // pred_fallthru
        _
    $region6: #{text_encoder_forward.1} parent=1 // loop_footer
      %s37 = sadd.s32 1, %s33
    $region7: #{text_encoder_forward.1} parent=1 // loop_footer_branch
      %32 = sbr.rel target = $region3
    $region8: #{text_encoder_forward.1} parent=1 // loop_exit
      _
    %2868 = vsyncpa [#allocation7], 1
    %s2869 = scalar_lea.sflag [#allocation7], 1
    %2870 = vsyncpa %s2869, 1
    %2871 = vsyncpa [#allocation10], 1
    %s2872 = scalar_lea.sflag [#allocation10], 1
    %2873 = vsyncpa %s2872, 1
    %2874 = vsyncpa [#allocation8], 1
    %s2875 = scalar_lea.sflag [#allocation8], 1
    %2876 = vsyncpa %s2875, 1

</llo_original>
